<compile_context>
chip_gen: v7x
topology: tpu7x:2x2x1
jax: 0.10.0
libtpu: 0.0.40
codegen_flags: <defaults>
</compile_context>

<pallas_src>
import functools

import jax
import jax.numpy as jnp
from jax import lax
from jax.experimental import pallas as pl
from jax.experimental.pallas import tpu as pltpu


def _round_up(x, m):
    return ((x + m - 1) // m) * m


# --------------------------- fused Pallas kernel ----------------------------

def _fused_attention_kernel(xf_ref, xq_ref, wq_ref, wk_ref, wv_ref, wqe_ref,
                            wo_ref, buckets_ref, o_ref, *,
                            num_heads, dim_head, nb2):
    """One grid step == one (batch, query-tile) pair.

    xf_ref      : [S, dim]          bf16  full sequence (source of K / V)
    xq_ref      : [tq, dim]         bf16  query-tile rows
    wq_ref      : [dim, inner]      bf16  query projection (softmax scale folded in)
    wk_ref      : [dim, inner]      bf16  key projection
    wv_ref      : [dim, inner]      bf16  value projection
    wqe_ref     : [dim, H*nb2]      bf16  fused positional projection (scale folded in)
    wo_ref      : [inner, dim_pad]  bf16  output projection (zero-padded lanes)
    buckets_ref : [tq, S]           int32 relative-position bucket map (this tile)
    o_ref       : [tq, dim_pad]     bf16  lane-dense output slab
    """
    xf = xf_ref[...]
    xq = xq_ref[...]
    buckets = buckets_ref[...]

    # Projections: bf16 operands, f32 accumulation on the MXU (K = dim).
    # TODO(synk): at large S with multiple query tiles, K/V are recomputed per
    # tile; precompute them once per batch (extra grid pass or in-kernel loop).
    k = jnp.dot(xf, wk_ref[...], preferred_element_type=jnp.float32)   # [S, inner]
    v = jnp.dot(xf, wv_ref[...], preferred_element_type=jnp.float32)   # [S, inner]
    q = jnp.dot(xq, wq_ref[...], preferred_element_type=jnp.float32)   # [tq, inner]
    # Positional term fused into projection time: qe[:, h*nb2 + n] is the
    # (scaled) dot of query row with emb[n] for head h.
    qe = jnp.dot(xq, wqe_ref[...], preferred_element_type=jnp.float32)  # [tq, H*nb2]

    # Content scores per head: q_h @ k_h^T (K = dim_head is inherent to the model).
    scores = []
    for h in range(num_heads):                      # static, unrolled head loop
        lo = h * dim_head
        qh = q[:, lo:lo + dim_head].astype(jnp.bfloat16)
        kh = k[:, lo:lo + dim_head].astype(jnp.bfloat16)
        s = lax.dot_general(qh, kh, (((1,), (1,)), ((), ())),
                            preferred_element_type=jnp.float32)        # [tq, S]
        scores.append(s)

    # Relative-position term without materialising [S, S, dim_head]:
    #   ctx_h[i, j] = qe[i, h*nb2 + buckets[i, j]]
    # realised as a masked select-sum over the tiny bucket vocabulary.
    # Bucket-outer / head-inner so each compare is shared across all heads.
    # TODO(synk): for very large S tiles convert these unrolled loops to
    # lax.fori_loop (modest unroll) to bound vreg live ranges.
    # TODO(synk): on v7x the bucket sub-map could be recomputed in-kernel from
    # lax.broadcasted_iota instead of DMA'ing the int32 map.
    for n in range(nb2):
        m = buckets == n                            # one compare per bucket
        for h in range(num_heads):
            col = qe[:, h * nb2 + n:h * nb2 + n + 1]          # [tq, 1]
            scores[h] = scores[h] + jnp.where(m, col, 0.0)

    # Softmax (f32) + P@V per head; heads are packed into one [tq, inner]
    # operand so the output projection is a single K = inner MXU matmul.
    parts = []
    for h in range(num_heads):
        s = scores[h]
        s = s - jnp.max(s, axis=-1, keepdims=True)
        p = jnp.exp(s)
        p = p * pl.reciprocal(jnp.sum(p, axis=-1, keepdims=True), approx=True)
        lo = h * dim_head
        vh = v[:, lo:lo + dim_head].astype(jnp.bfloat16)
        ph = jnp.dot(p.astype(jnp.bfloat16), vh,
                     preferred_element_type=jnp.float32)                # [tq, dh]
        parts.append(ph)
    attn = jnp.concatenate(parts, axis=-1).astype(jnp.bfloat16)         # [tq, inner]

    out = jnp.dot(attn, wo_ref[...], preferred_element_type=jnp.float32)
    # TODO(synk): mask / topk score-thresholding / dropout branches of the
    # reference are not implemented (forward exercised with mask=None,
    # topk=-1, eval mode).
    o_ref[...] = out.astype(o_ref.dtype)


# ------------------------------ JAX glue ------------------------------------

def compute_relative_buckets(query_shape_2d, key_shape_2d, num_buckets):
    """Binned 2-D relative-position buckets (int32 [S_q, S_k]); matches the
    reference `compute_bias` bucket math exactly."""
    half = num_buckets // 2
    qh, qw = query_shape_2d
    kh, kw = key_shape_2d
    rel_v = jnp.arange(kh)[None, :] - jnp.arange(qh)[:, None]   # [qh, kh]
    rel_h = jnp.arange(kw)[None, :] - jnp.arange(qw)[:, None]   # [qw, kw]
    rv = jnp.broadcast_to(rel_v[:, None, :, None], (qh, qw, kh, kw))
    rh = jnp.broadcast_to(rel_h[None, :, None, :], (qh, qw, kh, kw))
    rv = rv.reshape(qh * qw, kh * kw)
    rh = rh.reshape(qh * qw, kh * kw)
    hamming = jnp.abs(rh) + jnp.abs(rv)
    is_small = hamming <= half
    buckets = (rv + half) * num_buckets + (rh + half)
    buckets = jnp.where(is_small, buckets, 0)
    return buckets.astype(jnp.int32)


def attention_forward(hidden_states, W_qkv, W_o, emb_weight, query_shape_2d,
                      key_shape_2d, *, num_heads, dim_head, num_buckets, scale,
                      return_position_bias=True):
    """Returns (attn_output [B, S, dim], position_bias [S, S, dim_head] or None)."""
    B, S, dim = hidden_states.shape
    inner_dim = num_heads * dim_head
    nb2 = num_buckets ** 2

    # De-interleave the fused qkv weight: reference splits the projection
    # output as .reshape(B, -1, 3)[..., t], i.e. output column 3*c + t belongs
    # to tensor t, channel c.  The softmax scale distributes over both the
    # content and positional terms, so fold it into the q-side weights once.
    W_q = W_qkv[:, 0::3] * scale
    W_k = W_qkv[:, 1::3]
    W_v = W_qkv[:, 2::3]

    # Fuse q @ emb^T into projection time:
    #   W_qe[:, h*nb2:(h+1)*nb2] = scale * W_q_raw[:, h*dh:(h+1)*dh] @ emb^T
    W_q_heads = W_q.reshape(dim, num_heads, dim_head)           # scale included
    W_qe = jnp.einsum('dhc,nc->dhn', W_q_heads, emb_weight)
    W_qe = W_qe.reshape(dim, num_heads * nb2)

    # Lane-dense output slab: only pad W_o columns when dim is not already a
    # multiple of 128 (at production dims that are 128-aligned, no slice).
    if dim % 128 == 0:
        dim_pad = dim
        W_o_pad = W_o
    else:
        dim_pad = _round_up(dim, 128)
        W_o_pad = jnp.zeros((inner_dim, dim_pad), W_o.dtype).at[:, :dim].set(W_o)

    # Per-generation tiling / VMEM budget.
    kind = jax.devices()[0].device_kind.lower()
    pref_tile = 128 if "v5" in kind else 256       # MXU-aligned query tiles
    if S <= pref_tile:
        tq = S
    elif S % pref_tile == 0:
        tq = pref_tile
    elif S % 128 == 0:
        tq = 128
    else:
        tq = S
    n_qt = S // tq

    if "v7" in kind:
        vmem_limit = 48 * 1024 * 1024              # 64 MiB physical per TC
    elif "v6" in kind or "v5" in kind:
        vmem_limit = 100 * 1024 * 1024             # 128 MiB physical
    else:
        vmem_limit = None                          # compiler default elsewhere

    # bf16 MXU operands (f32 accumulation happens inside the kernel).
    x_b = hidden_states.astype(jnp.bfloat16)
    W_q_b = W_q.astype(jnp.bfloat16)
    W_k_b = W_k.astype(jnp.bfloat16)
    W_v_b = W_v.astype(jnp.bfloat16)
    W_qe_b = W_qe.astype(jnp.bfloat16)
    W_o_b = W_o_pad.astype(jnp.bfloat16)

    # Only the int32 bucket map goes to the kernel (per-query-tile blocks);
    # the [S, S, dim_head] position_bias tensor the module returns is only
    # materialized when the caller actually consumes it.
    buckets = compute_relative_buckets(query_shape_2d, key_shape_2d, num_buckets)
    position_bias = emb_weight[buckets] if return_position_bias else None

    kern = functools.partial(_fused_attention_kernel, num_heads=num_heads,
                             dim_head=dim_head, nb2=nb2)
    out_pad = pl.pallas_call(
        kern,
        out_shape=jax.ShapeDtypeStruct((B, S, dim_pad), jnp.bfloat16),
        grid=(B, n_qt),
        in_specs=[
            pl.BlockSpec((None, S, dim), lambda b, t: (b, 0, 0)),        # x (full, K/V)
            pl.BlockSpec((None, tq, dim), lambda b, t: (b, t, 0)),       # x (q tile)
            pl.BlockSpec((dim, inner_dim), lambda b, t: (0, 0)),         # W_q (scaled)
            pl.BlockSpec((dim, inner_dim), lambda b, t: (0, 0)),         # W_k
            pl.BlockSpec((dim, inner_dim), lambda b, t: (0, 0)),         # W_v
            pl.BlockSpec((dim, num_heads * nb2), lambda b, t: (0, 0)),   # W_qe
            pl.BlockSpec((inner_dim, dim_pad), lambda b, t: (0, 0)),     # W_o (padded)
            pl.BlockSpec((tq, S), lambda b, t: (t, 0)),                  # bucket tile
        ],
        out_specs=pl.BlockSpec((None, tq, dim_pad), lambda b, t: (b, t, 0)),
        compiler_params=pltpu.CompilerParams(
            # Two parallel axes: batch and query tiles (keeps both v7x
            # TensorCores busy even when B == 1).  Constant index maps keep the
            # weights VMEM-resident across steps.
            dimension_semantics=("parallel", "parallel"),
            vmem_limit_bytes=vmem_limit,
        ),
    )(x_b, x_b, W_q_b, W_k_b, W_v_b, W_qe_b, W_o_b, buckets)

    out = out_pad if dim_pad == dim else out_pad[..., :dim]
    return out.astype(hidden_states.dtype), position_bias


# -------------------------- pure-JAX reference ------------------------------

def _reference_forward(hidden_states, W_qkv, W_o, emb_weight, query_shape_2d,
                       key_shape_2d, *, num_heads, dim_head, num_buckets, scale):
    """Straightforward f32 port of the PyTorch forward (mask=None, topk=-1)."""
    B, S, dim = hidden_states.shape
    inner_dim = num_heads * dim_head
    qkv = (hidden_states @ W_qkv).reshape(B, S, inner_dim, 3)

    def shape_heads(t):
        return t.reshape(B, S, num_heads, dim_head).transpose(0, 2, 1, 3)

    q = shape_heads(qkv[..., 0])
    k = shape_heads(qkv[..., 1])
    v = shape_heads(qkv[..., 2])
    buckets = compute_relative_buckets(query_shape_2d, key_shape_2d, num_buckets)
    pos_bias = emb_weight[buckets]                            # [S, S, dh]
    scores = jnp.einsum('bhid,bhjd->bhij', q, k)
    ctx = jnp.einsum('bhid,ijd->bhij', q, pos_bias)
    scores = (scores + ctx) * scale
    attn = jax.nn.softmax(scores, axis=-1)
    out = jnp.einsum('bhij,bhjd->bhid', attn, v)
    out = out.transpose(0, 2, 1, 3).reshape(B, S, inner_dim)
    return out @ W_o, pos_bias


# ------------------------------- main ---------------------------------------

if __name__ == "__main__":
    # Small config consistent with the module.
    batch = 2
    dim = 32
    num_heads = 4
    dim_head = 8
    inner_dim = num_heads * dim_head        # 32
    num_buckets = 5                         # must be odd
    query_shape_2d = (4, 4)
    key_shape_2d = (4, 4)
    seq = query_shape_2d[0] * query_shape_2d[1]   # 16
    # Reference uses self.dim ** -0.5 (not dim_head ** -0.5) when config.scale.
    scale = dim ** (-0.5)

    key = jax.random.PRNGKey(0)
    k_qkv, k_o, k_emb, k_x = jax.random.split(key, 4)

    # Synthetic parameters (nn.Linear weights stored as [in, out] so y = x @ W,
    # bias=False; embedding table [num_buckets**2, dim_head]).
    W_qkv = jax.random.normal(k_qkv, (dim, 3 * inner_dim), jnp.float32) * (dim ** -0.5)
    W_o = jax.random.normal(k_o, (inner_dim, dim), jnp.float32) * (inner_dim ** -0.5)
    emb_weight = jax.random.normal(
        k_emb, (num_buckets ** 2, dim_head), jnp.float32) * 0.02
    hidden_states = jax.random.normal(k_x, (batch, seq, dim), jnp.float32)

    out, pos_bias = attention_forward(
        hidden_states,
        W_qkv,
        W_o,
        emb_weight,
        query_shape_2d,
        key_shape_2d,
        num_heads=num_heads,
        dim_head=dim_head,
        num_buckets=num_buckets,
        scale=scale,
    )
    out = jax.block_until_ready(out)
    pos_bias = jax.block_until_ready(pos_bias)

    assert out.shape == (batch, seq, dim)
    assert pos_bias.shape == (seq, seq, dim_head)
    assert bool(jnp.all(jnp.isfinite(out)))

    # Check against a pure-JAX f32 reference (loose tolerance: the kernel runs
    # bf16-in / f32-accumulate matmuls, an approx reciprocal in the softmax,
    # and stores a bf16 output slab).
    ref_out, ref_bias = _reference_forward(
        hidden_states, W_qkv, W_o, emb_weight, query_shape_2d, key_shape_2d,
        num_heads=num_heads, dim_head=dim_head, num_buckets=num_buckets,
        scale=scale)
    assert bool(jnp.allclose(pos_bias, ref_bias)), "position_bias mismatch"
    max_err = float(jnp.max(jnp.abs(out - ref_out)))
    assert bool(jnp.allclose(out, ref_out, atol=5e-2, rtol=5e-2)), max_err

    print("KERNEL_OK")
</pallas_src>

<mosaic_0001>
module attributes {stable_mosaic.version = 11 : i64} {
  func.func @_fused_attention_kernel(%arg0: i32, %arg1: i32, %arg2: memref<1x16x32xbf16, #tpu.memory_space<vmem>>, %arg3: memref<1x16x32xbf16, #tpu.memory_space<vmem>>, %arg4: memref<32x32xbf16, #tpu.memory_space<vmem>>, %arg5: memref<32x32xbf16, #tpu.memory_space<vmem>>, %arg6: memref<32x32xbf16, #tpu.memory_space<vmem>>, %arg7: memref<32x100xbf16, #tpu.memory_space<vmem>>, %arg8: memref<32x128xbf16, #tpu.memory_space<vmem>>, %arg9: memref<16x16xi32, #tpu.memory_space<vmem>>, %arg10: memref<1x16x128xbf16, #tpu.memory_space<vmem>>) attributes {dimension_semantics = [#tpu.dimension_semantics<parallel>, #tpu.dimension_semantics<parallel>], iteration_bounds = array<i64: 2, 1>, scalar_prefetch = 0 : i64, scratch_operands = 0 : i64, tpu.core_type = #tpu.core_type<tc>, window_params = [{transform_indices = @transform_0, window_bounds = array<i64: 1, 16, 32>}, {transform_indices = @transform_1, window_bounds = array<i64: 1, 16, 32>}, {pipeline_mode = #tpu.pipeline_mode<synchronous>, transform_indices = @transform_2, window_bounds = array<i64: 32, 32>}, {pipeline_mode = #tpu.pipeline_mode<synchronous>, transform_indices = @transform_3, window_bounds = array<i64: 32, 32>}, {pipeline_mode = #tpu.pipeline_mode<synchronous>, transform_indices = @transform_4, window_bounds = array<i64: 32, 32>}, {pipeline_mode = #tpu.pipeline_mode<synchronous>, transform_indices = @transform_5, window_bounds = array<i64: 32, 100>}, {pipeline_mode = #tpu.pipeline_mode<synchronous>, transform_indices = @transform_6, window_bounds = array<i64: 32, 128>}, {transform_indices = @transform_7, window_bounds = array<i64: 16, 16>}, {transform_indices = @transform_8, window_bounds = array<i64: 1, 16, 128>}]} {
    %c0 = arith.constant 0 : index
    %c0_0 = arith.constant 0 : index
    %c0_1 = arith.constant 0 : index
    %0 = vector.load %arg2[%c0, %c0_0, %c0_1] : memref<1x16x32xbf16, #tpu.memory_space<vmem>>, vector<1x16x32xbf16>
    %1 = vector.shape_cast %0 : vector<1x16x32xbf16> to vector<16x32xbf16>
    %c0_2 = arith.constant 0 : index
    %c0_3 = arith.constant 0 : index
    %c0_4 = arith.constant 0 : index
    %2 = vector.load %arg3[%c0_2, %c0_3, %c0_4] : memref<1x16x32xbf16, #tpu.memory_space<vmem>>, vector<1x16x32xbf16>
    %3 = vector.shape_cast %2 : vector<1x16x32xbf16> to vector<16x32xbf16>
    %c0_5 = arith.constant 0 : index
    %c0_6 = arith.constant 0 : index
    %4 = vector.load %arg9[%c0_5, %c0_6] : memref<16x16xi32, #tpu.memory_space<vmem>>, vector<16x16xi32>
    %c0_7 = arith.constant 0 : index
    %c0_8 = arith.constant 0 : index
    %5 = vector.load %arg5[%c0_7, %c0_8] : memref<32x32xbf16, #tpu.memory_space<vmem>>, vector<32x32xbf16>
    %cst = arith.constant dense<0.000000e+00> : vector<16x32xf32>
    %6 = tpu.matmul %1, %5, %cst {dimension_numbers = #tpu.dot_dimension_numbers<[1], [0], [0], [1], [0, 0, 1, 1], [], []>} : vector<16x32xbf16>, vector<32x32xbf16>, vector<16x32xf32> -> vector<16x32xf32>
    %c0_9 = arith.constant 0 : index
    %c0_10 = arith.constant 0 : index
    %7 = vector.load %arg6[%c0_9, %c0_10] : memref<32x32xbf16, #tpu.memory_space<vmem>>, vector<32x32xbf16>
    %cst_11 = arith.constant dense<0.000000e+00> : vector<16x32xf32>
    %8 = tpu.matmul %1, %7, %cst_11 {dimension_numbers = #tpu.dot_dimension_numbers<[1], [0], [0], [1], [0, 0, 1, 1], [], []>} : vector<16x32xbf16>, vector<32x32xbf16>, vector<16x32xf32> -> vector<16x32xf32>
    %c0_12 = arith.constant 0 : index
    %c0_13 = arith.constant 0 : index
    %9 = vector.load %arg4[%c0_12, %c0_13] : memref<32x32xbf16, #tpu.memory_space<vmem>>, vector<32x32xbf16>
    %cst_14 = arith.constant dense<0.000000e+00> : vector<16x32xf32>
    %10 = tpu.matmul %3, %9, %cst_14 {dimension_numbers = #tpu.dot_dimension_numbers<[1], [0], [0], [1], [0, 0, 1, 1], [], []>} : vector<16x32xbf16>, vector<32x32xbf16>, vector<16x32xf32> -> vector<16x32xf32>
    %c0_15 = arith.constant 0 : index
    %c0_16 = arith.constant 0 : index
    %11 = vector.load %arg7[%c0_15, %c0_16] : memref<32x100xbf16, #tpu.memory_space<vmem>>, vector<32x100xbf16>
    %cst_17 = arith.constant dense<0.000000e+00> : vector<16x100xf32>
    %12 = tpu.matmul %3, %11, %cst_17 {dimension_numbers = #tpu.dot_dimension_numbers<[1], [0], [0], [1], [0, 0, 1, 1], [], []>} : vector<16x32xbf16>, vector<32x100xbf16>, vector<16x100xf32> -> vector<16x100xf32>
    %13 = vector.extract_strided_slice %10 {offsets = [0, 0], sizes = [16, 8], strides = [1, 1]} : vector<16x32xf32> to vector<16x8xf32>
    %14 = arith.truncf %13 : vector<16x8xf32> to vector<16x8xbf16>
    %15 = vector.extract_strided_slice %6 {offsets = [0, 0], sizes = [16, 8], strides = [1, 1]} : vector<16x32xf32> to vector<16x8xf32>
    %16 = arith.truncf %15 : vector<16x8xf32> to vector<16x8xbf16>
    %cst_18 = arith.constant dense<0.000000e+00> : vector<16x16xf32>
    %17 = tpu.matmul %14, %16, %cst_18 {dimension_numbers = #tpu.dot_dimension_numbers<[1], [1], [0], [0], [0, 0, 1, 0], [], []>} : vector<16x8xbf16>, vector<16x8xbf16>, vector<16x16xf32> -> vector<16x16xf32>
    %18 = vector.extract_strided_slice %10 {offsets = [0, 8], sizes = [16, 8], strides = [1, 1]} : vector<16x32xf32> to vector<16x8xf32>
    %19 = arith.truncf %18 : vector<16x8xf32> to vector<16x8xbf16>
    %20 = vector.extract_strided_slice %6 {offsets = [0, 8], sizes = [16, 8], strides = [1, 1]} : vector<16x32xf32> to vector<16x8xf32>
    %21 = arith.truncf %20 : vector<16x8xf32> to vector<16x8xbf16>
    %cst_19 = arith.constant dense<0.000000e+00> : vector<16x16xf32>
    %22 = tpu.matmul %19, %21, %cst_19 {dimension_numbers = #tpu.dot_dimension_numbers<[1], [1], [0], [0], [0, 0, 1, 0], [], []>} : vector<16x8xbf16>, vector<16x8xbf16>, vector<16x16xf32> -> vector<16x16xf32>
    %23 = vector.extract_strided_slice %10 {offsets = [0, 16], sizes = [16, 8], strides = [1, 1]} : vector<16x32xf32> to vector<16x8xf32>
    %24 = arith.truncf %23 : vector<16x8xf32> to vector<16x8xbf16>
    %25 = vector.extract_strided_slice %6 {offsets = [0, 16], sizes = [16, 8], strides = [1, 1]} : vector<16x32xf32> to vector<16x8xf32>
    %26 = arith.truncf %25 : vector<16x8xf32> to vector<16x8xbf16>
    %cst_20 = arith.constant dense<0.000000e+00> : vector<16x16xf32>
    %27 = tpu.matmul %24, %26, %cst_20 {dimension_numbers = #tpu.dot_dimension_numbers<[1], [1], [0], [0], [0, 0, 1, 0], [], []>} : vector<16x8xbf16>, vector<16x8xbf16>, vector<16x16xf32> -> vector<16x16xf32>
    %28 = vector.extract_strided_slice %10 {offsets = [0, 24], sizes = [16, 8], strides = [1, 1]} : vector<16x32xf32> to vector<16x8xf32>
    %29 = arith.truncf %28 : vector<16x8xf32> to vector<16x8xbf16>
    %30 = vector.extract_strided_slice %6 {offsets = [0, 24], sizes = [16, 8], strides = [1, 1]} : vector<16x32xf32> to vector<16x8xf32>
    %31 = arith.truncf %30 : vector<16x8xf32> to vector<16x8xbf16>
    %cst_21 = arith.constant dense<0.000000e+00> : vector<16x16xf32>
    %32 = tpu.matmul %29, %31, %cst_21 {dimension_numbers = #tpu.dot_dimension_numbers<[1], [1], [0], [0], [0, 0, 1, 0], [], []>} : vector<16x8xbf16>, vector<16x8xbf16>, vector<16x16xf32> -> vector<16x16xf32>
    %c0_i32 = arith.constant 0 : i32
    %33 = vector.broadcast %c0_i32 : i32 to vector<16x16xi32>
    %34 = arith.cmpi eq, %4, %33 : vector<16x16xi32>
    %35 = vector.extract_strided_slice %12 {offsets = [0, 0], sizes = [16, 1], strides = [1, 1]} : vector<16x100xf32> to vector<16x1xf32>
    %cst_22 = arith.constant 0.000000e+00 : f32
    %36 = vector.shape_cast %35 : vector<16x1xf32> to vector<16x1xf32>
    %37 = vector.broadcast %36 : vector<16x1xf32> to vector<16x16xf32>
    %38 = vector.broadcast %cst_22 : f32 to vector<16x16xf32>
    %39 = arith.select %34, %37, %38 : vector<16x16xi1>, vector<16x16xf32>
    %40 = arith.addf %17, %39 : vector<16x16xf32>
    %41 = vector.extract_strided_slice %12 {offsets = [0, 25], sizes = [16, 1], strides = [1, 1]} : vector<16x100xf32> to vector<16x1xf32>
    %cst_23 = arith.constant 0.000000e+00 : f32
    %42 = vector.shape_cast %41 : vector<16x1xf32> to vector<16x1xf32>
    %43 = vector.broadcast %42 : vector<16x1xf32> to vector<16x16xf32>
    %44 = vector.broadcast %cst_23 : f32 to vector<16x16xf32>
    %45 = arith.select %34, %43, %44 : vector<16x16xi1>, vector<16x16xf32>
    %46 = arith.addf %22, %45 : vector<16x16xf32>
    %47 = vector.extract_strided_slice %12 {offsets = [0, 50], sizes = [16, 1], strides = [1, 1]} : vector<16x100xf32> to vector<16x1xf32>
    %cst_24 = arith.constant 0.000000e+00 : f32
    %48 = vector.shape_cast %47 : vector<16x1xf32> to vector<16x1xf32>
    %49 = vector.broadcast %48 : vector<16x1xf32> to vector<16x16xf32>
    %50 = vector.broadcast %cst_24 : f32 to vector<16x16xf32>
    %51 = arith.select %34, %49, %50 : vector<16x16xi1>, vector<16x16xf32>
    %52 = arith.addf %27, %51 : vector<16x16xf32>
    %53 = vector.extract_strided_slice %12 {offsets = [0, 75], sizes = [16, 1], strides = [1, 1]} : vector<16x100xf32> to vector<16x1xf32>
    %cst_25 = arith.constant 0.000000e+00 : f32
    %54 = vector.shape_cast %53 : vector<16x1xf32> to vector<16x1xf32>
    %55 = vector.broadcast %54 : vector<16x1xf32> to vector<16x16xf32>
    %56 = vector.broadcast %cst_25 : f32 to vector<16x16xf32>
    %57 = arith.select %34, %55, %56 : vector<16x16xi1>, vector<16x16xf32>
    %58 = arith.addf %32, %57 : vector<16x16xf32>
    %c1_i32 = arith.constant 1 : i32
    %59 = vector.broadcast %c1_i32 : i32 to vector<16x16xi32>
    %60 = arith.cmpi eq, %4, %59 : vector<16x16xi32>
    %61 = vector.extract_strided_slice %12 {offsets = [0, 1], sizes = [16, 1], strides = [1, 1]} : vector<16x100xf32> to vector<16x1xf32>
    %cst_26 = arith.constant 0.000000e+00 : f32
    %62 = vector.shape_cast %61 : vector<16x1xf32> to vector<16x1xf32>
    %63 = vector.broadcast %62 : vector<16x1xf32> to vector<16x16xf32>
    %64 = vector.broadcast %cst_26 : f32 to vector<16x16xf32>
    %65 = arith.select %60, %63, %64 : vector<16x16xi1>, vector<16x16xf32>
    %66 = arith.addf %40, %65 : vector<16x16xf32>
    %67 = vector.extract_strided_slice %12 {offsets = [0, 26], sizes = [16, 1], strides = [1, 1]} : vector<16x100xf32> to vector<16x1xf32>
    %cst_27 = arith.constant 0.000000e+00 : f32
    %68 = vector.shape_cast %67 : vector<16x1xf32> to vector<16x1xf32>
    %69 = vector.broadcast %68 : vector<16x1xf32> to vector<16x16xf32>
    %70 = vector.broadcast %cst_27 : f32 to vector<16x16xf32>
    %71 = arith.select %60, %69, %70 : vector<16x16xi1>, vector<16x16xf32>
    %72 = arith.addf %46, %71 : vector<16x16xf32>
    %73 = vector.extract_strided_slice %12 {offsets = [0, 51], sizes = [16, 1], strides = [1, 1]} : vector<16x100xf32> to vector<16x1xf32>
    %cst_28 = arith.constant 0.000000e+00 : f32
    %74 = vector.shape_cast %73 : vector<16x1xf32> to vector<16x1xf32>
    %75 = vector.broadcast %74 : vector<16x1xf32> to vector<16x16xf32>
    %76 = vector.broadcast %cst_28 : f32 to vector<16x16xf32>
    %77 = arith.select %60, %75, %76 : vector<16x16xi1>, vector<16x16xf32>
    %78 = arith.addf %52, %77 : vector<16x16xf32>
    %79 = vector.extract_strided_slice %12 {offsets = [0, 76], sizes = [16, 1], strides = [1, 1]} : vector<16x100xf32> to vector<16x1xf32>
    %cst_29 = arith.constant 0.000000e+00 : f32
    %80 = vector.shape_cast %79 : vector<16x1xf32> to vector<16x1xf32>
    %81 = vector.broadcast %80 : vector<16x1xf32> to vector<16x16xf32>
    %82 = vector.broadcast %cst_29 : f32 to vector<16x16xf32>
    %83 = arith.select %60, %81, %82 : vector<16x16xi1>, vector<16x16xf32>
    %84 = arith.addf %58, %83 : vector<16x16xf32>
    %c2_i32 = arith.constant 2 : i32
    %85 = vector.broadcast %c2_i32 : i32 to vector<16x16xi32>
    %86 = arith.cmpi eq, %4, %85 : vector<16x16xi32>
    %87 = vector.extract_strided_slice %12 {offsets = [0, 2], sizes = [16, 1], strides = [1, 1]} : vector<16x100xf32> to vector<16x1xf32>
    %cst_30 = arith.constant 0.000000e+00 : f32
    %88 = vector.shape_cast %87 : vector<16x1xf32> to vector<16x1xf32>
    %89 = vector.broadcast %88 : vector<16x1xf32> to vector<16x16xf32>
    %90 = vector.broadcast %cst_30 : f32 to vector<16x16xf32>
    %91 = arith.select %86, %89, %90 : vector<16x16xi1>, vector<16x16xf32>
    %92 = arith.addf %66, %91 : vector<16x16xf32>
    %93 = vector.extract_strided_slice %12 {offsets = [0, 27], sizes = [16, 1], strides = [1, 1]} : vector<16x100xf32> to vector<16x1xf32>
    %cst_31 = arith.constant 0.000000e+00 : f32
    %94 = vector.shape_cast %93 : vector<16x1xf32> to vector<16x1xf32>
    %95 = vector.broadcast %94 : vector<16x1xf32> to vector<16x16xf32>
    %96 = vector.broadcast %cst_31 : f32 to vector<16x16xf32>
    %97 = arith.select %86, %95, %96 : vector<16x16xi1>, vector<16x16xf32>
    %98 = arith.addf %72, %97 : vector<16x16xf32>
    %99 = vector.extract_strided_slice %12 {offsets = [0, 52], sizes = [16, 1], strides = [1, 1]} : vector<16x100xf32> to vector<16x1xf32>
    %cst_32 = arith.constant 0.000000e+00 : f32
    %100 = vector.shape_cast %99 : vector<16x1xf32> to vector<16x1xf32>
    %101 = vector.broadcast %100 : vector<16x1xf32> to vector<16x16xf32>
    %102 = vector.broadcast %cst_32 : f32 to vector<16x16xf32>
    %103 = arith.select %86, %101, %102 : vector<16x16xi1>, vector<16x16xf32>
    %104 = arith.addf %78, %103 : vector<16x16xf32>
    %105 = vector.extract_strided_slice %12 {offsets = [0, 77], sizes = [16, 1], strides = [1, 1]} : vector<16x100xf32> to vector<16x1xf32>
    %cst_33 = arith.constant 0.000000e+00 : f32
    %106 = vector.shape_cast %105 : vector<16x1xf32> to vector<16x1xf32>
    %107 = vector.broadcast %106 : vector<16x1xf32> to vector<16x16xf32>
    %108 = vector.broadcast %cst_33 : f32 to vector<16x16xf32>
    %109 = arith.select %86, %107, %108 : vector<16x16xi1>, vector<16x16xf32>
    %110 = arith.addf %84, %109 : vector<16x16xf32>
    %c3_i32 = arith.constant 3 : i32
    %111 = vector.broadcast %c3_i32 : i32 to vector<16x16xi32>
    %112 = arith.cmpi eq, %4, %111 : vector<16x16xi32>
    %113 = vector.extract_strided_slice %12 {offsets = [0, 3], sizes = [16, 1], strides = [1, 1]} : vector<16x100xf32> to vector<16x1xf32>
    %cst_34 = arith.constant 0.000000e+00 : f32
    %114 = vector.shape_cast %113 : vector<16x1xf32> to vector<16x1xf32>
    %115 = vector.broadcast %114 : vector<16x1xf32> to vector<16x16xf32>
    %116 = vector.broadcast %cst_34 : f32 to vector<16x16xf32>
    %117 = arith.select %112, %115, %116 : vector<16x16xi1>, vector<16x16xf32>
    %118 = arith.addf %92, %117 : vector<16x16xf32>
    %119 = vector.extract_strided_slice %12 {offsets = [0, 28], sizes = [16, 1], strides = [1, 1]} : vector<16x100xf32> to vector<16x1xf32>
    %cst_35 = arith.constant 0.000000e+00 : f32
    %120 = vector.shape_cast %119 : vector<16x1xf32> to vector<16x1xf32>
    %121 = vector.broadcast %120 : vector<16x1xf32> to vector<16x16xf32>
    %122 = vector.broadcast %cst_35 : f32 to vector<16x16xf32>
    %123 = arith.select %112, %121, %122 : vector<16x16xi1>, vector<16x16xf32>
    %124 = arith.addf %98, %123 : vector<16x16xf32>
    %125 = vector.extract_strided_slice %12 {offsets = [0, 53], sizes = [16, 1], strides = [1, 1]} : vector<16x100xf32> to vector<16x1xf32>
    %cst_36 = arith.constant 0.000000e+00 : f32
    %126 = vector.shape_cast %125 : vector<16x1xf32> to vector<16x1xf32>
    %127 = vector.broadcast %126 : vector<16x1xf32> to vector<16x16xf32>
    %128 = vector.broadcast %cst_36 : f32 to vector<16x16xf32>
    %129 = arith.select %112, %127, %128 : vector<16x16xi1>, vector<16x16xf32>
    %130 = arith.addf %104, %129 : vector<16x16xf32>
    %131 = vector.extract_strided_slice %12 {offsets = [0, 78], sizes = [16, 1], strides = [1, 1]} : vector<16x100xf32> to vector<16x1xf32>
    %cst_37 = arith.constant 0.000000e+00 : f32
    %132 = vector.shape_cast %131 : vector<16x1xf32> to vector<16x1xf32>
    %133 = vector.broadcast %132 : vector<16x1xf32> to vector<16x16xf32>
    %134 = vector.broadcast %cst_37 : f32 to vector<16x16xf32>
    %135 = arith.select %112, %133, %134 : vector<16x16xi1>, vector<16x16xf32>
    %136 = arith.addf %110, %135 : vector<16x16xf32>
    %c4_i32 = arith.constant 4 : i32
    %137 = vector.broadcast %c4_i32 : i32 to vector<16x16xi32>
    %138 = arith.cmpi eq, %4, %137 : vector<16x16xi32>
    %139 = vector.extract_strided_slice %12 {offsets = [0, 4], sizes = [16, 1], strides = [1, 1]} : vector<16x100xf32> to vector<16x1xf32>
    %cst_38 = arith.constant 0.000000e+00 : f32
    %140 = vector.shape_cast %139 : vector<16x1xf32> to vector<16x1xf32>
    %141 = vector.broadcast %140 : vector<16x1xf32> to vector<16x16xf32>
    %142 = vector.broadcast %cst_38 : f32 to vector<16x16xf32>
    %143 = arith.select %138, %141, %142 : vector<16x16xi1>, vector<16x16xf32>
    %144 = arith.addf %118, %143 : vector<16x16xf32>
    %145 = vector.extract_strided_slice %12 {offsets = [0, 29], sizes = [16, 1], strides = [1, 1]} : vector<16x100xf32> to vector<16x1xf32>
    %cst_39 = arith.constant 0.000000e+00 : f32
    %146 = vector.shape_cast %145 : vector<16x1xf32> to vector<16x1xf32>
    %147 = vector.broadcast %146 : vector<16x1xf32> to vector<16x16xf32>
    %148 = vector.broadcast %cst_39 : f32 to vector<16x16xf32>
    %149 = arith.select %138, %147, %148 : vector<16x16xi1>, vector<16x16xf32>
    %150 = arith.addf %124, %149 : vector<16x16xf32>
    %151 = vector.extract_strided_slice %12 {offsets = [0, 54], sizes = [16, 1], strides = [1, 1]} : vector<16x100xf32> to vector<16x1xf32>
    %cst_40 = arith.constant 0.000000e+00 : f32
    %152 = vector.shape_cast %151 : vector<16x1xf32> to vector<16x1xf32>
    %153 = vector.broadcast %152 : vector<16x1xf32> to vector<16x16xf32>
    %154 = vector.broadcast %cst_40 : f32 to vector<16x16xf32>
    %155 = arith.select %138, %153, %154 : vector<16x16xi1>, vector<16x16xf32>
    %156 = arith.addf %130, %155 : vector<16x16xf32>
    %157 = vector.extract_strided_slice %12 {offsets = [0, 79], sizes = [16, 1], strides = [1, 1]} : vector<16x100xf32> to vector<16x1xf32>
    %cst_41 = arith.constant 0.000000e+00 : f32
    %158 = vector.shape_cast %157 : vector<16x1xf32> to vector<16x1xf32>
    %159 = vector.broadcast %158 : vector<16x1xf32> to vector<16x16xf32>
    %160 = vector.broadcast %cst_41 : f32 to vector<16x16xf32>
    %161 = arith.select %138, %159, %160 : vector<16x16xi1>, vector<16x16xf32>
    %162 = arith.addf %136, %161 : vector<16x16xf32>
    %c5_i32 = arith.constant 5 : i32
    %163 = vector.broadcast %c5_i32 : i32 to vector<16x16xi32>
    %164 = arith.cmpi eq, %4, %163 : vector<16x16xi32>
    %165 = vector.extract_strided_slice %12 {offsets = [0, 5], sizes = [16, 1], strides = [1, 1]} : vector<16x100xf32> to vector<16x1xf32>
    %cst_42 = arith.constant 0.000000e+00 : f32
    %166 = vector.shape_cast %165 : vector<16x1xf32> to vector<16x1xf32>
    %167 = vector.broadcast %166 : vector<16x1xf32> to vector<16x16xf32>
    %168 = vector.broadcast %cst_42 : f32 to vector<16x16xf32>
    %169 = arith.select %164, %167, %168 : vector<16x16xi1>, vector<16x16xf32>
    %170 = arith.addf %144, %169 : vector<16x16xf32>
    %171 = vector.extract_strided_slice %12 {offsets = [0, 30], sizes = [16, 1], strides = [1, 1]} : vector<16x100xf32> to vector<16x1xf32>
    %cst_43 = arith.constant 0.000000e+00 : f32
    %172 = vector.shape_cast %171 : vector<16x1xf32> to vector<16x1xf32>
    %173 = vector.broadcast %172 : vector<16x1xf32> to vector<16x16xf32>
    %174 = vector.broadcast %cst_43 : f32 to vector<16x16xf32>
    %175 = arith.select %164, %173, %174 : vector<16x16xi1>, vector<16x16xf32>
    %176 = arith.addf %150, %175 : vector<16x16xf32>
    %177 = vector.extract_strided_slice %12 {offsets = [0, 55], sizes = [16, 1], strides = [1, 1]} : vector<16x100xf32> to vector<16x1xf32>
    %cst_44 = arith.constant 0.000000e+00 : f32
    %178 = vector.shape_cast %177 : vector<16x1xf32> to vector<16x1xf32>
    %179 = vector.broadcast %178 : vector<16x1xf32> to vector<16x16xf32>
    %180 = vector.broadcast %cst_44 : f32 to vector<16x16xf32>
    %181 = arith.select %164, %179, %180 : vector<16x16xi1>, vector<16x16xf32>
    %182 = arith.addf %156, %181 : vector<16x16xf32>
    %183 = vector.extract_strided_slice %12 {offsets = [0, 80], sizes = [16, 1], strides = [1, 1]} : vector<16x100xf32> to vector<16x1xf32>
    %cst_45 = arith.constant 0.000000e+00 : f32
    %184 = vector.shape_cast %183 : vector<16x1xf32> to vector<16x1xf32>
    %185 = vector.broadcast %184 : vector<16x1xf32> to vector<16x16xf32>
    %186 = vector.broadcast %cst_45 : f32 to vector<16x16xf32>
    %187 = arith.select %164, %185, %186 : vector<16x16xi1>, vector<16x16xf32>
    %188 = arith.addf %162, %187 : vector<16x16xf32>
    %c6_i32 = arith.constant 6 : i32
    %189 = vector.broadcast %c6_i32 : i32 to vector<16x16xi32>
    %190 = arith.cmpi eq, %4, %189 : vector<16x16xi32>
    %191 = vector.extract_strided_slice %12 {offsets = [0, 6], sizes = [16, 1], strides = [1, 1]} : vector<16x100xf32> to vector<16x1xf32>
    %cst_46 = arith.constant 0.000000e+00 : f32
    %192 = vector.shape_cast %191 : vector<16x1xf32> to vector<16x1xf32>
    %193 = vector.broadcast %192 : vector<16x1xf32> to vector<16x16xf32>
    %194 = vector.broadcast %cst_46 : f32 to vector<16x16xf32>
    %195 = arith.select %190, %193, %194 : vector<16x16xi1>, vector<16x16xf32>
    %196 = arith.addf %170, %195 : vector<16x16xf32>
    %197 = vector.extract_strided_slice %12 {offsets = [0, 31], sizes = [16, 1], strides = [1, 1]} : vector<16x100xf32> to vector<16x1xf32>
    %cst_47 = arith.constant 0.000000e+00 : f32
    %198 = vector.shape_cast %197 : vector<16x1xf32> to vector<16x1xf32>
    %199 = vector.broadcast %198 : vector<16x1xf32> to vector<16x16xf32>
    %200 = vector.broadcast %cst_47 : f32 to vector<16x16xf32>
    %201 = arith.select %190, %199, %200 : vector<16x16xi1>, vector<16x16xf32>
    %202 = arith.addf %176, %201 : vector<16x16xf32>
    %203 = vector.extract_strided_slice %12 {offsets = [0, 56], sizes = [16, 1], strides = [1, 1]} : vector<16x100xf32> to vector<16x1xf32>
    %cst_48 = arith.constant 0.000000e+00 : f32
    %204 = vector.shape_cast %203 : vector<16x1xf32> to vector<16x1xf32>
    %205 = vector.broadcast %204 : vector<16x1xf32> to vector<16x16xf32>
    %206 = vector.broadcast %cst_48 : f32 to vector<16x16xf32>
    %207 = arith.select %190, %205, %206 : vector<16x16xi1>, vector<16x16xf32>
    %208 = arith.addf %182, %207 : vector<16x16xf32>
    %209 = vector.extract_strided_slice %12 {offsets = [0, 81], sizes = [16, 1], strides = [1, 1]} : vector<16x100xf32> to vector<16x1xf32>
    %cst_49 = arith.constant 0.000000e+00 : f32
    %210 = vector.shape_cast %209 : vector<16x1xf32> to vector<16x1xf32>
    %211 = vector.broadcast %210 : vector<16x1xf32> to vector<16x16xf32>
    %212 = vector.broadcast %cst_49 : f32 to vector<16x16xf32>
    %213 = arith.select %190, %211, %212 : vector<16x16xi1>, vector<16x16xf32>
    %214 = arith.addf %188, %213 : vector<16x16xf32>
    %c7_i32 = arith.constant 7 : i32
    %215 = vector.broadcast %c7_i32 : i32 to vector<16x16xi32>
    %216 = arith.cmpi eq, %4, %215 : vector<16x16xi32>
    %217 = vector.extract_strided_slice %12 {offsets = [0, 7], sizes = [16, 1], strides = [1, 1]} : vector<16x100xf32> to vector<16x1xf32>
    %cst_50 = arith.constant 0.000000e+00 : f32
    %218 = vector.shape_cast %217 : vector<16x1xf32> to vector<16x1xf32>
    %219 = vector.broadcast %218 : vector<16x1xf32> to vector<16x16xf32>
    %220 = vector.broadcast %cst_50 : f32 to vector<16x16xf32>
    %221 = arith.select %216, %219, %220 : vector<16x16xi1>, vector<16x16xf32>
    %222 = arith.addf %196, %221 : vector<16x16xf32>
    %223 = vector.extract_strided_slice %12 {offsets = [0, 32], sizes = [16, 1], strides = [1, 1]} : vector<16x100xf32> to vector<16x1xf32>
    %cst_51 = arith.constant 0.000000e+00 : f32
    %224 = vector.shape_cast %223 : vector<16x1xf32> to vector<16x1xf32>
    %225 = vector.broadcast %224 : vector<16x1xf32> to vector<16x16xf32>
    %226 = vector.broadcast %cst_51 : f32 to vector<16x16xf32>
    %227 = arith.select %216, %225, %226 : vector<16x16xi1>, vector<16x16xf32>
    %228 = arith.addf %202, %227 : vector<16x16xf32>
    %229 = vector.extract_strided_slice %12 {offsets = [0, 57], sizes = [16, 1], strides = [1, 1]} : vector<16x100xf32> to vector<16x1xf32>
    %cst_52 = arith.constant 0.000000e+00 : f32
    %230 = vector.shape_cast %229 : vector<16x1xf32> to vector<16x1xf32>
    %231 = vector.broadcast %230 : vector<16x1xf32> to vector<16x16xf32>
    %232 = vector.broadcast %cst_52 : f32 to vector<16x16xf32>
    %233 = arith.select %216, %231, %232 : vector<16x16xi1>, vector<16x16xf32>
    %234 = arith.addf %208, %233 : vector<16x16xf32>
    %235 = vector.extract_strided_slice %12 {offsets = [0, 82], sizes = [16, 1], strides = [1, 1]} : vector<16x100xf32> to vector<16x1xf32>
    %cst_53 = arith.constant 0.000000e+00 : f32
    %236 = vector.shape_cast %235 : vector<16x1xf32> to vector<16x1xf32>
    %237 = vector.broadcast %236 : vector<16x1xf32> to vector<16x16xf32>
    %238 = vector.broadcast %cst_53 : f32 to vector<16x16xf32>
    %239 = arith.select %216, %237, %238 : vector<16x16xi1>, vector<16x16xf32>
    %240 = arith.addf %214, %239 : vector<16x16xf32>
    %c8_i32 = arith.constant 8 : i32
    %241 = vector.broadcast %c8_i32 : i32 to vector<16x16xi32>
    %242 = arith.cmpi eq, %4, %241 : vector<16x16xi32>
    %243 = vector.extract_strided_slice %12 {offsets = [0, 8], sizes = [16, 1], strides = [1, 1]} : vector<16x100xf32> to vector<16x1xf32>
    %cst_54 = arith.constant 0.000000e+00 : f32
    %244 = vector.shape_cast %243 : vector<16x1xf32> to vector<16x1xf32>
    %245 = vector.broadcast %244 : vector<16x1xf32> to vector<16x16xf32>
    %246 = vector.broadcast %cst_54 : f32 to vector<16x16xf32>
    %247 = arith.select %242, %245, %246 : vector<16x16xi1>, vector<16x16xf32>
    %248 = arith.addf %222, %247 : vector<16x16xf32>
    %249 = vector.extract_strided_slice %12 {offsets = [0, 33], sizes = [16, 1], strides = [1, 1]} : vector<16x100xf32> to vector<16x1xf32>
    %cst_55 = arith.constant 0.000000e+00 : f32
    %250 = vector.shape_cast %249 : vector<16x1xf32> to vector<16x1xf32>
    %251 = vector.broadcast %250 : vector<16x1xf32> to vector<16x16xf32>
    %252 = vector.broadcast %cst_55 : f32 to vector<16x16xf32>
    %253 = arith.select %242, %251, %252 : vector<16x16xi1>, vector<16x16xf32>
    %254 = arith.addf %228, %253 : vector<16x16xf32>
    %255 = vector.extract_strided_slice %12 {offsets = [0, 58], sizes = [16, 1], strides = [1, 1]} : vector<16x100xf32> to vector<16x1xf32>
    %cst_56 = arith.constant 0.000000e+00 : f32
    %256 = vector.shape_cast %255 : vector<16x1xf32> to vector<16x1xf32>
    %257 = vector.broadcast %256 : vector<16x1xf32> to vector<16x16xf32>
    %258 = vector.broadcast %cst_56 : f32 to vector<16x16xf32>
    %259 = arith.select %242, %257, %258 : vector<16x16xi1>, vector<16x16xf32>
    %260 = arith.addf %234, %259 : vector<16x16xf32>
    %261 = vector.extract_strided_slice %12 {offsets = [0, 83], sizes = [16, 1], strides = [1, 1]} : vector<16x100xf32> to vector<16x1xf32>
    %cst_57 = arith.constant 0.000000e+00 : f32
    %262 = vector.shape_cast %261 : vector<16x1xf32> to vector<16x1xf32>
    %263 = vector.broadcast %262 : vector<16x1xf32> to vector<16x16xf32>
    %264 = vector.broadcast %cst_57 : f32 to vector<16x16xf32>
    %265 = arith.select %242, %263, %264 : vector<16x16xi1>, vector<16x16xf32>
    %266 = arith.addf %240, %265 : vector<16x16xf32>
    %c9_i32 = arith.constant 9 : i32
    %267 = vector.broadcast %c9_i32 : i32 to vector<16x16xi32>
    %268 = arith.cmpi eq, %4, %267 : vector<16x16xi32>
    %269 = vector.extract_strided_slice %12 {offsets = [0, 9], sizes = [16, 1], strides = [1, 1]} : vector<16x100xf32> to vector<16x1xf32>
    %cst_58 = arith.constant 0.000000e+00 : f32
    %270 = vector.shape_cast %269 : vector<16x1xf32> to vector<16x1xf32>
    %271 = vector.broadcast %270 : vector<16x1xf32> to vector<16x16xf32>
    %272 = vector.broadcast %cst_58 : f32 to vector<16x16xf32>
    %273 = arith.select %268, %271, %272 : vector<16x16xi1>, vector<16x16xf32>
    %274 = arith.addf %248, %273 : vector<16x16xf32>
    %275 = vector.extract_strided_slice %12 {offsets = [0, 34], sizes = [16, 1], strides = [1, 1]} : vector<16x100xf32> to vector<16x1xf32>
    %cst_59 = arith.constant 0.000000e+00 : f32
    %276 = vector.shape_cast %275 : vector<16x1xf32> to vector<16x1xf32>
    %277 = vector.broadcast %276 : vector<16x1xf32> to vector<16x16xf32>
    %278 = vector.broadcast %cst_59 : f32 to vector<16x16xf32>
    %279 = arith.select %268, %277, %278 : vector<16x16xi1>, vector<16x16xf32>
    %280 = arith.addf %254, %279 : vector<16x16xf32>
    %281 = vector.extract_strided_slice %12 {offsets = [0, 59], sizes = [16, 1], strides = [1, 1]} : vector<16x100xf32> to vector<16x1xf32>
    %cst_60 = arith.constant 0.000000e+00 : f32
    %282 = vector.shape_cast %281 : vector<16x1xf32> to vector<16x1xf32>
    %283 = vector.broadcast %282 : vector<16x1xf32> to vector<16x16xf32>
    %284 = vector.broadcast %cst_60 : f32 to vector<16x16xf32>
    %285 = arith.select %268, %283, %284 : vector<16x16xi1>, vector<16x16xf32>
    %286 = arith.addf %260, %285 : vector<16x16xf32>
    %287 = vector.extract_strided_slice %12 {offsets = [0, 84], sizes = [16, 1], strides = [1, 1]} : vector<16x100xf32> to vector<16x1xf32>
    %cst_61 = arith.constant 0.000000e+00 : f32
    %288 = vector.shape_cast %287 : vector<16x1xf32> to vector<16x1xf32>
    %289 = vector.broadcast %288 : vector<16x1xf32> to vector<16x16xf32>
    %290 = vector.broadcast %cst_61 : f32 to vector<16x16xf32>
    %291 = arith.select %268, %289, %290 : vector<16x16xi1>, vector<16x16xf32>
    %292 = arith.addf %266, %291 : vector<16x16xf32>
    %c10_i32 = arith.constant 10 : i32
    %293 = vector.broadcast %c10_i32 : i32 to vector<16x16xi32>
    %294 = arith.cmpi eq, %4, %293 : vector<16x16xi32>
    %295 = vector.extract_strided_slice %12 {offsets = [0, 10], sizes = [16, 1], strides = [1, 1]} : vector<16x100xf32> to vector<16x1xf32>
    %cst_62 = arith.constant 0.000000e+00 : f32
    %296 = vector.shape_cast %295 : vector<16x1xf32> to vector<16x1xf32>
    %297 = vector.broadcast %296 : vector<16x1xf32> to vector<16x16xf32>
    %298 = vector.broadcast %cst_62 : f32 to vector<16x16xf32>
    %299 = arith.select %294, %297, %298 : vector<16x16xi1>, vector<16x16xf32>
    %300 = arith.addf %274, %299 : vector<16x16xf32>
    %301 = vector.extract_strided_slice %12 {offsets = [0, 35], sizes = [16, 1], strides = [1, 1]} : vector<16x100xf32> to vector<16x1xf32>
    %cst_63 = arith.constant 0.000000e+00 : f32
    %302 = vector.shape_cast %301 : vector<16x1xf32> to vector<16x1xf32>
    %303 = vector.broadcast %302 : vector<16x1xf32> to vector<16x16xf32>
    %304 = vector.broadcast %cst_63 : f32 to vector<16x16xf32>
    %305 = arith.select %294, %303, %304 : vector<16x16xi1>, vector<16x16xf32>
    %306 = arith.addf %280, %305 : vector<16x16xf32>
    %307 = vector.extract_strided_slice %12 {offsets = [0, 60], sizes = [16, 1], strides = [1, 1]} : vector<16x100xf32> to vector<16x1xf32>
    %cst_64 = arith.constant 0.000000e+00 : f32
    %308 = vector.shape_cast %307 : vector<16x1xf32> to vector<16x1xf32>
    %309 = vector.broadcast %308 : vector<16x1xf32> to vector<16x16xf32>
    %310 = vector.broadcast %cst_64 : f32 to vector<16x16xf32>
    %311 = arith.select %294, %309, %310 : vector<16x16xi1>, vector<16x16xf32>
    %312 = arith.addf %286, %311 : vector<16x16xf32>
    %313 = vector.extract_strided_slice %12 {offsets = [0, 85], sizes = [16, 1], strides = [1, 1]} : vector<16x100xf32> to vector<16x1xf32>
    %cst_65 = arith.constant 0.000000e+00 : f32
    %314 = vector.shape_cast %313 : vector<16x1xf32> to vector<16x1xf32>
    %315 = vector.broadcast %314 : vector<16x1xf32> to vector<16x16xf32>
    %316 = vector.broadcast %cst_65 : f32 to vector<16x16xf32>
    %317 = arith.select %294, %315, %316 : vector<16x16xi1>, vector<16x16xf32>
    %318 = arith.addf %292, %317 : vector<16x16xf32>
    %c11_i32 = arith.constant 11 : i32
    %319 = vector.broadcast %c11_i32 : i32 to vector<16x16xi32>
    %320 = arith.cmpi eq, %4, %319 : vector<16x16xi32>
    %321 = vector.extract_strided_slice %12 {offsets = [0, 11], sizes = [16, 1], strides = [1, 1]} : vector<16x100xf32> to vector<16x1xf32>
    %cst_66 = arith.constant 0.000000e+00 : f32
    %322 = vector.shape_cast %321 : vector<16x1xf32> to vector<16x1xf32>
    %323 = vector.broadcast %322 : vector<16x1xf32> to vector<16x16xf32>
    %324 = vector.broadcast %cst_66 : f32 to vector<16x16xf32>
    %325 = arith.select %320, %323, %324 : vector<16x16xi1>, vector<16x16xf32>
    %326 = arith.addf %300, %325 : vector<16x16xf32>
    %327 = vector.extract_strided_slice %12 {offsets = [0, 36], sizes = [16, 1], strides = [1, 1]} : vector<16x100xf32> to vector<16x1xf32>
    %cst_67 = arith.constant 0.000000e+00 : f32
    %328 = vector.shape_cast %327 : vector<16x1xf32> to vector<16x1xf32>
    %329 = vector.broadcast %328 : vector<16x1xf32> to vector<16x16xf32>
    %330 = vector.broadcast %cst_67 : f32 to vector<16x16xf32>
    %331 = arith.select %320, %329, %330 : vector<16x16xi1>, vector<16x16xf32>
    %332 = arith.addf %306, %331 : vector<16x16xf32>
    %333 = vector.extract_strided_slice %12 {offsets = [0, 61], sizes = [16, 1], strides = [1, 1]} : vector<16x100xf32> to vector<16x1xf32>
    %cst_68 = arith.constant 0.000000e+00 : f32
    %334 = vector.shape_cast %333 : vector<16x1xf32> to vector<16x1xf32>
    %335 = vector.broadcast %334 : vector<16x1xf32> to vector<16x16xf32>
    %336 = vector.broadcast %cst_68 : f32 to vector<16x16xf32>
    %337 = arith.select %320, %335, %336 : vector<16x16xi1>, vector<16x16xf32>
    %338 = arith.addf %312, %337 : vector<16x16xf32>
    %339 = vector.extract_strided_slice %12 {offsets = [0, 86], sizes = [16, 1], strides = [1, 1]} : vector<16x100xf32> to vector<16x1xf32>
    %cst_69 = arith.constant 0.000000e+00 : f32
    %340 = vector.shape_cast %339 : vector<16x1xf32> to vector<16x1xf32>
    %341 = vector.broadcast %340 : vector<16x1xf32> to vector<16x16xf32>
    %342 = vector.broadcast %cst_69 : f32 to vector<16x16xf32>
    %343 = arith.select %320, %341, %342 : vector<16x16xi1>, vector<16x16xf32>
    %344 = arith.addf %318, %343 : vector<16x16xf32>
    %c12_i32 = arith.constant 12 : i32
    %345 = vector.broadcast %c12_i32 : i32 to vector<16x16xi32>
    %346 = arith.cmpi eq, %4, %345 : vector<16x16xi32>
    %347 = vector.extract_strided_slice %12 {offsets = [0, 12], sizes = [16, 1], strides = [1, 1]} : vector<16x100xf32> to vector<16x1xf32>
    %cst_70 = arith.constant 0.000000e+00 : f32
    %348 = vector.shape_cast %347 : vector<16x1xf32> to vector<16x1xf32>
    %349 = vector.broadcast %348 : vector<16x1xf32> to vector<16x16xf32>
    %350 = vector.broadcast %cst_70 : f32 to vector<16x16xf32>
    %351 = arith.select %346, %349, %350 : vector<16x16xi1>, vector<16x16xf32>
    %352 = arith.addf %326, %351 : vector<16x16xf32>
    %353 = vector.extract_strided_slice %12 {offsets = [0, 37], sizes = [16, 1], strides = [1, 1]} : vector<16x100xf32> to vector<16x1xf32>
    %cst_71 = arith.constant 0.000000e+00 : f32
    %354 = vector.shape_cast %353 : vector<16x1xf32> to vector<16x1xf32>
    %355 = vector.broadcast %354 : vector<16x1xf32> to vector<16x16xf32>
    %356 = vector.broadcast %cst_71 : f32 to vector<16x16xf32>
    %357 = arith.select %346, %355, %356 : vector<16x16xi1>, vector<16x16xf32>
    %358 = arith.addf %332, %357 : vector<16x16xf32>
    %359 = vector.extract_strided_slice %12 {offsets = [0, 62], sizes = [16, 1], strides = [1, 1]} : vector<16x100xf32> to vector<16x1xf32>
    %cst_72 = arith.constant 0.000000e+00 : f32
    %360 = vector.shape_cast %359 : vector<16x1xf32> to vector<16x1xf32>
    %361 = vector.broadcast %360 : vector<16x1xf32> to vector<16x16xf32>
    %362 = vector.broadcast %cst_72 : f32 to vector<16x16xf32>
    %363 = arith.select %346, %361, %362 : vector<16x16xi1>, vector<16x16xf32>
    %364 = arith.addf %338, %363 : vector<16x16xf32>
    %365 = vector.extract_strided_slice %12 {offsets = [0, 87], sizes = [16, 1], strides = [1, 1]} : vector<16x100xf32> to vector<16x1xf32>
    %cst_73 = arith.constant 0.000000e+00 : f32
    %366 = vector.shape_cast %365 : vector<16x1xf32> to vector<16x1xf32>
    %367 = vector.broadcast %366 : vector<16x1xf32> to vector<16x16xf32>
    %368 = vector.broadcast %cst_73 : f32 to vector<16x16xf32>
    %369 = arith.select %346, %367, %368 : vector<16x16xi1>, vector<16x16xf32>
    %370 = arith.addf %344, %369 : vector<16x16xf32>
    %c13_i32 = arith.constant 13 : i32
    %371 = vector.broadcast %c13_i32 : i32 to vector<16x16xi32>
    %372 = arith.cmpi eq, %4, %371 : vector<16x16xi32>
    %373 = vector.extract_strided_slice %12 {offsets = [0, 13], sizes = [16, 1], strides = [1, 1]} : vector<16x100xf32> to vector<16x1xf32>
    %cst_74 = arith.constant 0.000000e+00 : f32
    %374 = vector.shape_cast %373 : vector<16x1xf32> to vector<16x1xf32>
    %375 = vector.broadcast %374 : vector<16x1xf32> to vector<16x16xf32>
    %376 = vector.broadcast %cst_74 : f32 to vector<16x16xf32>
    %377 = arith.select %372, %375, %376 : vector<16x16xi1>, vector<16x16xf32>
    %378 = arith.addf %352, %377 : vector<16x16xf32>
    %379 = vector.extract_strided_slice %12 {offsets = [0, 38], sizes = [16, 1], strides = [1, 1]} : vector<16x100xf32> to vector<16x1xf32>
    %cst_75 = arith.constant 0.000000e+00 : f32
    %380 = vector.shape_cast %379 : vector<16x1xf32> to vector<16x1xf32>
    %381 = vector.broadcast %380 : vector<16x1xf32> to vector<16x16xf32>
    %382 = vector.broadcast %cst_75 : f32 to vector<16x16xf32>
    %383 = arith.select %372, %381, %382 : vector<16x16xi1>, vector<16x16xf32>
    %384 = arith.addf %358, %383 : vector<16x16xf32>
    %385 = vector.extract_strided_slice %12 {offsets = [0, 63], sizes = [16, 1], strides = [1, 1]} : vector<16x100xf32> to vector<16x1xf32>
    %cst_76 = arith.constant 0.000000e+00 : f32
    %386 = vector.shape_cast %385 : vector<16x1xf32> to vector<16x1xf32>
    %387 = vector.broadcast %386 : vector<16x1xf32> to vector<16x16xf32>
    %388 = vector.broadcast %cst_76 : f32 to vector<16x16xf32>
    %389 = arith.select %372, %387, %388 : vector<16x16xi1>, vector<16x16xf32>
    %390 = arith.addf %364, %389 : vector<16x16xf32>
    %391 = vector.extract_strided_slice %12 {offsets = [0, 88], sizes = [16, 1], strides = [1, 1]} : vector<16x100xf32> to vector<16x1xf32>
    %cst_77 = arith.constant 0.000000e+00 : f32
    %392 = vector.shape_cast %391 : vector<16x1xf32> to vector<16x1xf32>
    %393 = vector.broadcast %392 : vector<16x1xf32> to vector<16x16xf32>
    %394 = vector.broadcast %cst_77 : f32 to vector<16x16xf32>
    %395 = arith.select %372, %393, %394 : vector<16x16xi1>, vector<16x16xf32>
    %396 = arith.addf %370, %395 : vector<16x16xf32>
    %c14_i32 = arith.constant 14 : i32
    %397 = vector.broadcast %c14_i32 : i32 to vector<16x16xi32>
    %398 = arith.cmpi eq, %4, %397 : vector<16x16xi32>
    %399 = vector.extract_strided_slice %12 {offsets = [0, 14], sizes = [16, 1], strides = [1, 1]} : vector<16x100xf32> to vector<16x1xf32>
    %cst_78 = arith.constant 0.000000e+00 : f32
    %400 = vector.shape_cast %399 : vector<16x1xf32> to vector<16x1xf32>
    %401 = vector.broadcast %400 : vector<16x1xf32> to vector<16x16xf32>
    %402 = vector.broadcast %cst_78 : f32 to vector<16x16xf32>
    %403 = arith.select %398, %401, %402 : vector<16x16xi1>, vector<16x16xf32>
    %404 = arith.addf %378, %403 : vector<16x16xf32>
    %405 = vector.extract_strided_slice %12 {offsets = [0, 39], sizes = [16, 1], strides = [1, 1]} : vector<16x100xf32> to vector<16x1xf32>
    %cst_79 = arith.constant 0.000000e+00 : f32
    %406 = vector.shape_cast %405 : vector<16x1xf32> to vector<16x1xf32>
    %407 = vector.broadcast %406 : vector<16x1xf32> to vector<16x16xf32>
    %408 = vector.broadcast %cst_79 : f32 to vector<16x16xf32>
    %409 = arith.select %398, %407, %408 : vector<16x16xi1>, vector<16x16xf32>
    %410 = arith.addf %384, %409 : vector<16x16xf32>
    %411 = vector.extract_strided_slice %12 {offsets = [0, 64], sizes = [16, 1], strides = [1, 1]} : vector<16x100xf32> to vector<16x1xf32>
    %cst_80 = arith.constant 0.000000e+00 : f32
    %412 = vector.shape_cast %411 : vector<16x1xf32> to vector<16x1xf32>
    %413 = vector.broadcast %412 : vector<16x1xf32> to vector<16x16xf32>
    %414 = vector.broadcast %cst_80 : f32 to vector<16x16xf32>
    %415 = arith.select %398, %413, %414 : vector<16x16xi1>, vector<16x16xf32>
    %416 = arith.addf %390, %415 : vector<16x16xf32>
    %417 = vector.extract_strided_slice %12 {offsets = [0, 89], sizes = [16, 1], strides = [1, 1]} : vector<16x100xf32> to vector<16x1xf32>
    %cst_81 = arith.constant 0.000000e+00 : f32
    %418 = vector.shape_cast %417 : vector<16x1xf32> to vector<16x1xf32>
    %419 = vector.broadcast %418 : vector<16x1xf32> to vector<16x16xf32>
    %420 = vector.broadcast %cst_81 : f32 to vector<16x16xf32>
    %421 = arith.select %398, %419, %420 : vector<16x16xi1>, vector<16x16xf32>
    %422 = arith.addf %396, %421 : vector<16x16xf32>
    %c15_i32 = arith.constant 15 : i32
    %423 = vector.broadcast %c15_i32 : i32 to vector<16x16xi32>
    %424 = arith.cmpi eq, %4, %423 : vector<16x16xi32>
    %425 = vector.extract_strided_slice %12 {offsets = [0, 15], sizes = [16, 1], strides = [1, 1]} : vector<16x100xf32> to vector<16x1xf32>
    %cst_82 = arith.constant 0.000000e+00 : f32
    %426 = vector.shape_cast %425 : vector<16x1xf32> to vector<16x1xf32>
    %427 = vector.broadcast %426 : vector<16x1xf32> to vector<16x16xf32>
    %428 = vector.broadcast %cst_82 : f32 to vector<16x16xf32>
    %429 = arith.select %424, %427, %428 : vector<16x16xi1>, vector<16x16xf32>
    %430 = arith.addf %404, %429 : vector<16x16xf32>
    %431 = vector.extract_strided_slice %12 {offsets = [0, 40], sizes = [16, 1], strides = [1, 1]} : vector<16x100xf32> to vector<16x1xf32>
    %cst_83 = arith.constant 0.000000e+00 : f32
    %432 = vector.shape_cast %431 : vector<16x1xf32> to vector<16x1xf32>
    %433 = vector.broadcast %432 : vector<16x1xf32> to vector<16x16xf32>
    %434 = vector.broadcast %cst_83 : f32 to vector<16x16xf32>
    %435 = arith.select %424, %433, %434 : vector<16x16xi1>, vector<16x16xf32>
    %436 = arith.addf %410, %435 : vector<16x16xf32>
    %437 = vector.extract_strided_slice %12 {offsets = [0, 65], sizes = [16, 1], strides = [1, 1]} : vector<16x100xf32> to vector<16x1xf32>
    %cst_84 = arith.constant 0.000000e+00 : f32
    %438 = vector.shape_cast %437 : vector<16x1xf32> to vector<16x1xf32>
    %439 = vector.broadcast %438 : vector<16x1xf32> to vector<16x16xf32>
    %440 = vector.broadcast %cst_84 : f32 to vector<16x16xf32>
    %441 = arith.select %424, %439, %440 : vector<16x16xi1>, vector<16x16xf32>
    %442 = arith.addf %416, %441 : vector<16x16xf32>
    %443 = vector.extract_strided_slice %12 {offsets = [0, 90], sizes = [16, 1], strides = [1, 1]} : vector<16x100xf32> to vector<16x1xf32>
    %cst_85 = arith.constant 0.000000e+00 : f32
    %444 = vector.shape_cast %443 : vector<16x1xf32> to vector<16x1xf32>
    %445 = vector.broadcast %444 : vector<16x1xf32> to vector<16x16xf32>
    %446 = vector.broadcast %cst_85 : f32 to vector<16x16xf32>
    %447 = arith.select %424, %445, %446 : vector<16x16xi1>, vector<16x16xf32>
    %448 = arith.addf %422, %447 : vector<16x16xf32>
    %c16_i32 = arith.constant 16 : i32
    %449 = vector.broadcast %c16_i32 : i32 to vector<16x16xi32>
    %450 = arith.cmpi eq, %4, %449 : vector<16x16xi32>
    %451 = vector.extract_strided_slice %12 {offsets = [0, 16], sizes = [16, 1], strides = [1, 1]} : vector<16x100xf32> to vector<16x1xf32>
    %cst_86 = arith.constant 0.000000e+00 : f32
    %452 = vector.shape_cast %451 : vector<16x1xf32> to vector<16x1xf32>
    %453 = vector.broadcast %452 : vector<16x1xf32> to vector<16x16xf32>
    %454 = vector.broadcast %cst_86 : f32 to vector<16x16xf32>
    %455 = arith.select %450, %453, %454 : vector<16x16xi1>, vector<16x16xf32>
    %456 = arith.addf %430, %455 : vector<16x16xf32>
    %457 = vector.extract_strided_slice %12 {offsets = [0, 41], sizes = [16, 1], strides = [1, 1]} : vector<16x100xf32> to vector<16x1xf32>
    %cst_87 = arith.constant 0.000000e+00 : f32
    %458 = vector.shape_cast %457 : vector<16x1xf32> to vector<16x1xf32>
    %459 = vector.broadcast %458 : vector<16x1xf32> to vector<16x16xf32>
    %460 = vector.broadcast %cst_87 : f32 to vector<16x16xf32>
    %461 = arith.select %450, %459, %460 : vector<16x16xi1>, vector<16x16xf32>
    %462 = arith.addf %436, %461 : vector<16x16xf32>
    %463 = vector.extract_strided_slice %12 {offsets = [0, 66], sizes = [16, 1], strides = [1, 1]} : vector<16x100xf32> to vector<16x1xf32>
    %cst_88 = arith.constant 0.000000e+00 : f32
    %464 = vector.shape_cast %463 : vector<16x1xf32> to vector<16x1xf32>
    %465 = vector.broadcast %464 : vector<16x1xf32> to vector<16x16xf32>
    %466 = vector.broadcast %cst_88 : f32 to vector<16x16xf32>
    %467 = arith.select %450, %465, %466 : vector<16x16xi1>, vector<16x16xf32>
    %468 = arith.addf %442, %467 : vector<16x16xf32>
    %469 = vector.extract_strided_slice %12 {offsets = [0, 91], sizes = [16, 1], strides = [1, 1]} : vector<16x100xf32> to vector<16x1xf32>
    %cst_89 = arith.constant 0.000000e+00 : f32
    %470 = vector.shape_cast %469 : vector<16x1xf32> to vector<16x1xf32>
    %471 = vector.broadcast %470 : vector<16x1xf32> to vector<16x16xf32>
    %472 = vector.broadcast %cst_89 : f32 to vector<16x16xf32>
    %473 = arith.select %450, %471, %472 : vector<16x16xi1>, vector<16x16xf32>
    %474 = arith.addf %448, %473 : vector<16x16xf32>
    %c17_i32 = arith.constant 17 : i32
    %475 = vector.broadcast %c17_i32 : i32 to vector<16x16xi32>
    %476 = arith.cmpi eq, %4, %475 : vector<16x16xi32>
    %477 = vector.extract_strided_slice %12 {offsets = [0, 17], sizes = [16, 1], strides = [1, 1]} : vector<16x100xf32> to vector<16x1xf32>
    %cst_90 = arith.constant 0.000000e+00 : f32
    %478 = vector.shape_cast %477 : vector<16x1xf32> to vector<16x1xf32>
    %479 = vector.broadcast %478 : vector<16x1xf32> to vector<16x16xf32>
    %480 = vector.broadcast %cst_90 : f32 to vector<16x16xf32>
    %481 = arith.select %476, %479, %480 : vector<16x16xi1>, vector<16x16xf32>
    %482 = arith.addf %456, %481 : vector<16x16xf32>
    %483 = vector.extract_strided_slice %12 {offsets = [0, 42], sizes = [16, 1], strides = [1, 1]} : vector<16x100xf32> to vector<16x1xf32>
    %cst_91 = arith.constant 0.000000e+00 : f32
    %484 = vector.shape_cast %483 : vector<16x1xf32> to vector<16x1xf32>
    %485 = vector.broadcast %484 : vector<16x1xf32> to vector<16x16xf32>
    %486 = vector.broadcast %cst_91 : f32 to vector<16x16xf32>
    %487 = arith.select %476, %485, %486 : vector<16x16xi1>, vector<16x16xf32>
    %488 = arith.addf %462, %487 : vector<16x16xf32>
    %489 = vector.extract_strided_slice %12 {offsets = [0, 67], sizes = [16, 1], strides = [1, 1]} : vector<16x100xf32> to vector<16x1xf32>
    %cst_92 = arith.constant 0.000000e+00 : f32
    %490 = vector.shape_cast %489 : vector<16x1xf32> to vector<16x1xf32>
    %491 = vector.broadcast %490 : vector<16x1xf32> to vector<16x16xf32>
    %492 = vector.broadcast %cst_92 : f32 to vector<16x16xf32>
    %493 = arith.select %476, %491, %492 : vector<16x16xi1>, vector<16x16xf32>
    %494 = arith.addf %468, %493 : vector<16x16xf32>
    %495 = vector.extract_strided_slice %12 {offsets = [0, 92], sizes = [16, 1], strides = [1, 1]} : vector<16x100xf32> to vector<16x1xf32>
    %cst_93 = arith.constant 0.000000e+00 : f32
    %496 = vector.shape_cast %495 : vector<16x1xf32> to vector<16x1xf32>
    %497 = vector.broadcast %496 : vector<16x1xf32> to vector<16x16xf32>
    %498 = vector.broadcast %cst_93 : f32 to vector<16x16xf32>
    %499 = arith.select %476, %497, %498 : vector<16x16xi1>, vector<16x16xf32>
    %500 = arith.addf %474, %499 : vector<16x16xf32>
    %c18_i32 = arith.constant 18 : i32
    %501 = vector.broadcast %c18_i32 : i32 to vector<16x16xi32>
    %502 = arith.cmpi eq, %4, %501 : vector<16x16xi32>
    %503 = vector.extract_strided_slice %12 {offsets = [0, 18], sizes = [16, 1], strides = [1, 1]} : vector<16x100xf32> to vector<16x1xf32>
    %cst_94 = arith.constant 0.000000e+00 : f32
    %504 = vector.shape_cast %503 : vector<16x1xf32> to vector<16x1xf32>
    %505 = vector.broadcast %504 : vector<16x1xf32> to vector<16x16xf32>
    %506 = vector.broadcast %cst_94 : f32 to vector<16x16xf32>
    %507 = arith.select %502, %505, %506 : vector<16x16xi1>, vector<16x16xf32>
    %508 = arith.addf %482, %507 : vector<16x16xf32>
    %509 = vector.extract_strided_slice %12 {offsets = [0, 43], sizes = [16, 1], strides = [1, 1]} : vector<16x100xf32> to vector<16x1xf32>
    %cst_95 = arith.constant 0.000000e+00 : f32
    %510 = vector.shape_cast %509 : vector<16x1xf32> to vector<16x1xf32>
    %511 = vector.broadcast %510 : vector<16x1xf32> to vector<16x16xf32>
    %512 = vector.broadcast %cst_95 : f32 to vector<16x16xf32>
    %513 = arith.select %502, %511, %512 : vector<16x16xi1>, vector<16x16xf32>
    %514 = arith.addf %488, %513 : vector<16x16xf32>
    %515 = vector.extract_strided_slice %12 {offsets = [0, 68], sizes = [16, 1], strides = [1, 1]} : vector<16x100xf32> to vector<16x1xf32>
    %cst_96 = arith.constant 0.000000e+00 : f32
    %516 = vector.shape_cast %515 : vector<16x1xf32> to vector<16x1xf32>
    %517 = vector.broadcast %516 : vector<16x1xf32> to vector<16x16xf32>
    %518 = vector.broadcast %cst_96 : f32 to vector<16x16xf32>
    %519 = arith.select %502, %517, %518 : vector<16x16xi1>, vector<16x16xf32>
    %520 = arith.addf %494, %519 : vector<16x16xf32>
    %521 = vector.extract_strided_slice %12 {offsets = [0, 93], sizes = [16, 1], strides = [1, 1]} : vector<16x100xf32> to vector<16x1xf32>
    %cst_97 = arith.constant 0.000000e+00 : f32
    %522 = vector.shape_cast %521 : vector<16x1xf32> to vector<16x1xf32>
    %523 = vector.broadcast %522 : vector<16x1xf32> to vector<16x16xf32>
    %524 = vector.broadcast %cst_97 : f32 to vector<16x16xf32>
    %525 = arith.select %502, %523, %524 : vector<16x16xi1>, vector<16x16xf32>
    %526 = arith.addf %500, %525 : vector<16x16xf32>
    %c19_i32 = arith.constant 19 : i32
    %527 = vector.broadcast %c19_i32 : i32 to vector<16x16xi32>
    %528 = arith.cmpi eq, %4, %527 : vector<16x16xi32>
    %529 = vector.extract_strided_slice %12 {offsets = [0, 19], sizes = [16, 1], strides = [1, 1]} : vector<16x100xf32> to vector<16x1xf32>
    %cst_98 = arith.constant 0.000000e+00 : f32
    %530 = vector.shape_cast %529 : vector<16x1xf32> to vector<16x1xf32>
    %531 = vector.broadcast %530 : vector<16x1xf32> to vector<16x16xf32>
    %532 = vector.broadcast %cst_98 : f32 to vector<16x16xf32>
    %533 = arith.select %528, %531, %532 : vector<16x16xi1>, vector<16x16xf32>
    %534 = arith.addf %508, %533 : vector<16x16xf32>
    %535 = vector.extract_strided_slice %12 {offsets = [0, 44], sizes = [16, 1], strides = [1, 1]} : vector<16x100xf32> to vector<16x1xf32>
    %cst_99 = arith.constant 0.000000e+00 : f32
    %536 = vector.shape_cast %535 : vector<16x1xf32> to vector<16x1xf32>
    %537 = vector.broadcast %536 : vector<16x1xf32> to vector<16x16xf32>
    %538 = vector.broadcast %cst_99 : f32 to vector<16x16xf32>
    %539 = arith.select %528, %537, %538 : vector<16x16xi1>, vector<16x16xf32>
    %540 = arith.addf %514, %539 : vector<16x16xf32>
    %541 = vector.extract_strided_slice %12 {offsets = [0, 69], sizes = [16, 1], strides = [1, 1]} : vector<16x100xf32> to vector<16x1xf32>
    %cst_100 = arith.constant 0.000000e+00 : f32
    %542 = vector.shape_cast %541 : vector<16x1xf32> to vector<16x1xf32>
    %543 = vector.broadcast %542 : vector<16x1xf32> to vector<16x16xf32>
    %544 = vector.broadcast %cst_100 : f32 to vector<16x16xf32>
    %545 = arith.select %528, %543, %544 : vector<16x16xi1>, vector<16x16xf32>
    %546 = arith.addf %520, %545 : vector<16x16xf32>
    %547 = vector.extract_strided_slice %12 {offsets = [0, 94], sizes = [16, 1], strides = [1, 1]} : vector<16x100xf32> to vector<16x1xf32>
    %cst_101 = arith.constant 0.000000e+00 : f32
    %548 = vector.shape_cast %547 : vector<16x1xf32> to vector<16x1xf32>
    %549 = vector.broadcast %548 : vector<16x1xf32> to vector<16x16xf32>
    %550 = vector.broadcast %cst_101 : f32 to vector<16x16xf32>
    %551 = arith.select %528, %549, %550 : vector<16x16xi1>, vector<16x16xf32>
    %552 = arith.addf %526, %551 : vector<16x16xf32>
    %c20_i32 = arith.constant 20 : i32
    %553 = vector.broadcast %c20_i32 : i32 to vector<16x16xi32>
    %554 = arith.cmpi eq, %4, %553 : vector<16x16xi32>
    %555 = vector.extract_strided_slice %12 {offsets = [0, 20], sizes = [16, 1], strides = [1, 1]} : vector<16x100xf32> to vector<16x1xf32>
    %cst_102 = arith.constant 0.000000e+00 : f32
    %556 = vector.shape_cast %555 : vector<16x1xf32> to vector<16x1xf32>
    %557 = vector.broadcast %556 : vector<16x1xf32> to vector<16x16xf32>
    %558 = vector.broadcast %cst_102 : f32 to vector<16x16xf32>
    %559 = arith.select %554, %557, %558 : vector<16x16xi1>, vector<16x16xf32>
    %560 = arith.addf %534, %559 : vector<16x16xf32>
    %561 = vector.extract_strided_slice %12 {offsets = [0, 45], sizes = [16, 1], strides = [1, 1]} : vector<16x100xf32> to vector<16x1xf32>
    %cst_103 = arith.constant 0.000000e+00 : f32
    %562 = vector.shape_cast %561 : vector<16x1xf32> to vector<16x1xf32>
    %563 = vector.broadcast %562 : vector<16x1xf32> to vector<16x16xf32>
    %564 = vector.broadcast %cst_103 : f32 to vector<16x16xf32>
    %565 = arith.select %554, %563, %564 : vector<16x16xi1>, vector<16x16xf32>
    %566 = arith.addf %540, %565 : vector<16x16xf32>
    %567 = vector.extract_strided_slice %12 {offsets = [0, 70], sizes = [16, 1], strides = [1, 1]} : vector<16x100xf32> to vector<16x1xf32>
    %cst_104 = arith.constant 0.000000e+00 : f32
    %568 = vector.shape_cast %567 : vector<16x1xf32> to vector<16x1xf32>
    %569 = vector.broadcast %568 : vector<16x1xf32> to vector<16x16xf32>
    %570 = vector.broadcast %cst_104 : f32 to vector<16x16xf32>
    %571 = arith.select %554, %569, %570 : vector<16x16xi1>, vector<16x16xf32>
    %572 = arith.addf %546, %571 : vector<16x16xf32>
    %573 = vector.extract_strided_slice %12 {offsets = [0, 95], sizes = [16, 1], strides = [1, 1]} : vector<16x100xf32> to vector<16x1xf32>
    %cst_105 = arith.constant 0.000000e+00 : f32
    %574 = vector.shape_cast %573 : vector<16x1xf32> to vector<16x1xf32>
    %575 = vector.broadcast %574 : vector<16x1xf32> to vector<16x16xf32>
    %576 = vector.broadcast %cst_105 : f32 to vector<16x16xf32>
    %577 = arith.select %554, %575, %576 : vector<16x16xi1>, vector<16x16xf32>
    %578 = arith.addf %552, %577 : vector<16x16xf32>
    %c21_i32 = arith.constant 21 : i32
    %579 = vector.broadcast %c21_i32 : i32 to vector<16x16xi32>
    %580 = arith.cmpi eq, %4, %579 : vector<16x16xi32>
    %581 = vector.extract_strided_slice %12 {offsets = [0, 21], sizes = [16, 1], strides = [1, 1]} : vector<16x100xf32> to vector<16x1xf32>
    %cst_106 = arith.constant 0.000000e+00 : f32
    %582 = vector.shape_cast %581 : vector<16x1xf32> to vector<16x1xf32>
    %583 = vector.broadcast %582 : vector<16x1xf32> to vector<16x16xf32>
    %584 = vector.broadcast %cst_106 : f32 to vector<16x16xf32>
    %585 = arith.select %580, %583, %584 : vector<16x16xi1>, vector<16x16xf32>
    %586 = arith.addf %560, %585 : vector<16x16xf32>
    %587 = vector.extract_strided_slice %12 {offsets = [0, 46], sizes = [16, 1], strides = [1, 1]} : vector<16x100xf32> to vector<16x1xf32>
    %cst_107 = arith.constant 0.000000e+00 : f32
    %588 = vector.shape_cast %587 : vector<16x1xf32> to vector<16x1xf32>
    %589 = vector.broadcast %588 : vector<16x1xf32> to vector<16x16xf32>
    %590 = vector.broadcast %cst_107 : f32 to vector<16x16xf32>
    %591 = arith.select %580, %589, %590 : vector<16x16xi1>, vector<16x16xf32>
    %592 = arith.addf %566, %591 : vector<16x16xf32>
    %593 = vector.extract_strided_slice %12 {offsets = [0, 71], sizes = [16, 1], strides = [1, 1]} : vector<16x100xf32> to vector<16x1xf32>
    %cst_108 = arith.constant 0.000000e+00 : f32
    %594 = vector.shape_cast %593 : vector<16x1xf32> to vector<16x1xf32>
    %595 = vector.broadcast %594 : vector<16x1xf32> to vector<16x16xf32>
    %596 = vector.broadcast %cst_108 : f32 to vector<16x16xf32>
    %597 = arith.select %580, %595, %596 : vector<16x16xi1>, vector<16x16xf32>
    %598 = arith.addf %572, %597 : vector<16x16xf32>
    %599 = vector.extract_strided_slice %12 {offsets = [0, 96], sizes = [16, 1], strides = [1, 1]} : vector<16x100xf32> to vector<16x1xf32>
    %cst_109 = arith.constant 0.000000e+00 : f32
    %600 = vector.shape_cast %599 : vector<16x1xf32> to vector<16x1xf32>
    %601 = vector.broadcast %600 : vector<16x1xf32> to vector<16x16xf32>
    %602 = vector.broadcast %cst_109 : f32 to vector<16x16xf32>
    %603 = arith.select %580, %601, %602 : vector<16x16xi1>, vector<16x16xf32>
    %604 = arith.addf %578, %603 : vector<16x16xf32>
    %c22_i32 = arith.constant 22 : i32
    %605 = vector.broadcast %c22_i32 : i32 to vector<16x16xi32>
    %606 = arith.cmpi eq, %4, %605 : vector<16x16xi32>
    %607 = vector.extract_strided_slice %12 {offsets = [0, 22], sizes = [16, 1], strides = [1, 1]} : vector<16x100xf32> to vector<16x1xf32>
    %cst_110 = arith.constant 0.000000e+00 : f32
    %608 = vector.shape_cast %607 : vector<16x1xf32> to vector<16x1xf32>
    %609 = vector.broadcast %608 : vector<16x1xf32> to vector<16x16xf32>
    %610 = vector.broadcast %cst_110 : f32 to vector<16x16xf32>
    %611 = arith.select %606, %609, %610 : vector<16x16xi1>, vector<16x16xf32>
    %612 = arith.addf %586, %611 : vector<16x16xf32>
    %613 = vector.extract_strided_slice %12 {offsets = [0, 47], sizes = [16, 1], strides = [1, 1]} : vector<16x100xf32> to vector<16x1xf32>
    %cst_111 = arith.constant 0.000000e+00 : f32
    %614 = vector.shape_cast %613 : vector<16x1xf32> to vector<16x1xf32>
    %615 = vector.broadcast %614 : vector<16x1xf32> to vector<16x16xf32>
    %616 = vector.broadcast %cst_111 : f32 to vector<16x16xf32>
    %617 = arith.select %606, %615, %616 : vector<16x16xi1>, vector<16x16xf32>
    %618 = arith.addf %592, %617 : vector<16x16xf32>
    %619 = vector.extract_strided_slice %12 {offsets = [0, 72], sizes = [16, 1], strides = [1, 1]} : vector<16x100xf32> to vector<16x1xf32>
    %cst_112 = arith.constant 0.000000e+00 : f32
    %620 = vector.shape_cast %619 : vector<16x1xf32> to vector<16x1xf32>
    %621 = vector.broadcast %620 : vector<16x1xf32> to vector<16x16xf32>
    %622 = vector.broadcast %cst_112 : f32 to vector<16x16xf32>
    %623 = arith.select %606, %621, %622 : vector<16x16xi1>, vector<16x16xf32>
    %624 = arith.addf %598, %623 : vector<16x16xf32>
    %625 = vector.extract_strided_slice %12 {offsets = [0, 97], sizes = [16, 1], strides = [1, 1]} : vector<16x100xf32> to vector<16x1xf32>
    %cst_113 = arith.constant 0.000000e+00 : f32
    %626 = vector.shape_cast %625 : vector<16x1xf32> to vector<16x1xf32>
    %627 = vector.broadcast %626 : vector<16x1xf32> to vector<16x16xf32>
    %628 = vector.broadcast %cst_113 : f32 to vector<16x16xf32>
    %629 = arith.select %606, %627, %628 : vector<16x16xi1>, vector<16x16xf32>
    %630 = arith.addf %604, %629 : vector<16x16xf32>
    %c23_i32 = arith.constant 23 : i32
    %631 = vector.broadcast %c23_i32 : i32 to vector<16x16xi32>
    %632 = arith.cmpi eq, %4, %631 : vector<16x16xi32>
    %633 = vector.extract_strided_slice %12 {offsets = [0, 23], sizes = [16, 1], strides = [1, 1]} : vector<16x100xf32> to vector<16x1xf32>
    %cst_114 = arith.constant 0.000000e+00 : f32
    %634 = vector.shape_cast %633 : vector<16x1xf32> to vector<16x1xf32>
    %635 = vector.broadcast %634 : vector<16x1xf32> to vector<16x16xf32>
    %636 = vector.broadcast %cst_114 : f32 to vector<16x16xf32>
    %637 = arith.select %632, %635, %636 : vector<16x16xi1>, vector<16x16xf32>
    %638 = arith.addf %612, %637 : vector<16x16xf32>
    %639 = vector.extract_strided_slice %12 {offsets = [0, 48], sizes = [16, 1], strides = [1, 1]} : vector<16x100xf32> to vector<16x1xf32>
    %cst_115 = arith.constant 0.000000e+00 : f32
    %640 = vector.shape_cast %639 : vector<16x1xf32> to vector<16x1xf32>
    %641 = vector.broadcast %640 : vector<16x1xf32> to vector<16x16xf32>
    %642 = vector.broadcast %cst_115 : f32 to vector<16x16xf32>
    %643 = arith.select %632, %641, %642 : vector<16x16xi1>, vector<16x16xf32>
    %644 = arith.addf %618, %643 : vector<16x16xf32>
    %645 = vector.extract_strided_slice %12 {offsets = [0, 73], sizes = [16, 1], strides = [1, 1]} : vector<16x100xf32> to vector<16x1xf32>
    %cst_116 = arith.constant 0.000000e+00 : f32
    %646 = vector.shape_cast %645 : vector<16x1xf32> to vector<16x1xf32>
    %647 = vector.broadcast %646 : vector<16x1xf32> to vector<16x16xf32>
    %648 = vector.broadcast %cst_116 : f32 to vector<16x16xf32>
    %649 = arith.select %632, %647, %648 : vector<16x16xi1>, vector<16x16xf32>
    %650 = arith.addf %624, %649 : vector<16x16xf32>
    %651 = vector.extract_strided_slice %12 {offsets = [0, 98], sizes = [16, 1], strides = [1, 1]} : vector<16x100xf32> to vector<16x1xf32>
    %cst_117 = arith.constant 0.000000e+00 : f32
    %652 = vector.shape_cast %651 : vector<16x1xf32> to vector<16x1xf32>
    %653 = vector.broadcast %652 : vector<16x1xf32> to vector<16x16xf32>
    %654 = vector.broadcast %cst_117 : f32 to vector<16x16xf32>
    %655 = arith.select %632, %653, %654 : vector<16x16xi1>, vector<16x16xf32>
    %656 = arith.addf %630, %655 : vector<16x16xf32>
    %c24_i32 = arith.constant 24 : i32
    %657 = vector.broadcast %c24_i32 : i32 to vector<16x16xi32>
    %658 = arith.cmpi eq, %4, %657 : vector<16x16xi32>
    %659 = vector.extract_strided_slice %12 {offsets = [0, 24], sizes = [16, 1], strides = [1, 1]} : vector<16x100xf32> to vector<16x1xf32>
    %cst_118 = arith.constant 0.000000e+00 : f32
    %660 = vector.shape_cast %659 : vector<16x1xf32> to vector<16x1xf32>
    %661 = vector.broadcast %660 : vector<16x1xf32> to vector<16x16xf32>
    %662 = vector.broadcast %cst_118 : f32 to vector<16x16xf32>
    %663 = arith.select %658, %661, %662 : vector<16x16xi1>, vector<16x16xf32>
    %664 = arith.addf %638, %663 : vector<16x16xf32>
    %665 = vector.extract_strided_slice %12 {offsets = [0, 49], sizes = [16, 1], strides = [1, 1]} : vector<16x100xf32> to vector<16x1xf32>
    %cst_119 = arith.constant 0.000000e+00 : f32
    %666 = vector.shape_cast %665 : vector<16x1xf32> to vector<16x1xf32>
    %667 = vector.broadcast %666 : vector<16x1xf32> to vector<16x16xf32>
    %668 = vector.broadcast %cst_119 : f32 to vector<16x16xf32>
    %669 = arith.select %658, %667, %668 : vector<16x16xi1>, vector<16x16xf32>
    %670 = arith.addf %644, %669 : vector<16x16xf32>
    %671 = vector.extract_strided_slice %12 {offsets = [0, 74], sizes = [16, 1], strides = [1, 1]} : vector<16x100xf32> to vector<16x1xf32>
    %cst_120 = arith.constant 0.000000e+00 : f32
    %672 = vector.shape_cast %671 : vector<16x1xf32> to vector<16x1xf32>
    %673 = vector.broadcast %672 : vector<16x1xf32> to vector<16x16xf32>
    %674 = vector.broadcast %cst_120 : f32 to vector<16x16xf32>
    %675 = arith.select %658, %673, %674 : vector<16x16xi1>, vector<16x16xf32>
    %676 = arith.addf %650, %675 : vector<16x16xf32>
    %677 = vector.extract_strided_slice %12 {offsets = [0, 99], sizes = [16, 1], strides = [1, 1]} : vector<16x100xf32> to vector<16x1xf32>
    %cst_121 = arith.constant 0.000000e+00 : f32
    %678 = vector.shape_cast %677 : vector<16x1xf32> to vector<16x1xf32>
    %679 = vector.broadcast %678 : vector<16x1xf32> to vector<16x16xf32>
    %680 = vector.broadcast %cst_121 : f32 to vector<16x16xf32>
    %681 = arith.select %658, %679, %680 : vector<16x16xi1>, vector<16x16xf32>
    %682 = arith.addf %656, %681 : vector<16x16xf32>
    %cst_122 = arith.constant dense<0xFF800000> : vector<16xf32>
    %683 = vector.multi_reduction <maximumf>, %664, %cst_122 [1] : vector<16x16xf32> to vector<16xf32>
    %684 = vector.shape_cast %683 : vector<16xf32> to vector<16x1xf32>
    %685 = vector.broadcast %684 : vector<16x1xf32> to vector<16x16xf32>
    %686 = arith.subf %664, %685 : vector<16x16xf32>
    %687 = math.exp %686 : vector<16x16xf32>
    %cst_123 = arith.constant dense<0.000000e+00> : vector<16xf32>
    %688 = vector.multi_reduction <add>, %687, %cst_123 [1] : vector<16x16xf32> to vector<16xf32>
    %689 = vector.shape_cast %688 : vector<16xf32> to vector<16x1xf32>
    %690 = tpu.reciprocal %689 {approx = true} : vector<16x1xf32> -> vector<16x1xf32>
    %691 = vector.broadcast %690 : vector<16x1xf32> to vector<16x16xf32>
    %692 = arith.mulf %687, %691 : vector<16x16xf32>
    %693 = vector.extract_strided_slice %8 {offsets = [0, 0], sizes = [16, 8], strides = [1, 1]} : vector<16x32xf32> to vector<16x8xf32>
    %694 = arith.truncf %693 : vector<16x8xf32> to vector<16x8xbf16>
    %695 = arith.truncf %692 : vector<16x16xf32> to vector<16x16xbf16>
    %cst_124 = arith.constant dense<0.000000e+00> : vector<16x8xf32>
    %696 = tpu.matmul %695, %694, %cst_124 {dimension_numbers = #tpu.dot_dimension_numbers<[1], [0], [0], [1], [0, 0, 1, 1], [], []>} : vector<16x16xbf16>, vector<16x8xbf16>, vector<16x8xf32> -> vector<16x8xf32>
    %cst_125 = arith.constant dense<0xFF800000> : vector<16xf32>
    %697 = vector.multi_reduction <maximumf>, %670, %cst_125 [1] : vector<16x16xf32> to vector<16xf32>
    %698 = vector.shape_cast %697 : vector<16xf32> to vector<16x1xf32>
    %699 = vector.broadcast %698 : vector<16x1xf32> to vector<16x16xf32>
    %700 = arith.subf %670, %699 : vector<16x16xf32>
    %701 = math.exp %700 : vector<16x16xf32>
    %cst_126 = arith.constant dense<0.000000e+00> : vector<16xf32>
    %702 = vector.multi_reduction <add>, %701, %cst_126 [1] : vector<16x16xf32> to vector<16xf32>
    %703 = vector.shape_cast %702 : vector<16xf32> to vector<16x1xf32>
    %704 = tpu.reciprocal %703 {approx = true} : vector<16x1xf32> -> vector<16x1xf32>
    %705 = vector.broadcast %704 : vector<16x1xf32> to vector<16x16xf32>
    %706 = arith.mulf %701, %705 : vector<16x16xf32>
    %707 = vector.extract_strided_slice %8 {offsets = [0, 8], sizes = [16, 8], strides = [1, 1]} : vector<16x32xf32> to vector<16x8xf32>
    %708 = arith.truncf %707 : vector<16x8xf32> to vector<16x8xbf16>
    %709 = arith.truncf %706 : vector<16x16xf32> to vector<16x16xbf16>
    %cst_127 = arith.constant dense<0.000000e+00> : vector<16x8xf32>
    %710 = tpu.matmul %709, %708, %cst_127 {dimension_numbers = #tpu.dot_dimension_numbers<[1], [0], [0], [1], [0, 0, 1, 1], [], []>} : vector<16x16xbf16>, vector<16x8xbf16>, vector<16x8xf32> -> vector<16x8xf32>
    %cst_128 = arith.constant dense<0xFF800000> : vector<16xf32>
    %711 = vector.multi_reduction <maximumf>, %676, %cst_128 [1] : vector<16x16xf32> to vector<16xf32>
    %712 = vector.shape_cast %711 : vector<16xf32> to vector<16x1xf32>
    %713 = vector.broadcast %712 : vector<16x1xf32> to vector<16x16xf32>
    %714 = arith.subf %676, %713 : vector<16x16xf32>
    %715 = math.exp %714 : vector<16x16xf32>
    %cst_129 = arith.constant dense<0.000000e+00> : vector<16xf32>
    %716 = vector.multi_reduction <add>, %715, %cst_129 [1] : vector<16x16xf32> to vector<16xf32>
    %717 = vector.shape_cast %716 : vector<16xf32> to vector<16x1xf32>
    %718 = tpu.reciprocal %717 {approx = true} : vector<16x1xf32> -> vector<16x1xf32>
    %719 = vector.broadcast %718 : vector<16x1xf32> to vector<16x16xf32>
    %720 = arith.mulf %715, %719 : vector<16x16xf32>
    %721 = vector.extract_strided_slice %8 {offsets = [0, 16], sizes = [16, 8], strides = [1, 1]} : vector<16x32xf32> to vector<16x8xf32>
    %722 = arith.truncf %721 : vector<16x8xf32> to vector<16x8xbf16>
    %723 = arith.truncf %720 : vector<16x16xf32> to vector<16x16xbf16>
    %cst_130 = arith.constant dense<0.000000e+00> : vector<16x8xf32>
    %724 = tpu.matmul %723, %722, %cst_130 {dimension_numbers = #tpu.dot_dimension_numbers<[1], [0], [0], [1], [0, 0, 1, 1], [], []>} : vector<16x16xbf16>, vector<16x8xbf16>, vector<16x8xf32> -> vector<16x8xf32>
    %cst_131 = arith.constant dense<0xFF800000> : vector<16xf32>
    %725 = vector.multi_reduction <maximumf>, %682, %cst_131 [1] : vector<16x16xf32> to vector<16xf32>
    %726 = vector.shape_cast %725 : vector<16xf32> to vector<16x1xf32>
    %727 = vector.broadcast %726 : vector<16x1xf32> to vector<16x16xf32>
    %728 = arith.subf %682, %727 : vector<16x16xf32>
    %729 = math.exp %728 : vector<16x16xf32>
    %cst_132 = arith.constant dense<0.000000e+00> : vector<16xf32>
    %730 = vector.multi_reduction <add>, %729, %cst_132 [1] : vector<16x16xf32> to vector<16xf32>
    %731 = vector.shape_cast %730 : vector<16xf32> to vector<16x1xf32>
    %732 = tpu.reciprocal %731 {approx = true} : vector<16x1xf32> -> vector<16x1xf32>
    %733 = vector.broadcast %732 : vector<16x1xf32> to vector<16x16xf32>
    %734 = arith.mulf %729, %733 : vector<16x16xf32>
    %735 = vector.extract_strided_slice %8 {offsets = [0, 24], sizes = [16, 8], strides = [1, 1]} : vector<16x32xf32> to vector<16x8xf32>
    %736 = arith.truncf %735 : vector<16x8xf32> to vector<16x8xbf16>
    %737 = arith.truncf %734 : vector<16x16xf32> to vector<16x16xbf16>
    %cst_133 = arith.constant dense<0.000000e+00> : vector<16x8xf32>
    %738 = tpu.matmul %737, %736, %cst_133 {dimension_numbers = #tpu.dot_dimension_numbers<[1], [0], [0], [1], [0, 0, 1, 1], [], []>} : vector<16x16xbf16>, vector<16x8xbf16>, vector<16x8xf32> -> vector<16x8xf32>
    %739 = tpu.concatenate %696, %710, %724, %738 in 1 : vector<16x8xf32>, vector<16x8xf32>, vector<16x8xf32>, vector<16x8xf32> -> vector<16x32xf32>
    %740 = arith.truncf %739 : vector<16x32xf32> to vector<16x32xbf16>
    %c0_134 = arith.constant 0 : index
    %c0_135 = arith.constant 0 : index
    %741 = vector.load %arg8[%c0_134, %c0_135] : memref<32x128xbf16, #tpu.memory_space<vmem>>, vector<32x128xbf16>
    %cst_136 = arith.constant dense<0.000000e+00> : vector<16x128xf32>
    %742 = tpu.matmul %740, %741, %cst_136 {dimension_numbers = #tpu.dot_dimension_numbers<[1], [0], [0], [1], [0, 0, 1, 1], [], []>} : vector<16x32xbf16>, vector<32x128xbf16>, vector<16x128xf32> -> vector<16x128xf32>
    %743 = arith.truncf %742 : vector<16x128xf32> to vector<16x128xbf16>
    %c0_137 = arith.constant 0 : index
    %c0_138 = arith.constant 0 : index
    %c0_139 = arith.constant 0 : index
    %744 = vector.load %arg10[%c0_137, %c0_138, %c0_139] : memref<1x16x128xbf16, #tpu.memory_space<vmem>>, vector<1x16x128xbf16>
    %745 = vector.shape_cast %744 : vector<1x16x128xbf16> to vector<16x128xbf16>
    %746 = vector.shape_cast %743 : vector<16x128xbf16> to vector<1x16x128xbf16>
    tpu.vector_store %arg10[%c0_137, %c0_138, %c0_139], %746 {strides = array<i32>} : memref<1x16x128xbf16, #tpu.memory_space<vmem>>, vector<1x16x128xbf16>,
    return
  }
  func.func @transform_0(%arg0: i32, %arg1: i32) -> (i32, i32, i32) {
    %c0_i32 = arith.constant 0 : i32
    %c0_i32_0 = arith.constant 0 : i32
    %c0_i32_1 = arith.constant 0 : i32
    return %arg0, %c0_i32, %c0_i32_0 : i32, i32, i32
  }
  func.func @transform_1(%arg0: i32, %arg1: i32) -> (i32, i32, i32) {
    %c0_i32 = arith.constant 0 : i32
    %c0_i32_0 = arith.constant 0 : i32
    return %arg0, %arg1, %c0_i32 : i32, i32, i32
  }
  func.func @transform_2(%arg0: i32, %arg1: i32) -> (i32, i32) {
    %c0_i32 = arith.constant 0 : i32
    %c0_i32_0 = arith.constant 0 : i32
    %c0_i32_1 = arith.constant 0 : i32
    return %c0_i32, %c0_i32_0 : i32, i32
  }
  func.func @transform_3(%arg0: i32, %arg1: i32) -> (i32, i32) {
    %c0_i32 = arith.constant 0 : i32
    %c0_i32_0 = arith.constant 0 : i32
    %c0_i32_1 = arith.constant 0 : i32
    return %c0_i32, %c0_i32_0 : i32, i32
  }
  func.func @transform_4(%arg0: i32, %arg1: i32) -> (i32, i32) {
    %c0_i32 = arith.constant 0 : i32
    %c0_i32_0 = arith.constant 0 : i32
    %c0_i32_1 = arith.constant 0 : i32
    return %c0_i32, %c0_i32_0 : i32, i32
  }
  func.func @transform_5(%arg0: i32, %arg1: i32) -> (i32, i32) {
    %c0_i32 = arith.constant 0 : i32
    %c0_i32_0 = arith.constant 0 : i32
    %c0_i32_1 = arith.constant 0 : i32
    return %c0_i32, %c0_i32_0 : i32, i32
  }
  func.func @transform_6(%arg0: i32, %arg1: i32) -> (i32, i32) {
    %c0_i32 = arith.constant 0 : i32
    %c0_i32_0 = arith.constant 0 : i32
    %c0_i32_1 = arith.constant 0 : i32
    return %c0_i32, %c0_i32_0 : i32, i32
  }
  func.func @transform_7(%arg0: i32, %arg1: i32) -> (i32, i32) {
    %c0_i32 = arith.constant 0 : i32
    %c0_i32_0 = arith.constant 0 : i32
    return %arg1, %c0_i32 : i32, i32
  }
  func.func @transform_8(%arg0: i32, %arg1: i32) -> (i32, i32, i32) {
    %c0_i32 = arith.constant 0 : i32
    %c0_i32_0 = arith.constant 0 : i32
    return %arg0, %arg1, %c0_i32 : i32, i32, i32
  }
}

</mosaic_0001>

<llo_original>
// kernel: tpu_custom_call.1
$region0: #{tpu_custom_call.1}
  #allocation0 [shape = 'u32[]', space=smem, size = 0x4, offset = 0x4, fixed_abs, tag = 'smem constant byte address 0x4 - core index']
  #allocation1 [shape = 'u32[144,128]{1,0:T(1,128)}', space=vmem, size = 0x12000, scoped, tag = 'internal scratch']
  %s0 = inlined_call_operand.hbm [shape: bf16[2,16,32], index: 0, kind: input, shape index: {}]
  %s1 = inlined_call_operand.hbm [shape: bf16[2,16,32], index: 1, kind: input, shape index: {}]
  %s2 = inlined_call_operand.hbm [shape: bf16[32,32], index: 2, kind: input, shape index: {}]
  %s3 = inlined_call_operand.hbm [shape: bf16[32,32], index: 3, kind: input, shape index: {}]
  %s4 = inlined_call_operand.hbm [shape: bf16[32,32], index: 4, kind: input, shape index: {}]
  %s5 = inlined_call_operand.vmem [shape: bf16[32,100], index: 5, kind: input, shape index: {}]
  %s6 = inlined_call_operand.hbm [shape: bf16[32,128], index: 6, kind: input, shape index: {}]
  %s7 = inlined_call_operand.hbm [shape: s32[16,16], index: 7, kind: input, shape index: {}]
  %s8 = inlined_call_operand.hbm [shape: bf16[2,16,128], index: 8, kind: output, shape index: {}]
  %s9 = sld [smem:[#allocation0]]
  $region93: #{tpu_custom_call.1} parent=0
    _
  %s11 = ssub.s32 1, %s9
  %s12 = scalar_select 0, %s11, %s9
  $region1: #{tpu_custom_call.1} parent=0
    #allocation2 [shape = 'u8[8192]{0}', space=vmem, size = 0x2000, scoped, tag = 'input window, operand 0']
    #allocation3 [shape = 's32[2]{0}', space=sflag, size = 0x8, scoped, tag = 'scoped memory for tpu_custom_call.1']
    #allocation4 [shape = 's32[2]{0}', space=sflag, size = 0x8, scoped, tag = 'scoped memory for tpu_custom_call.1']
    #allocation5 [shape = 'u8[8192]{0}', space=vmem, size = 0x2000, scoped, tag = 'input window, operand 1']
    #allocation6 [shape = 's32[2]{0}', space=sflag, size = 0x8, scoped, tag = 'scoped memory for tpu_custom_call.1']
    #allocation7 [shape = 'u8[8192]{0}', space=vmem, size = 0x2000, scoped, tag = 'input window, operand 2, single buffered']
    #allocation8 [shape = 'u8[8192]{0}', space=vmem, size = 0x2000, scoped, tag = 'input window, operand 3, single buffered']
    #allocation9 [shape = 's32[1]{0}', space=sflag, size = 0x4, scoped, tag = 'scoped memory for tpu_custom_call.1']
    #allocation10 [shape = 'u8[8192]{0}', space=vmem, size = 0x2000, scoped, tag = 'input window, operand 4, single buffered']
    #allocation11 [shape = 'u8[8192]{0}', space=vmem, size = 0x2000, scoped, tag = 'input window, operand 6, single buffered']
    #allocation12 [shape = 's32[1]{0}', space=sflag, size = 0x4, scoped, tag = 'scoped memory for tpu_custom_call.1']
    #allocation13 [shape = 'u8[8192]{0}', space=vmem, size = 0x2000, scoped, tag = 'input window, operand 7, single buffered']
    #allocation14 [shape = 'u8[8192]{0}', space=vmem, size = 0x2000, scoped, tag = 'output window, operand 0']
    %13 = vsyncpa [#allocation3], 0
    %s14 = scalar_lea.sflag [#allocation3], 1
    %15 = vsyncpa %s14, 0
    %16 = vsyncpa [#allocation6], 0
    %s17 = scalar_lea.sflag [#allocation6], 1
    %18 = vsyncpa %s17, 0
    %19 = vsyncpa [#allocation9], 0
    %20 = vsyncpa [#allocation12], 0
    %21 = vsyncpa [#allocation4], 0
    %s22 = scalar_lea.sflag [#allocation4], 1
    %23 = vsyncpa %s22, 0
    loop: start=0, step=1, limit=4
    $region2: #{tpu_custom_call.1} parent=1 // loop_pre_header
      _
    $region3: #{tpu_custom_call.1} parent=1 // loop_header
      %s25 = sphi 0, %s29
      %p26 = scmp.ge.s32.totalorder %s25, 4
      %s32 = sphi 0, %s44
      %s33 = sphi 0, %s40
      %s34 = sphi 0, %s32
      %s35 = sphi 0, %s33
      %s36 = sphi 0, %s34
      %s37 = sphi 0, %s35
      %s47 = sphi 0, %s49
      %s50 = sphi 0, %s47
      %s51 = sphi 0, %s50
      %s67 = sphi 0, %s51
      %s75 = sphi 0, %s77
      %s78 = sphi 0, %s75
      %s79 = sphi 0, %s78
      %s95 = sphi 0, %s79
      %s99 = sphi 0, %s99
      %s101 = sphi 0, %s99
      %s102 = sphi 0, %s101
      %s116 = sphi 0, %s102
      %s120 = sphi 0, %s120
      %s122 = sphi 0, %s120
      %s123 = sphi 0, %s122
      %s137 = sphi 0, %s123
      %s141 = sphi 0, %s141
      %s143 = sphi 0, %s141
      %s144 = sphi 0, %s143
      %s158 = sphi 0, %s144
      %s162 = sphi 0, %s162
      %s164 = sphi 0, %s162
      %s165 = sphi 0, %s164
      %s179 = sphi 0, %s165
      %s183 = sphi 0, %s183
      %s185 = sphi 0, %s183
      %s186 = sphi 0, %s185
      %s200 = sphi 0, %s186
      %s206 = sphi 0, %s208
      %s209 = sphi 0, %s206
      %s210 = sphi 0, %s209
      %s226 = sphi 0, %s210
      %s234 = sphi 0, %s236
      %s237 = sphi 0, %s234
      %s238 = sphi 0, %s237
      %s254 = sphi 0, %s238
    $region4: #{tpu_custom_call.1} parent=1 // loop_header_branch
      %28 = sbr.rel (%p26) target = $region8
    $region5: #{tpu_custom_call.1} parent=1 // loop_body
      %s30 = ssub.s32 %s25, 1
      %s31 = ssub.s32 %s25, 2
      %s38 = sadd.s32 1, %s33
      %p39 = scmp.ge.s32.totalorder %s38, 1
      %s40 = scalar_select %p39, 0, %s38
      %s41 = sadd.s32 1, %s32
      %s42 = scalar_select %p39, %s41, %s32
      %p43 = scmp.ge.s32.totalorder %s42, 2
      %s44 = scalar_select %p43, 0, %s42
      %s45 = ssub.s32 %s32, %s44
      %p46 = scmp.eq.s32.totalorder %s45, 0
      %s48 = sadd.s32 %s47, 1
      %s49 = scalar_select %p46, %s47, %s48
      %p52 = pneg %p46
      %p53 = scmp.eq.s32.totalorder %s25, 1
      %p54 = por %p52, %p53
      %p55 = scmp.ne.s32.totalorder %s47, %s50
      %p56 = scmp.eq.s32.totalorder %s25, 0
      %p57 = por %p55, %p56
      %p58 = scmp.ne.s32.totalorder %s47, %s50
      %p59 = scmp.eq.s32.totalorder %s30, 1
      %p60 = por %p58, %p59
      %p61 = scmp.ne.s32.totalorder %s50, %s51
      %p62 = scmp.eq.s32.totalorder %s30, 0
      %p63 = por %p61, %p62
      %p64 = scmp.ne.s32.totalorder %s50, %s51
      %p65 = scmp.eq.s32.totalorder %s31, 1
      %p66 = por %p64, %p65
      %p68 = scmp.ne.s32.totalorder %s51, %s67
      %p69 = scmp.eq.s32.totalorder %s31, 0
      %p70 = por %p68, %p69
      %s71 = ssub.s32 %s32, %s44
      %s72 = ssub.s32 %s33, %s40
      %s73 = sor.u32 %s71, %s72
      %p74 = scmp.eq.s32.totalorder %s73, 0
      %s76 = sadd.s32 %s75, 1
      %s77 = scalar_select %p74, %s75, %s76
      %p80 = pneg %p74
      %p81 = scmp.eq.s32.totalorder %s25, 1
      %p82 = por %p80, %p81
      %p83 = scmp.ne.s32.totalorder %s75, %s78
      %p84 = scmp.eq.s32.totalorder %s25, 0
      %p85 = por %p83, %p84
      %p86 = scmp.ne.s32.totalorder %s75, %s78
      %p87 = scmp.eq.s32.totalorder %s30, 1
      %p88 = por %p86, %p87
      %p89 = scmp.ne.s32.totalorder %s78, %s79
      %p90 = scmp.eq.s32.totalorder %s30, 0
      %p91 = por %p89, %p90
      %p92 = scmp.ne.s32.totalorder %s78, %s79
      %p93 = scmp.eq.s32.totalorder %s31, 1
      %p94 = por %p92, %p93
      %p96 = scmp.ne.s32.totalorder %s79, %s95
      %p97 = scmp.eq.s32.totalorder %s31, 0
      %p98 = por %p96, %p97
      %s100 = sadd.s32 %s99, 1
      %p103 = scmp.eq.s32.totalorder %s25, 1
      %p104 = scmp.ne.s32.totalorder %s99, %s101
      %p105 = scmp.eq.s32.totalorder %s25, 0
      %p106 = por %p104, %p105
      %p107 = scmp.ne.s32.totalorder %s99, %s101
      %p108 = scmp.eq.s32.totalorder %s30, 1
      %p109 = por %p107, %p108
      %p110 = scmp.ne.s32.totalorder %s101, %s102
      %p111 = scmp.eq.s32.totalorder %s30, 0
      %p112 = por %p110, %p111
      %p113 = scmp.ne.s32.totalorder %s101, %s102
      %p114 = scmp.eq.s32.totalorder %s31, 1
      %p115 = por %p113, %p114
      %p117 = scmp.ne.s32.totalorder %s102, %s116
      %p118 = scmp.eq.s32.totalorder %s31, 0
      %p119 = por %p117, %p118
      %s121 = sadd.s32 %s120, 1
      %p124 = scmp.eq.s32.totalorder %s25, 1
      %p125 = scmp.ne.s32.totalorder %s120, %s122
      %p126 = scmp.eq.s32.totalorder %s25, 0
      %p127 = por %p125, %p126
      %p128 = scmp.ne.s32.totalorder %s120, %s122
      %p129 = scmp.eq.s32.totalorder %s30, 1
      %p130 = por %p128, %p129
      %p131 = scmp.ne.s32.totalorder %s122, %s123
      %p132 = scmp.eq.s32.totalorder %s30, 0
      %p133 = por %p131, %p132
      %p134 = scmp.ne.s32.totalorder %s122, %s123
      %p135 = scmp.eq.s32.totalorder %s31, 1
      %p136 = por %p134, %p135
      %p138 = scmp.ne.s32.totalorder %s123, %s137
      %p139 = scmp.eq.s32.totalorder %s31, 0
      %p140 = por %p138, %p139
      %s142 = sadd.s32 %s141, 1
      %p145 = scmp.eq.s32.totalorder %s25, 1
      %p146 = scmp.ne.s32.totalorder %s141, %s143
      %p147 = scmp.eq.s32.totalorder %s25, 0
      %p148 = por %p146, %p147
      %p149 = scmp.ne.s32.totalorder %s141, %s143
      %p150 = scmp.eq.s32.totalorder %s30, 1
      %p151 = por %p149, %p150
      %p152 = scmp.ne.s32.totalorder %s143, %s144
      %p153 = scmp.eq.s32.totalorder %s30, 0
      %p154 = por %p152, %p153
      %p155 = scmp.ne.s32.totalorder %s143, %s144
      %p156 = scmp.eq.s32.totalorder %s31, 1
      %p157 = por %p155, %p156
      %p159 = scmp.ne.s32.totalorder %s144, %s158
      %p160 = scmp.eq.s32.totalorder %s31, 0
      %p161 = por %p159, %p160
      %s163 = sadd.s32 %s162, 1
      %p166 = scmp.eq.s32.totalorder %s25, 1
      %p167 = scmp.ne.s32.totalorder %s162, %s164
      %p168 = scmp.eq.s32.totalorder %s25, 0
      %p169 = por %p167, %p168
      %p170 = scmp.ne.s32.totalorder %s162, %s164
      %p171 = scmp.eq.s32.totalorder %s30, 1
      %p172 = por %p170, %p171
      %p173 = scmp.ne.s32.totalorder %s164, %s165
      %p174 = scmp.eq.s32.totalorder %s30, 0
      %p175 = por %p173, %p174
      %p176 = scmp.ne.s32.totalorder %s164, %s165
      %p177 = scmp.eq.s32.totalorder %s31, 1
      %p178 = por %p176, %p177
      %p180 = scmp.ne.s32.totalorder %s165, %s179
      %p181 = scmp.eq.s32.totalorder %s31, 0
      %p182 = por %p180, %p181
      %s184 = sadd.s32 %s183, 1
      %p187 = scmp.eq.s32.totalorder %s25, 1
      %p188 = scmp.ne.s32.totalorder %s183, %s185
      %p189 = scmp.eq.s32.totalorder %s25, 0
      %p190 = por %p188, %p189
      %p191 = scmp.ne.s32.totalorder %s183, %s185
      %p192 = scmp.eq.s32.totalorder %s30, 1
      %p193 = por %p191, %p192
      %p194 = scmp.ne.s32.totalorder %s185, %s186
      %p195 = scmp.eq.s32.totalorder %s30, 0
      %p196 = por %p194, %p195
      %p197 = scmp.ne.s32.totalorder %s185, %s186
      %p198 = scmp.eq.s32.totalorder %s31, 1
      %p199 = por %p197, %p198
      %p201 = scmp.ne.s32.totalorder %s186, %s200
      %p202 = scmp.eq.s32.totalorder %s31, 0
      %p203 = por %p201, %p202
      %s204 = ssub.s32 %s33, %s40
      %p205 = scmp.eq.s32.totalorder %s204, 0
      %s207 = sadd.s32 %s206, 1
      %s208 = scalar_select %p205, %s206, %s207
      %p211 = pneg %p205
      %p212 = scmp.eq.s32.totalorder %s25, 1
      %p213 = por %p211, %p212
      %p214 = scmp.ne.s32.totalorder %s206, %s209
      %p215 = scmp.eq.s32.totalorder %s25, 0
      %p216 = por %p214, %p215
      %p217 = scmp.ne.s32.totalorder %s206, %s209
      %p218 = scmp.eq.s32.totalorder %s30, 1
      %p219 = por %p217, %p218
      %p220 = scmp.ne.s32.totalorder %s209, %s210
      %p221 = scmp.eq.s32.totalorder %s30, 0
      %p222 = por %p220, %p221
      %p223 = scmp.ne.s32.totalorder %s209, %s210
      %p224 = scmp.eq.s32.totalorder %s31, 1
      %p225 = por %p223, %p224
      %p227 = scmp.ne.s32.totalorder %s210, %s226
      %p228 = scmp.eq.s32.totalorder %s31, 0
      %p229 = por %p227, %p228
      %s230 = ssub.s32 %s32, %s44
      %s231 = ssub.s32 %s33, %s40
      %s232 = sor.u32 %s230, %s231
      %p233 = scmp.eq.s32.totalorder %s232, 0
      %s235 = sadd.s32 %s234, 1
      %s236 = scalar_select %p233, %s234, %s235
      %p239 = pneg %p233
      %p240 = scmp.eq.s32.totalorder %s25, 1
      %p241 = por %p239, %p240
      %p242 = scmp.ne.s32.totalorder %s234, %s237
      %p243 = scmp.eq.s32.totalorder %s25, 0
      %p244 = por %p242, %p243
      %p245 = scmp.ne.s32.totalorder %s234, %s237
      %p246 = scmp.eq.s32.totalorder %s30, 1
      %p247 = por %p245, %p246
      %p248 = scmp.ne.s32.totalorder %s237, %s238
      %p249 = scmp.eq.s32.totalorder %s30, 0
      %p250 = por %p248, %p249
      %p251 = scmp.ne.s32.totalorder %s237, %s238
      %p252 = scmp.eq.s32.totalorder %s31, 1
      %p253 = por %p251, %p252
      %p255 = scmp.ne.s32.totalorder %s238, %s254
      %p256 = scmp.eq.s32.totalorder %s31, 0
      %p257 = por %p255, %p256
      %p258 = scmp.le.s32.totalorder 1, %s25
      %p259 = scmp.lt.s32.totalorder %s25, 3
      %p260 = pnand %p258, %p259
      %p261 = pneg %p260
      // Predicated region
      $region9: #{tpu_custom_call.1} parent=5 // pred_check
        _
      $region10: #{tpu_custom_call.1} parent=5 // pred_check_branch
        %263 = sbr.rel (%p260) target = $region12
      $region11: #{tpu_custom_call.1} parent=5 // pred_region
        %s264 = ssub.s32 %s25, 1
        // Predicated region
        $region13: #{tpu_custom_call.1} parent=11 // pred_check
          %p265 = pneg %p112
        $region14: #{tpu_custom_call.1} parent=11 // pred_check_branch
          %267 = sbr.rel (%p265) target = $region16
        $region15: #{tpu_custom_call.1} parent=11 // pred_region
          %s269 = ssub.s32 256, 256
          %270 = vsyncadd [#allocation6], %s269
          %s271 = sshll.u32 [#allocation7], 4
          %s272 = int_to_ptr.vmem [resolvable:$true] %s271
          %277 = dma.hbm_to_vmem [thread:$0]  %s2, 256, %s272, [#allocation6], 64, 64, 4
        $region16: #{tpu_custom_call.1} parent=11 // pred_fallthru
          _
        // Predicated region
        $region17: #{tpu_custom_call.1} parent=11 // pred_check
          %p278 = pneg %p133
        $region18: #{tpu_custom_call.1} parent=11 // pred_check_branch
          %280 = sbr.rel (%p278) target = $region20
        $region19: #{tpu_custom_call.1} parent=11 // pred_region
          %s282 = ssub.s32 256, 256
          %283 = vsyncadd [#allocation9], %s282
          %s284 = sshll.u32 [#allocation8], 4
          %s285 = int_to_ptr.vmem [resolvable:$true] %s284
          %290 = dma.hbm_to_vmem [thread:$0]  %s3, 256, %s285, [#allocation9], 64, 64, 4
        $region20: #{tpu_custom_call.1} parent=11 // pred_fallthru
          _
        // Predicated region
        $region21: #{tpu_custom_call.1} parent=11 // pred_check
          %p291 = pneg %p154
        $region22: #{tpu_custom_call.1} parent=11 // pred_check_branch
          %293 = sbr.rel (%p291) target = $region24
        $region23: #{tpu_custom_call.1} parent=11 // pred_region
          %s295 = ssub.s32 256, 256
          %296 = vsyncadd [#allocation9], %s295
          %s297 = sshll.u32 [#allocation10], 4
          %s298 = int_to_ptr.vmem [resolvable:$true] %s297
          %303 = dma.hbm_to_vmem [thread:$0]  %s4, 256, %s298, [#allocation9], 64, 64, 4
        $region24: #{tpu_custom_call.1} parent=11 // pred_fallthru
          _
        // Predicated region
        $region25: #{tpu_custom_call.1} parent=11 // pred_check
          %p304 = pneg %p175
        $region26: #{tpu_custom_call.1} parent=11 // pred_check_branch
          %306 = sbr.rel (%p304) target = $region28
        $region27: #{tpu_custom_call.1} parent=11 // pred_region
          _
        $region28: #{tpu_custom_call.1} parent=11 // pred_fallthru
          _
        // Predicated region
        $region29: #{tpu_custom_call.1} parent=11 // pred_check
          %p307 = pneg %p196
        $region30: #{tpu_custom_call.1} parent=11 // pred_check_branch
          %309 = sbr.rel (%p307) target = $region32
        $region31: #{tpu_custom_call.1} parent=11 // pred_region
          %s311 = ssub.s32 256, 256
          %312 = vsyncadd [#allocation12], %s311
          %s313 = sshll.u32 [#allocation11], 4
          %s314 = int_to_ptr.vmem [resolvable:$true] %s313
          %319 = dma.hbm_to_vmem [thread:$0]  %s6, 256, %s314, [#allocation12], 64, 64, 4
        $region32: #{tpu_custom_call.1} parent=11 // pred_fallthru
          _
        // Predicated region
        $region33: #{tpu_custom_call.1} parent=11 // pred_check
          %p320 = pneg %p222
        $region34: #{tpu_custom_call.1} parent=11 // pred_check_branch
          %322 = sbr.rel (%p320) target = $region36
        $region35: #{tpu_custom_call.1} parent=11 // pred_region
          %s323 = smul.u32 2, %s35
          %s325 = ssub.s32 256, 256
          %326 = vsyncadd [#allocation12], %s325
          %s327 = smul.addr %s323, 128
          %s328 = scalar_lea.hbm %s7, %s327
          %s329 = sshll.u32 [#allocation13], 4
          %s330 = int_to_ptr.vmem [resolvable:$true] %s329
          %335 = dma.hbm_to_vmem [thread:$0]  %s328, 256, %s330, [#allocation12], 128, 128, 8
        $region36: #{tpu_custom_call.1} parent=11 // pred_fallthru
          _
      $region12: #{tpu_custom_call.1} parent=5 // pred_fallthru
        _
      %p336 = scmp.lt.s32.totalorder %s25, 2
      // Predicated region
      $region37: #{tpu_custom_call.1} parent=5 // pred_check
        %p337 = pneg %p336
      $region38: #{tpu_custom_call.1} parent=5 // pred_check_branch
        %339 = sbr.rel (%p337) target = $region40
      $region39: #{tpu_custom_call.1} parent=5 // pred_region
        // Predicated region
        $region41: #{tpu_custom_call.1} parent=39 // pred_check
          %p340 = pneg %p57
        $region42: #{tpu_custom_call.1} parent=39 // pred_check_branch
          %342 = sbr.rel (%p340) target = $region44
        $region43: #{tpu_custom_call.1} parent=39 // pred_region
          %s343 = sand.u32 %s47, 1
          %s344 = scalar_lea.sflag [#allocation3], %s343
          %s345 = sand.u32 %s47, 1
          %s346 = smul.addr %s345, 8
          %s347 = scalar_lea.vmem [#allocation2], %s346
          %s349 = ssub.s32 128, 128
          %350 = vsyncadd %s344, %s349
          %s351 = smul.addr %s32, 2
          %s352 = smul.addr %s351, 64
          %s353 = scalar_lea.hbm %s0, %s352
          %s354 = sshll.u32 %s347, 4
          %s355 = int_to_ptr.vmem [resolvable:$true] %s354
          %360 = dma.hbm_to_vmem [thread:$0]  %s353, 128, %s355, %s344, 64, 64, 4
        $region44: #{tpu_custom_call.1} parent=39 // pred_fallthru
          _
        // Predicated region
        $region45: #{tpu_custom_call.1} parent=39 // pred_check
          %p361 = pneg %p85
        $region46: #{tpu_custom_call.1} parent=39 // pred_check_branch
          %363 = sbr.rel (%p361) target = $region48
        $region47: #{tpu_custom_call.1} parent=39 // pred_region
          %s364 = sand.u32 %s25, 1
          %s365 = scalar_lea.sflag [#allocation6], %s364
          %s366 = sand.u32 %s75, 1
          %s367 = smul.addr %s366, 8
          %s368 = scalar_lea.vmem [#allocation5], %s367
          %s369 = smul.u32 2, %s33
          %s371 = ssub.s32 128, 128
          %372 = vsyncadd %s365, %s371
          %s373 = smul.addr %s32, 2
          %s374 = sadd.s32 %s369, %s373
          %s375 = smul.addr %s374, 64
          %s376 = scalar_lea.hbm %s1, %s375
          %s377 = sshll.u32 %s368, 4
          %s378 = int_to_ptr.vmem [resolvable:$true] %s377
          %383 = dma.hbm_to_vmem [thread:$0]  %s376, 128, %s378, %s365, 64, 64, 4
        $region48: #{tpu_custom_call.1} parent=39 // pred_fallthru
          _
      $region40: #{tpu_custom_call.1} parent=5 // pred_fallthru
        _
      %p384 = scmp.le.s32.totalorder 1, %s25
      %p385 = scmp.lt.s32.totalorder %s25, 3
      %p386 = pnand %p384, %p385
      %p387 = pneg %p386
      // Predicated region
      $region49: #{tpu_custom_call.1} parent=5 // pred_check
        _
      $region50: #{tpu_custom_call.1} parent=5 // pred_check_branch
        %389 = sbr.rel (%p386) target = $region52
      $region51: #{tpu_custom_call.1} parent=5 // pred_region
        %s390 = ssub.s32 %s25, 1
        %s391 = sand.u32 %s50, 1
        %s392 = scalar_lea.sflag [#allocation3], %s391
        %s393 = sand.u32 %s50, 1
        %s394 = smul.addr %s393, 8
        %s395 = scalar_lea.vmem [#allocation2], %s394
        // Predicated region
        $region53: #{tpu_custom_call.1} parent=51 // pred_check
          %p396 = pneg %p63
        $region54: #{tpu_custom_call.1} parent=51 // pred_check_branch
          %398 = sbr.rel (%p396) target = $region56
        $region55: #{tpu_custom_call.1} parent=51 // pred_region
          %399 = dma.done %s392, 128
        $region56: #{tpu_custom_call.1} parent=51 // pred_fallthru
          _
        %s400 = sand.u32 %s30, 1
        %s401 = scalar_lea.sflag [#allocation6], %s400
        %s402 = sand.u32 %s78, 1
        %s403 = smul.addr %s402, 8
        %s404 = scalar_lea.vmem [#allocation5], %s403
        // Predicated region
        $region57: #{tpu_custom_call.1} parent=51 // pred_check
          %p405 = pneg %p91
        $region58: #{tpu_custom_call.1} parent=51 // pred_check_branch
          %407 = sbr.rel (%p405) target = $region60
        $region59: #{tpu_custom_call.1} parent=51 // pred_region
          %408 = dma.done %s401, 128
        $region60: #{tpu_custom_call.1} parent=51 // pred_fallthru
          _
        // Predicated region
        $region61: #{tpu_custom_call.1} parent=51 // pred_check
          %p409 = pneg %p112
        $region62: #{tpu_custom_call.1} parent=51 // pred_check_branch
          %411 = sbr.rel (%p409) target = $region64
        $region63: #{tpu_custom_call.1} parent=51 // pred_region
          %412 = dma.done [#allocation6], 256
        $region64: #{tpu_custom_call.1} parent=51 // pred_fallthru
          _
        // Predicated region
        $region65: #{tpu_custom_call.1} parent=51 // pred_check
          %p413 = pneg %p133
        $region66: #{tpu_custom_call.1} parent=51 // pred_check_branch
          %415 = sbr.rel (%p413) target = $region68
        $region67: #{tpu_custom_call.1} parent=51 // pred_region
          %416 = dma.done [#allocation9], 256
        $region68: #{tpu_custom_call.1} parent=51 // pred_fallthru
          _
        // Predicated region
        $region69: #{tpu_custom_call.1} parent=51 // pred_check
          %p417 = pneg %p154
        $region70: #{tpu_custom_call.1} parent=51 // pred_check_branch
          %419 = sbr.rel (%p417) target = $region72
        $region71: #{tpu_custom_call.1} parent=51 // pred_region
          %420 = dma.done [#allocation9], 256
        $region72: #{tpu_custom_call.1} parent=51 // pred_fallthru
          _
        // Predicated region
        $region73: #{tpu_custom_call.1} parent=51 // pred_check
          %p421 = pneg %p196
        $region74: #{tpu_custom_call.1} parent=51 // pred_check_branch
          %423 = sbr.rel (%p421) target = $region76
        $region75: #{tpu_custom_call.1} parent=51 // pred_region
          %424 = dma.done [#allocation12], 256
        $region76: #{tpu_custom_call.1} parent=51 // pred_fallthru
          _
        // Predicated region
        $region77: #{tpu_custom_call.1} parent=51 // pred_check
          %p425 = pneg %p222
        $region78: #{tpu_custom_call.1} parent=51 // pred_check_branch
          %427 = sbr.rel (%p425) target = $region80
        $region79: #{tpu_custom_call.1} parent=51 // pred_region
          %428 = dma.done [#allocation12], 256
        $region80: #{tpu_custom_call.1} parent=51 // pred_fallthru
          _
        %s429 = sand.u32 %s50, 1
        %s430 = scalar_lea.sflag [#allocation3], %s429
        %s431 = sand.u32 %s50, 1
        %s432 = smul.addr %s431, 8
        %s433 = scalar_lea.vmem [#allocation2], %s432
        %p434 = pneg %p63
        %p435 = pneg %p60
        %s436 = sand.u32 %s30, 1
        %s437 = scalar_lea.sflag [#allocation6], %s436
        %s438 = sand.u32 %s78, 1
        %s439 = smul.addr %s438, 8
        %s440 = scalar_lea.vmem [#allocation5], %s439
        %p441 = pneg %p91
        %p442 = pneg %p88
        %p443 = pneg %p112
        %p444 = pneg %p109
        %p445 = pneg %p133
        %p446 = pneg %p130
        %p447 = pneg %p154
        %p448 = pneg %p151
        %p449 = pneg %p175
        %p450 = pneg %p172
        %p451 = pneg %p196
        %p452 = pneg %p193
        %p453 = pneg %p222
        %p454 = pneg %p219
        %p455 = pneg %p250
        %p456 = pneg %p247
        %s457 = sand.u32 %s237, 1
        %s458 = scalar_lea.sflag [#allocation4], %s457
        %s459 = sand.u32 %s237, 1
        %s460 = smul.addr %s459, 8
        %s461 = scalar_lea.vmem [#allocation14], %s460
        %s462 = smul.u32 2, %s35
        %s463 = smul.u32 2, %s35
        %s464 = smul.u32 2, %s35
        %v466 = vld [vmem:[%s395] sm:$0xf]
        %v467 = vld [vmem:[%s395 + $0x4] sm:$0xf]
        %v468 = vld [vmem:[%s404] sm:$0xf]
        %v469 = vld [vmem:[%s404 + $0x4] sm:$0xf]
        %v470 = vld [vmem:[#allocation13] sm:$0xff]
        %v471 = vld [vmem:[#allocation13 + $0x8] sm:$0xff]
        %v472 = vld [vmem:[#allocation8] sm:$0xf]
        %v473 = vld [vmem:[#allocation8 + $0x4] sm:$0xf]
        %v474 = vld [vmem:[#allocation8 + $0x8] sm:$0xf]
        %v475 = vld [vmem:[#allocation8 + $0xc] sm:$0xf]
        %v478 = vunpack.c.l.b16 %v466
        %v479 = vunpack.c.l.b16 %v467
        %v480 = vpack.c.b16 %v479, %v478
        %v485 = vunpack.c.l.b16 %v472
        %v486 = vunpack.c.l.b16 %v473
        %v487 = vunpack.c.l.b16 %v474
        %v488 = vunpack.c.l.b16 %v475
        %v489 = vpack.c.b16 %v486, %v485
        %v490 = vpack.c.b16 %v488, %v487
        %vm493 = vcmask 261120
        %v495 = vsel %vm493, %v480, 0
        %497 = vmatprep.subr.bf16.mxu0 0
        %498 = vmatpush1.bf16.msra.mxu0 %v489
        %499 = vmatprep.subr.bf16.mxu0 0
        %500 = vmatpush1.bf16.msra.mxu0 %v490
        %501 = vmatprep.subr.bf16.mxu0 0
        %502 = vmatpush1.bf16.msra.mxu0 0
        %503 = vmatprep.subr.bf16.mxu0 0
        %504 = vmatpush1.bf16.msra.mxu0 0
        %505 = vmatprep.subr.bf16.mxu0 0
        %506 = vmatpush1.bf16.msra.mxu0 0
        %507 = vmatprep.subr.bf16.mxu0 0
        %508 = vmatpush1.bf16.msra.mxu0 0
        %509 = vmatprep.subr.bf16.mxu0 0
        %510 = vmatpush1.bf16.msra.mxu0 0
        %511 = vmatprep.subr.bf16.mxu0 0
        %512 = vmatpush1.bf16.msra.mxu0 0
        %513 = vmatprep.subr.bf16.mxu0 0
        %514 = vmatpush1.bf16.msra.mxu0 0
        %515 = vmatprep.subr.bf16.mxu0 0
        %516 = vmatpush1.bf16.msra.mxu0 0
        %517 = vmatprep.subr.bf16.mxu0 0
        %518 = vmatpush1.bf16.msra.mxu0 0
        %519 = vmatprep.subr.bf16.mxu0 0
        %520 = vmatpush1.bf16.msra.mxu0 0
        %521 = vmatprep.subr.bf16.mxu0 0
        %522 = vmatpush1.bf16.msra.mxu0 0
        %523 = vmatprep.subr.bf16.mxu0 0
        %524 = vmatpush1.bf16.msra.mxu0 0
        %525 = vmatprep.subr.bf16.mxu0 0
        %526 = vmatpush1.bf16.msra.mxu0 0
        %527 = vmatprep.subr.bf16.mxu0 0
        %528 = vmatpush1.bf16.msra.mxu0 0
        %529 = vmatprep.mubr.bf16.mxu0 0
        %530 = vmatmul.mubr.bf16.gmra.mrb[0].mxu0 %v495
        %v531 = vpop.f32.mrb[0].mxu0
        %v532 = vadd.f32 0.0, %v531
        %v533 = vpop.f32.mrb[0].mxu0
        %v534 = vpop.f32.mrb[0].mxu0
        %v535 = vadd.f32 0.0, %v534
        %v536 = vpop.f32.mrb[0].mxu0
        %537 = vdwg.mxu0
        %v538 = vld [vmem:[#allocation10] sm:$0xf]
        %v539 = vld [vmem:[#allocation10 + $0x4] sm:$0xf]
        %v540 = vld [vmem:[#allocation10 + $0x8] sm:$0xf]
        %v541 = vld [vmem:[#allocation10 + $0xc] sm:$0xf]
        %v546 = vunpack.c.l.b16 %v538
        %v547 = vunpack.c.l.b16 %v539
        %v548 = vunpack.c.l.b16 %v540
        %v549 = vunpack.c.l.b16 %v541
        %v550 = vpack.c.b16 %v547, %v546
        %v551 = vpack.c.b16 %v549, %v548
        %554 = vmatprep.subr.bf16.mxu0 0
        %555 = vmatpush1.bf16.msra.mxu0 %v550
        %556 = vmatprep.subr.bf16.mxu0 0
        %557 = vmatpush1.bf16.msra.mxu0 %v551
        %558 = vmatprep.subr.bf16.mxu0 0
        %559 = vmatpush1.bf16.msra.mxu0 0
        %560 = vmatprep.subr.bf16.mxu0 0
        %561 = vmatpush1.bf16.msra.mxu0 0
        %562 = vmatprep.subr.bf16.mxu0 0
        %563 = vmatpush1.bf16.msra.mxu0 0
        %564 = vmatprep.subr.bf16.mxu0 0
        %565 = vmatpush1.bf16.msra.mxu0 0
        %566 = vmatprep.subr.bf16.mxu0 0
        %567 = vmatpush1.bf16.msra.mxu0 0
        %568 = vmatprep.subr.bf16.mxu0 0
        %569 = vmatpush1.bf16.msra.mxu0 0
        %570 = vmatprep.subr.bf16.mxu0 0
        %571 = vmatpush1.bf16.msra.mxu0 0
        %572 = vmatprep.subr.bf16.mxu0 0
        %573 = vmatpush1.bf16.msra.mxu0 0
        %574 = vmatprep.subr.bf16.mxu0 0
        %575 = vmatpush1.bf16.msra.mxu0 0
        %576 = vmatprep.subr.bf16.mxu0 0
        %577 = vmatpush1.bf16.msra.mxu0 0
        %578 = vmatprep.subr.bf16.mxu0 0
        %579 = vmatpush1.bf16.msra.mxu0 0
        %580 = vmatprep.subr.bf16.mxu0 0
        %581 = vmatpush1.bf16.msra.mxu0 0
        %582 = vmatprep.subr.bf16.mxu0 0
        %583 = vmatpush1.bf16.msra.mxu0 0
        %584 = vmatprep.subr.bf16.mxu0 0
        %585 = vmatpush1.bf16.msra.mxu0 0
        %586 = vmatprep.mubr.bf16.mxu0 0
        %587 = vmatmul.mubr.bf16.gmra.mrb[0].mxu0 %v495
        %v588 = vpop.f32.mrb[0].mxu0
        %v589 = vadd.f32 0.0, %v588
        %v590 = vpop.f32.mrb[0].mxu0
        %v591 = vpop.f32.mrb[0].mxu0
        %v592 = vadd.f32 0.0, %v591
        %v593 = vpop.f32.mrb[0].mxu0
        %594 = vdwg.mxu0
        %v595 = vld [vmem:[#allocation7] sm:$0xf]
        %v596 = vld [vmem:[#allocation7 + $0x4] sm:$0xf]
        %v597 = vld [vmem:[#allocation7 + $0x8] sm:$0xf]
        %v598 = vld [vmem:[#allocation7 + $0xc] sm:$0xf]
        %v601 = vunpack.c.l.b16 %v468
        %v602 = vunpack.c.l.b16 %v469
        %v603 = vpack.c.b16 %v602, %v601
        %v608 = vunpack.c.l.b16 %v595
        %v609 = vunpack.c.l.b16 %v596
        %v610 = vunpack.c.l.b16 %v597
        %v611 = vunpack.c.l.b16 %v598
        %v612 = vpack.c.b16 %v609, %v608
        %v613 = vpack.c.b16 %v611, %v610
        %v617 = vsel %vm493, %v603, 0
        %619 = vmatprep.subr.bf16.mxu0 0
        %620 = vmatpush1.bf16.msra.mxu0 %v612
        %621 = vmatprep.subr.bf16.mxu0 0
        %622 = vmatpush1.bf16.msra.mxu0 %v613
        %623 = vmatprep.subr.bf16.mxu0 0
        %624 = vmatpush1.bf16.msra.mxu0 0
        %625 = vmatprep.subr.bf16.mxu0 0
        %626 = vmatpush1.bf16.msra.mxu0 0
        %627 = vmatprep.subr.bf16.mxu0 0
        %628 = vmatpush1.bf16.msra.mxu0 0
        %629 = vmatprep.subr.bf16.mxu0 0
        %630 = vmatpush1.bf16.msra.mxu0 0
        %631 = vmatprep.subr.bf16.mxu0 0
        %632 = vmatpush1.bf16.msra.mxu0 0
        %633 = vmatprep.subr.bf16.mxu0 0
        %634 = vmatpush1.bf16.msra.mxu0 0
        %635 = vmatprep.subr.bf16.mxu0 0
        %636 = vmatpush1.bf16.msra.mxu0 0
        %637 = vmatprep.subr.bf16.mxu0 0
        %638 = vmatpush1.bf16.msra.mxu0 0
        %639 = vmatprep.subr.bf16.mxu0 0
        %640 = vmatpush1.bf16.msra.mxu0 0
        %641 = vmatprep.subr.bf16.mxu0 0
        %642 = vmatpush1.bf16.msra.mxu0 0
        %643 = vmatprep.subr.bf16.mxu0 0
        %644 = vmatpush1.bf16.msra.mxu0 0
        %645 = vmatprep.subr.bf16.mxu0 0
        %646 = vmatpush1.bf16.msra.mxu0 0
        %647 = vmatprep.subr.bf16.mxu0 0
        %648 = vmatpush1.bf16.msra.mxu0 0
        %649 = vmatprep.subr.bf16.mxu0 0
        %650 = vmatpush1.bf16.msra.mxu0 0
        %651 = vmatprep.mubr.bf16.mxu0 0
        %652 = vmatmul.mubr.bf16.gmra.mrb[0].mxu0 %v617
        %v653 = vpop.f32.mrb[0].mxu0
        %v654 = vadd.f32 0.0, %v653
        %v655 = vpop.f32.mrb[0].mxu0
        %v656 = vpop.f32.mrb[0].mxu0
        %v657 = vadd.f32 0.0, %v656
        %v658 = vpop.f32.mrb[0].mxu0
        %659 = vdwg.mxu0
        %v660 = vld [vmem:[%s5] sm:$0xf]
        %v661 = vld [vmem:[%s5 + $0x4] sm:$0xf]
        %v662 = vld [vmem:[%s5 + $0x8] sm:$0xf]
        %v663 = vld [vmem:[%s5 + $0xc] sm:$0xf]
        %v668 = vunpack.c.l.b16 %v660
        %v669 = vunpack.c.l.b16 %v661
        %v670 = vunpack.c.l.b16 %v662
        %v671 = vunpack.c.l.b16 %v663
        %v672 = vpack.c.b16 %v669, %v668
        %v673 = vpack.c.b16 %v671, %v670
        %676 = vmatprep.subr.bf16.mxu0 0
        %677 = vmatpush1.bf16.msra.mxu0 %v672
        %678 = vmatprep.subr.bf16.mxu0 0
        %679 = vmatpush1.bf16.msra.mxu0 %v673
        %680 = vmatprep.subr.bf16.mxu0 0
        %681 = vmatpush1.bf16.msra.mxu0 0
        %682 = vmatprep.subr.bf16.mxu0 0
        %683 = vmatpush1.bf16.msra.mxu0 0
        %684 = vmatprep.subr.bf16.mxu0 0
        %685 = vmatpush1.bf16.msra.mxu0 0
        %686 = vmatprep.subr.bf16.mxu0 0
        %687 = vmatpush1.bf16.msra.mxu0 0
        %688 = vmatprep.subr.bf16.mxu0 0
        %689 = vmatpush1.bf16.msra.mxu0 0
        %690 = vmatprep.subr.bf16.mxu0 0
        %691 = vmatpush1.bf16.msra.mxu0 0
        %692 = vmatprep.subr.bf16.mxu0 0
        %693 = vmatpush1.bf16.msra.mxu0 0
        %694 = vmatprep.subr.bf16.mxu0 0
        %695 = vmatpush1.bf16.msra.mxu0 0
        %696 = vmatprep.subr.bf16.mxu0 0
        %697 = vmatpush1.bf16.msra.mxu0 0
        %698 = vmatprep.subr.bf16.mxu0 0
        %699 = vmatpush1.bf16.msra.mxu0 0
        %700 = vmatprep.subr.bf16.mxu0 0
        %701 = vmatpush1.bf16.msra.mxu0 0
        %702 = vmatprep.subr.bf16.mxu0 0
        %703 = vmatpush1.bf16.msra.mxu0 0
        %704 = vmatprep.subr.bf16.mxu0 0
        %705 = vmatpush1.bf16.msra.mxu0 0
        %706 = vmatprep.subr.bf16.mxu0 0
        %707 = vmatpush1.bf16.msra.mxu0 0
        %708 = vmatprep.mubr.bf16.mxu0 0
        %709 = vmatmul.mubr.bf16.gmra.mrb[0].mxu0 %v617
        %v710 = vpop.f32.mrb[0].mxu0
        %v711 = vadd.f32 0.0, %v710
        %v712 = vpop.f32.mrb[0].mxu0
        %v713 = vpop.f32.mrb[0].mxu0
        %v714 = vadd.f32 0.0, %v713
        %v715 = vpop.f32.mrb[0].mxu0
        %716 = vdwg.mxu0
        %v717 = vpack.c.bf16 %v657, %v654
        %v718 = vpack.c.bf16 %v535, %v532
        %vm719 = vcmp.eq.s32.totalorder %v470, 0
        %vm720 = vcmp.eq.s32.totalorder %v471, 0
        %722 = vset.pattern.permute.xlu0 0
        %723 = vperm.xlu0 %722, %v711
        %v724 = vpop.permute.xlu0 %723
        %727 = vset.pattern.permute.xlu0 0
        %728 = vperm.xlu0 %727, %v714
        %v729 = vpop.permute.xlu0 %728
        %v731 = vsel %vm719, %v724, 0.0
        %v732 = vsel %vm720, %v729, 0.0
        %vm733 = vcmask 64512
        %v735 = vsel %vm733, %v717, 0
        %v738 = vsel %vm733, %v718, 0
        %740 = vmatprep.subr.bf16.mxu0 0
        %741 = vmatpush1.bf16.xpose.msra.mxu0 %v738
        %742 = vmatprep.subr.bf16.mxu0 0
        %743 = vmatpush1.bf16.xpose.msra.mxu0 0
        %744 = vmatprep.subr.bf16.mxu0 0
        %745 = vmatpush1.bf16.xpose.msra.mxu0 0
        %746 = vmatprep.subr.bf16.mxu0 0
        %747 = vmatpush1.bf16.xpose.msra.mxu0 0
        %748 = vmatprep.subr.bf16.mxu0 0
        %749 = vmatpush1.bf16.xpose.msra.mxu0 0
        %750 = vmatprep.subr.bf16.mxu0 0
        %751 = vmatpush1.bf16.xpose.msra.mxu0 0
        %752 = vmatprep.subr.bf16.mxu0 0
        %753 = vmatpush1.bf16.xpose.msra.mxu0 0
        %754 = vmatprep.subr.bf16.mxu0 0
        %755 = vmatpush1.bf16.xpose.msra.mxu0 0
        %756 = vmatprep.subr.bf16.mxu0 0
        %757 = vmatpush1.bf16.xpose.msra.mxu0 0
        %758 = vmatprep.subr.bf16.mxu0 0
        %759 = vmatpush1.bf16.xpose.msra.mxu0 0
        %760 = vmatprep.subr.bf16.mxu0 0
        %761 = vmatpush1.bf16.xpose.msra.mxu0 0
        %762 = vmatprep.subr.bf16.mxu0 0
        %763 = vmatpush1.bf16.xpose.msra.mxu0 0
        %764 = vmatprep.subr.bf16.mxu0 0
        %765 = vmatpush1.bf16.xpose.msra.mxu0 0
        %766 = vmatprep.subr.bf16.mxu0 0
        %767 = vmatpush1.bf16.xpose.msra.mxu0 0
        %768 = vmatprep.subr.bf16.mxu0 0
        %769 = vmatpush1.bf16.xpose.msra.mxu0 0
        %770 = vmatprep.subr.bf16.mxu0 0
        %771 = vmatpush1.bf16.xpose.msra.mxu0 0
        %772 = vmatprep.mubr.bf16.mxu0 0
        %773 = vmatmul.mubr.bf16.gmra.mrb[0].mxu0 %v735
        %v774 = vpop.f32.mrb[0].mxu0
        %v775 = vadd.f32 %v731, %v774
        %v776 = vpop.f32.mrb[0].mxu0
        %v777 = vpop.f32.mrb[0].mxu0
        %v778 = vadd.f32 %v732, %v777
        %v779 = vpop.f32.mrb[0].mxu0
        %780 = vdwg.mxu0
        %781 = vset.pattern.permute.xlu0 25
        %782 = vperm.xlu0 %781, %v711
        %v783 = vpop.permute.xlu0 %782
        %785 = vset.pattern.permute.xlu0 25
        %786 = vperm.xlu0 %785, %v714
        %v787 = vpop.permute.xlu0 %786
        %v789 = vsel %vm719, %v783, 0.0
        %v790 = vsel %vm720, %v787, 0.0
        %792 = vrot.lane.b32.xlu0 %v717, 120
        %v793 = vpop.permute.xlu0 %792
        %795 = vrot.lane.b32.xlu0 %v718, 120
        %v796 = vpop.permute.xlu0 %795
        %v798 = vsel %vm733, %v793, 0
        %v801 = vsel %vm733, %v796, 0
        %803 = vmatprep.subr.bf16.mxu0 0
        %804 = vmatpush1.bf16.xpose.msra.mxu0 %v801
        %805 = vmatprep.subr.bf16.mxu0 0
        %806 = vmatpush1.bf16.xpose.msra.mxu0 0
        %807 = vmatprep.subr.bf16.mxu0 0
        %808 = vmatpush1.bf16.xpose.msra.mxu0 0
        %809 = vmatprep.subr.bf16.mxu0 0
        %810 = vmatpush1.bf16.xpose.msra.mxu0 0
        %811 = vmatprep.subr.bf16.mxu0 0
        %812 = vmatpush1.bf16.xpose.msra.mxu0 0
        %813 = vmatprep.subr.bf16.mxu0 0
        %814 = vmatpush1.bf16.xpose.msra.mxu0 0
        %815 = vmatprep.subr.bf16.mxu0 0
        %816 = vmatpush1.bf16.xpose.msra.mxu0 0
        %817 = vmatprep.subr.bf16.mxu0 0
        %818 = vmatpush1.bf16.xpose.msra.mxu0 0
        %819 = vmatprep.subr.bf16.mxu0 0
        %820 = vmatpush1.bf16.xpose.msra.mxu0 0
        %821 = vmatprep.subr.bf16.mxu0 0
        %822 = vmatpush1.bf16.xpose.msra.mxu0 0
        %823 = vmatprep.subr.bf16.mxu0 0
        %824 = vmatpush1.bf16.xpose.msra.mxu0 0
        %825 = vmatprep.subr.bf16.mxu0 0
        %826 = vmatpush1.bf16.xpose.msra.mxu0 0
        %827 = vmatprep.subr.bf16.mxu0 0
        %828 = vmatpush1.bf16.xpose.msra.mxu0 0
        %829 = vmatprep.subr.bf16.mxu0 0
        %830 = vmatpush1.bf16.xpose.msra.mxu0 0
        %831 = vmatprep.subr.bf16.mxu0 0
        %832 = vmatpush1.bf16.xpose.msra.mxu0 0
        %833 = vmatprep.subr.bf16.mxu0 0
        %834 = vmatpush1.bf16.xpose.msra.mxu0 0
        %835 = vmatprep.mubr.bf16.mxu0 0
        %836 = vmatmul.mubr.bf16.gmra.mrb[0].mxu0 %v798
        %v837 = vpop.f32.mrb[0].mxu0
        %v838 = vadd.f32 %v789, %v837
        %v839 = vpop.f32.mrb[0].mxu0
        %v840 = vpop.f32.mrb[0].mxu0
        %v841 = vadd.f32 %v790, %v840
        %v842 = vpop.f32.mrb[0].mxu0
        %843 = vdwg.mxu0
        %844 = vset.pattern.permute.xlu0 50
        %845 = vperm.xlu0 %844, %v711
        %v846 = vpop.permute.xlu0 %845
        %848 = vset.pattern.permute.xlu0 50
        %849 = vperm.xlu0 %848, %v714
        %v850 = vpop.permute.xlu0 %849
        %v852 = vsel %vm719, %v846, 0.0
        %v853 = vsel %vm720, %v850, 0.0
        %854 = vrot.lane.b32.xlu0 %v717, 112
        %v855 = vpop.permute.xlu0 %854
        %856 = vrot.lane.b32.xlu0 %v718, 112
        %v857 = vpop.permute.xlu0 %856
        %v859 = vsel %vm733, %v855, 0
        %v862 = vsel %vm733, %v857, 0
        %864 = vmatprep.subr.bf16.mxu0 0
        %865 = vmatpush1.bf16.xpose.msra.mxu0 %v862
        %866 = vmatprep.subr.bf16.mxu0 0
        %867 = vmatpush1.bf16.xpose.msra.mxu0 0
        %868 = vmatprep.subr.bf16.mxu0 0
        %869 = vmatpush1.bf16.xpose.msra.mxu0 0
        %870 = vmatprep.subr.bf16.mxu0 0
        %871 = vmatpush1.bf16.xpose.msra.mxu0 0
        %872 = vmatprep.subr.bf16.mxu0 0
        %873 = vmatpush1.bf16.xpose.msra.mxu0 0
        %874 = vmatprep.subr.bf16.mxu0 0
        %875 = vmatpush1.bf16.xpose.msra.mxu0 0
        %876 = vmatprep.subr.bf16.mxu0 0
        %877 = vmatpush1.bf16.xpose.msra.mxu0 0
        %878 = vmatprep.subr.bf16.mxu0 0
        %879 = vmatpush1.bf16.xpose.msra.mxu0 0
        %880 = vmatprep.subr.bf16.mxu0 0
        %881 = vmatpush1.bf16.xpose.msra.mxu0 0
        %882 = vmatprep.subr.bf16.mxu0 0
        %883 = vmatpush1.bf16.xpose.msra.mxu0 0
        %884 = vmatprep.subr.bf16.mxu0 0
        %885 = vmatpush1.bf16.xpose.msra.mxu0 0
        %886 = vmatprep.subr.bf16.mxu0 0
        %887 = vmatpush1.bf16.xpose.msra.mxu0 0
        %888 = vmatprep.subr.bf16.mxu0 0
        %889 = vmatpush1.bf16.xpose.msra.mxu0 0
        %890 = vmatprep.subr.bf16.mxu0 0
        %891 = vmatpush1.bf16.xpose.msra.mxu0 0
        %892 = vmatprep.subr.bf16.mxu0 0
        %893 = vmatpush1.bf16.xpose.msra.mxu0 0
        %894 = vmatprep.subr.bf16.mxu0 0
        %895 = vmatpush1.bf16.xpose.msra.mxu0 0
        %896 = vmatprep.mubr.bf16.mxu0 0
        %897 = vmatmul.mubr.bf16.gmra.mrb[0].mxu0 %v859
        %v898 = vpop.f32.mrb[0].mxu0
        %v899 = vadd.f32 %v852, %v898
        %v900 = vpop.f32.mrb[0].mxu0
        %v901 = vpop.f32.mrb[0].mxu0
        %v902 = vadd.f32 %v853, %v901
        %v903 = vpop.f32.mrb[0].mxu0
        %904 = vdwg.mxu0
        %905 = vset.pattern.permute.xlu0 75
        %906 = vperm.xlu0 %905, %v711
        %v907 = vpop.permute.xlu0 %906
        %909 = vset.pattern.permute.xlu0 75
        %910 = vperm.xlu0 %909, %v714
        %v911 = vpop.permute.xlu0 %910
        %v913 = vsel %vm719, %v907, 0.0
        %v914 = vsel %vm720, %v911, 0.0
        %915 = vrot.lane.b32.xlu0 %v717, 104
        %v916 = vpop.permute.xlu0 %915
        %917 = vrot.lane.b32.xlu0 %v718, 104
        %v918 = vpop.permute.xlu0 %917
        %v920 = vsel %vm733, %v916, 0
        %v923 = vsel %vm733, %v918, 0
        %925 = vmatprep.subr.bf16.mxu0 0
        %926 = vmatpush1.bf16.xpose.msra.mxu0 %v923
        %927 = vmatprep.subr.bf16.mxu0 0
        %928 = vmatpush1.bf16.xpose.msra.mxu0 0
        %929 = vmatprep.subr.bf16.mxu0 0
        %930 = vmatpush1.bf16.xpose.msra.mxu0 0
        %931 = vmatprep.subr.bf16.mxu0 0
        %932 = vmatpush1.bf16.xpose.msra.mxu0 0
        %933 = vmatprep.subr.bf16.mxu0 0
        %934 = vmatpush1.bf16.xpose.msra.mxu0 0
        %935 = vmatprep.subr.bf16.mxu0 0
        %936 = vmatpush1.bf16.xpose.msra.mxu0 0
        %937 = vmatprep.subr.bf16.mxu0 0
        %938 = vmatpush1.bf16.xpose.msra.mxu0 0
        %939 = vmatprep.subr.bf16.mxu0 0
        %940 = vmatpush1.bf16.xpose.msra.mxu0 0
        %941 = vmatprep.subr.bf16.mxu0 0
        %942 = vmatpush1.bf16.xpose.msra.mxu0 0
        %943 = vmatprep.subr.bf16.mxu0 0
        %944 = vmatpush1.bf16.xpose.msra.mxu0 0
        %945 = vmatprep.subr.bf16.mxu0 0
        %946 = vmatpush1.bf16.xpose.msra.mxu0 0
        %947 = vmatprep.subr.bf16.mxu0 0
        %948 = vmatpush1.bf16.xpose.msra.mxu0 0
        %949 = vmatprep.subr.bf16.mxu0 0
        %950 = vmatpush1.bf16.xpose.msra.mxu0 0
        %951 = vmatprep.subr.bf16.mxu0 0
        %952 = vmatpush1.bf16.xpose.msra.mxu0 0
        %953 = vmatprep.subr.bf16.mxu0 0
        %954 = vmatpush1.bf16.xpose.msra.mxu0 0
        %955 = vmatprep.subr.bf16.mxu0 0
        %956 = vmatpush1.bf16.xpose.msra.mxu0 0
        %957 = vmatprep.mubr.bf16.mxu0 0
        %958 = vmatmul.mubr.bf16.gmra.mrb[0].mxu0 %v920
        %v959 = vpop.f32.mrb[0].mxu0
        %v960 = vadd.f32 %v913, %v959
        %v961 = vpop.f32.mrb[0].mxu0
        %v962 = vpop.f32.mrb[0].mxu0
        %v963 = vadd.f32 %v914, %v962
        %v964 = vpop.f32.mrb[0].mxu0
        %965 = vdwg.mxu0
        %vm966 = vcmp.eq.s32.totalorder %v470, 1
        %vm967 = vcmp.eq.s32.totalorder %v471, 1
        %968 = vset.pattern.permute.xlu0 1
        %969 = vperm.xlu0 %968, %v711
        %v970 = vpop.permute.xlu0 %969
        %972 = vset.pattern.permute.xlu0 1
        %973 = vperm.xlu0 %972, %v714
        %v974 = vpop.permute.xlu0 %973
        %v976 = vsel %vm966, %v970, 0.0
        %v977 = vsel %vm967, %v974, 0.0
        %v978 = vadd.f32 %v775, %v976
        %v979 = vadd.f32 %v778, %v977
        %980 = vset.pattern.permute.xlu0 26
        %981 = vperm.xlu0 %980, %v711
        %v982 = vpop.permute.xlu0 %981
        %984 = vset.pattern.permute.xlu0 26
        %985 = vperm.xlu0 %984, %v714
        %v986 = vpop.permute.xlu0 %985
        %v988 = vsel %vm966, %v982, 0.0
        %v989 = vsel %vm967, %v986, 0.0
        %v990 = vadd.f32 %v838, %v988
        %v991 = vadd.f32 %v841, %v989
        %992 = vset.pattern.permute.xlu0 51
        %993 = vperm.xlu0 %992, %v711
        %v994 = vpop.permute.xlu0 %993
        %996 = vset.pattern.permute.xlu0 51
        %997 = vperm.xlu0 %996, %v714
        %v998 = vpop.permute.xlu0 %997
        %v1000 = vsel %vm966, %v994, 0.0
        %v1001 = vsel %vm967, %v998, 0.0
        %v1002 = vadd.f32 %v899, %v1000
        %v1003 = vadd.f32 %v902, %v1001
        %1004 = vset.pattern.permute.xlu0 76
        %1005 = vperm.xlu0 %1004, %v711
        %v1006 = vpop.permute.xlu0 %1005
        %1008 = vset.pattern.permute.xlu0 76
        %1009 = vperm.xlu0 %1008, %v714
        %v1010 = vpop.permute.xlu0 %1009
        %v1012 = vsel %vm966, %v1006, 0.0
        %v1013 = vsel %vm967, %v1010, 0.0
        %v1014 = vadd.f32 %v960, %v1012
        %v1015 = vadd.f32 %v963, %v1013
        %vm1016 = vcmp.eq.s32.totalorder %v470, 2
        %vm1017 = vcmp.eq.s32.totalorder %v471, 2
        %1018 = vset.pattern.permute.xlu0 2
        %1019 = vperm.xlu0 %1018, %v711
        %v1020 = vpop.permute.xlu0 %1019
        %1022 = vset.pattern.permute.xlu0 2
        %1023 = vperm.xlu0 %1022, %v714
        %v1024 = vpop.permute.xlu0 %1023
        %v1026 = vsel %vm1016, %v1020, 0.0
        %v1027 = vsel %vm1017, %v1024, 0.0
        %v1028 = vadd.f32 %v978, %v1026
        %v1029 = vadd.f32 %v979, %v1027
        %1030 = vset.pattern.permute.xlu0 27
        %1031 = vperm.xlu0 %1030, %v711
        %v1032 = vpop.permute.xlu0 %1031
        %1034 = vset.pattern.permute.xlu0 27
        %1035 = vperm.xlu0 %1034, %v714
        %v1036 = vpop.permute.xlu0 %1035
        %v1038 = vsel %vm1016, %v1032, 0.0
        %v1039 = vsel %vm1017, %v1036, 0.0
        %v1040 = vadd.f32 %v990, %v1038
        %v1041 = vadd.f32 %v991, %v1039
        %1042 = vset.pattern.permute.xlu0 52
        %1043 = vperm.xlu0 %1042, %v711
        %v1044 = vpop.permute.xlu0 %1043
        %1046 = vset.pattern.permute.xlu0 52
        %1047 = vperm.xlu0 %1046, %v714
        %v1048 = vpop.permute.xlu0 %1047
        %v1050 = vsel %vm1016, %v1044, 0.0
        %v1051 = vsel %vm1017, %v1048, 0.0
        %v1052 = vadd.f32 %v1002, %v1050
        %v1053 = vadd.f32 %v1003, %v1051
        %1054 = vset.pattern.permute.xlu0 77
        %1055 = vperm.xlu0 %1054, %v711
        %v1056 = vpop.permute.xlu0 %1055
        %1058 = vset.pattern.permute.xlu0 77
        %1059 = vperm.xlu0 %1058, %v714
        %v1060 = vpop.permute.xlu0 %1059
        %v1062 = vsel %vm1016, %v1056, 0.0
        %v1063 = vsel %vm1017, %v1060, 0.0
        %v1064 = vadd.f32 %v1014, %v1062
        %v1065 = vadd.f32 %v1015, %v1063
        %vm1066 = vcmp.eq.s32.totalorder %v470, 3
        %vm1067 = vcmp.eq.s32.totalorder %v471, 3
        %1068 = vset.pattern.permute.xlu0 3
        %1069 = vperm.xlu0 %1068, %v711
        %v1070 = vpop.permute.xlu0 %1069
        %1072 = vset.pattern.permute.xlu0 3
        %1073 = vperm.xlu0 %1072, %v714
        %v1074 = vpop.permute.xlu0 %1073
        %v1076 = vsel %vm1066, %v1070, 0.0
        %v1077 = vsel %vm1067, %v1074, 0.0
        %v1078 = vadd.f32 %v1028, %v1076
        %v1079 = vadd.f32 %v1029, %v1077
        %1080 = vset.pattern.permute.xlu0 28
        %1081 = vperm.xlu0 %1080, %v711
        %v1082 = vpop.permute.xlu0 %1081
        %1084 = vset.pattern.permute.xlu0 28
        %1085 = vperm.xlu0 %1084, %v714
        %v1086 = vpop.permute.xlu0 %1085
        %v1088 = vsel %vm1066, %v1082, 0.0
        %v1089 = vsel %vm1067, %v1086, 0.0
        %v1090 = vadd.f32 %v1040, %v1088
        %v1091 = vadd.f32 %v1041, %v1089
        %1092 = vset.pattern.permute.xlu0 53
        %1093 = vperm.xlu0 %1092, %v711
        %v1094 = vpop.permute.xlu0 %1093
        %1096 = vset.pattern.permute.xlu0 53
        %1097 = vperm.xlu0 %1096, %v714
        %v1098 = vpop.permute.xlu0 %1097
        %v1100 = vsel %vm1066, %v1094, 0.0
        %v1101 = vsel %vm1067, %v1098, 0.0
        %v1102 = vadd.f32 %v1052, %v1100
        %v1103 = vadd.f32 %v1053, %v1101
        %1104 = vset.pattern.permute.xlu0 78
        %1105 = vperm.xlu0 %1104, %v711
        %v1106 = vpop.permute.xlu0 %1105
        %1108 = vset.pattern.permute.xlu0 78
        %1109 = vperm.xlu0 %1108, %v714
        %v1110 = vpop.permute.xlu0 %1109
        %v1112 = vsel %vm1066, %v1106, 0.0
        %v1113 = vsel %vm1067, %v1110, 0.0
        %v1114 = vadd.f32 %v1064, %v1112
        %v1115 = vadd.f32 %v1065, %v1113
        %vm1116 = vcmp.eq.s32.totalorder %v470, 4
        %vm1117 = vcmp.eq.s32.totalorder %v471, 4
        %1118 = vset.pattern.permute.xlu0 4
        %1119 = vperm.xlu0 %1118, %v711
        %v1120 = vpop.permute.xlu0 %1119
        %1122 = vset.pattern.permute.xlu0 4
        %1123 = vperm.xlu0 %1122, %v714
        %v1124 = vpop.permute.xlu0 %1123
        %v1126 = vsel %vm1116, %v1120, 0.0
        %v1127 = vsel %vm1117, %v1124, 0.0
        %v1128 = vadd.f32 %v1078, %v1126
        %v1129 = vadd.f32 %v1079, %v1127
        %1130 = vset.pattern.permute.xlu0 29
        %1131 = vperm.xlu0 %1130, %v711
        %v1132 = vpop.permute.xlu0 %1131
        %1134 = vset.pattern.permute.xlu0 29
        %1135 = vperm.xlu0 %1134, %v714
        %v1136 = vpop.permute.xlu0 %1135
        %v1138 = vsel %vm1116, %v1132, 0.0
        %v1139 = vsel %vm1117, %v1136, 0.0
        %v1140 = vadd.f32 %v1090, %v1138
        %v1141 = vadd.f32 %v1091, %v1139
        %1142 = vset.pattern.permute.xlu0 54
        %1143 = vperm.xlu0 %1142, %v711
        %v1144 = vpop.permute.xlu0 %1143
        %1146 = vset.pattern.permute.xlu0 54
        %1147 = vperm.xlu0 %1146, %v714
        %v1148 = vpop.permute.xlu0 %1147
        %v1150 = vsel %vm1116, %v1144, 0.0
        %v1151 = vsel %vm1117, %v1148, 0.0
        %v1152 = vadd.f32 %v1102, %v1150
        %v1153 = vadd.f32 %v1103, %v1151
        %1154 = vset.pattern.permute.xlu0 79
        %1155 = vperm.xlu0 %1154, %v711
        %v1156 = vpop.permute.xlu0 %1155
        %1158 = vset.pattern.permute.xlu0 79
        %1159 = vperm.xlu0 %1158, %v714
        %v1160 = vpop.permute.xlu0 %1159
        %v1162 = vsel %vm1116, %v1156, 0.0
        %v1163 = vsel %vm1117, %v1160, 0.0
        %v1164 = vadd.f32 %v1114, %v1162
        %v1165 = vadd.f32 %v1115, %v1163
        %vm1166 = vcmp.eq.s32.totalorder %v470, 5
        %vm1167 = vcmp.eq.s32.totalorder %v471, 5
        %1168 = vset.pattern.permute.xlu0 5
        %1169 = vperm.xlu0 %1168, %v711
        %v1170 = vpop.permute.xlu0 %1169
        %1172 = vset.pattern.permute.xlu0 5
        %1173 = vperm.xlu0 %1172, %v714
        %v1174 = vpop.permute.xlu0 %1173
        %v1176 = vsel %vm1166, %v1170, 0.0
        %v1177 = vsel %vm1167, %v1174, 0.0
        %v1178 = vadd.f32 %v1128, %v1176
        %v1179 = vadd.f32 %v1129, %v1177
        %1180 = vset.pattern.permute.xlu0 30
        %1181 = vperm.xlu0 %1180, %v711
        %v1182 = vpop.permute.xlu0 %1181
        %1184 = vset.pattern.permute.xlu0 30
        %1185 = vperm.xlu0 %1184, %v714
        %v1186 = vpop.permute.xlu0 %1185
        %v1188 = vsel %vm1166, %v1182, 0.0
        %v1189 = vsel %vm1167, %v1186, 0.0
        %v1190 = vadd.f32 %v1140, %v1188
        %v1191 = vadd.f32 %v1141, %v1189
        %1192 = vset.pattern.permute.xlu0 55
        %1193 = vperm.xlu0 %1192, %v711
        %v1194 = vpop.permute.xlu0 %1193
        %1196 = vset.pattern.permute.xlu0 55
        %1197 = vperm.xlu0 %1196, %v714
        %v1198 = vpop.permute.xlu0 %1197
        %v1200 = vsel %vm1166, %v1194, 0.0
        %v1201 = vsel %vm1167, %v1198, 0.0
        %v1202 = vadd.f32 %v1152, %v1200
        %v1203 = vadd.f32 %v1153, %v1201
        %1204 = vset.pattern.permute.xlu0 80
        %1205 = vperm.xlu0 %1204, %v711
        %v1206 = vpop.permute.xlu0 %1205
        %1208 = vset.pattern.permute.xlu0 80
        %1209 = vperm.xlu0 %1208, %v714
        %v1210 = vpop.permute.xlu0 %1209
        %v1212 = vsel %vm1166, %v1206, 0.0
        %v1213 = vsel %vm1167, %v1210, 0.0
        %v1214 = vadd.f32 %v1164, %v1212
        %v1215 = vadd.f32 %v1165, %v1213
        %vm1216 = vcmp.eq.s32.totalorder %v470, 6
        %vm1217 = vcmp.eq.s32.totalorder %v471, 6
        %1218 = vset.pattern.permute.xlu0 6
        %1219 = vperm.xlu0 %1218, %v711
        %v1220 = vpop.permute.xlu0 %1219
        %1222 = vset.pattern.permute.xlu0 6
        %1223 = vperm.xlu0 %1222, %v714
        %v1224 = vpop.permute.xlu0 %1223
        %v1226 = vsel %vm1216, %v1220, 0.0
        %v1227 = vsel %vm1217, %v1224, 0.0
        %v1228 = vadd.f32 %v1178, %v1226
        %v1229 = vadd.f32 %v1179, %v1227
        %1230 = vset.pattern.permute.xlu0 31
        %1231 = vperm.xlu0 %1230, %v711
        %v1232 = vpop.permute.xlu0 %1231
        %1234 = vset.pattern.permute.xlu0 31
        %1235 = vperm.xlu0 %1234, %v714
        %v1236 = vpop.permute.xlu0 %1235
        %v1238 = vsel %vm1216, %v1232, 0.0
        %v1239 = vsel %vm1217, %v1236, 0.0
        %v1240 = vadd.f32 %v1190, %v1238
        %v1241 = vadd.f32 %v1191, %v1239
        %1242 = vset.pattern.permute.xlu0 56
        %1243 = vperm.xlu0 %1242, %v711
        %v1244 = vpop.permute.xlu0 %1243
        %1246 = vset.pattern.permute.xlu0 56
        %1247 = vperm.xlu0 %1246, %v714
        %v1248 = vpop.permute.xlu0 %1247
        %v1250 = vsel %vm1216, %v1244, 0.0
        %v1251 = vsel %vm1217, %v1248, 0.0
        %v1252 = vadd.f32 %v1202, %v1250
        %v1253 = vadd.f32 %v1203, %v1251
        %1254 = vset.pattern.permute.xlu0 81
        %1255 = vperm.xlu0 %1254, %v711
        %v1256 = vpop.permute.xlu0 %1255
        %1258 = vset.pattern.permute.xlu0 81
        %1259 = vperm.xlu0 %1258, %v714
        %v1260 = vpop.permute.xlu0 %1259
        %v1262 = vsel %vm1216, %v1256, 0.0
        %v1263 = vsel %vm1217, %v1260, 0.0
        %v1264 = vadd.f32 %v1214, %v1262
        %v1265 = vadd.f32 %v1215, %v1263
        %vm1266 = vcmp.eq.s32.totalorder %v470, 7
        %vm1267 = vcmp.eq.s32.totalorder %v471, 7
        %1268 = vset.pattern.permute.xlu0 7
        %1269 = vperm.xlu0 %1268, %v711
        %v1270 = vpop.permute.xlu0 %1269
        %1272 = vset.pattern.permute.xlu0 7
        %1273 = vperm.xlu0 %1272, %v714
        %v1274 = vpop.permute.xlu0 %1273
        %v1276 = vsel %vm1266, %v1270, 0.0
        %v1277 = vsel %vm1267, %v1274, 0.0
        %v1278 = vadd.f32 %v1228, %v1276
        %v1279 = vadd.f32 %v1229, %v1277
        %1280 = vset.pattern.permute.xlu0 32
        %1281 = vperm.xlu0 %1280, %v711
        %v1282 = vpop.permute.xlu0 %1281
        %1284 = vset.pattern.permute.xlu0 32
        %1285 = vperm.xlu0 %1284, %v714
        %v1286 = vpop.permute.xlu0 %1285
        %v1288 = vsel %vm1266, %v1282, 0.0
        %v1289 = vsel %vm1267, %v1286, 0.0
        %v1290 = vadd.f32 %v1240, %v1288
        %v1291 = vadd.f32 %v1241, %v1289
        %1292 = vset.pattern.permute.xlu0 57
        %1293 = vperm.xlu0 %1292, %v711
        %v1294 = vpop.permute.xlu0 %1293
        %1296 = vset.pattern.permute.xlu0 57
        %1297 = vperm.xlu0 %1296, %v714
        %v1298 = vpop.permute.xlu0 %1297
        %v1300 = vsel %vm1266, %v1294, 0.0
        %v1301 = vsel %vm1267, %v1298, 0.0
        %v1302 = vadd.f32 %v1252, %v1300
        %v1303 = vadd.f32 %v1253, %v1301
        %1304 = vset.pattern.permute.xlu0 82
        %1305 = vperm.xlu0 %1304, %v711
        %v1306 = vpop.permute.xlu0 %1305
        %1308 = vset.pattern.permute.xlu0 82
        %1309 = vperm.xlu0 %1308, %v714
        %v1310 = vpop.permute.xlu0 %1309
        %v1312 = vsel %vm1266, %v1306, 0.0
        %v1313 = vsel %vm1267, %v1310, 0.0
        %v1314 = vadd.f32 %v1264, %v1312
        %v1315 = vadd.f32 %v1265, %v1313
        %vm1316 = vcmp.eq.s32.totalorder %v470, 8
        %vm1317 = vcmp.eq.s32.totalorder %v471, 8
        %1318 = vset.pattern.permute.xlu0 8
        %1319 = vperm.xlu0 %1318, %v711
        %v1320 = vpop.permute.xlu0 %1319
        %1322 = vset.pattern.permute.xlu0 8
        %1323 = vperm.xlu0 %1322, %v714
        %v1324 = vpop.permute.xlu0 %1323
        %v1326 = vsel %vm1316, %v1320, 0.0
        %v1327 = vsel %vm1317, %v1324, 0.0
        %v1328 = vadd.f32 %v1278, %v1326
        %v1329 = vadd.f32 %v1279, %v1327
        %1330 = vset.pattern.permute.xlu0 33
        %1331 = vperm.xlu0 %1330, %v711
        %v1332 = vpop.permute.xlu0 %1331
        %1334 = vset.pattern.permute.xlu0 33
        %1335 = vperm.xlu0 %1334, %v714
        %v1336 = vpop.permute.xlu0 %1335
        %v1338 = vsel %vm1316, %v1332, 0.0
        %v1339 = vsel %vm1317, %v1336, 0.0
        %v1340 = vadd.f32 %v1290, %v1338
        %v1341 = vadd.f32 %v1291, %v1339
        %1342 = vset.pattern.permute.xlu0 58
        %1343 = vperm.xlu0 %1342, %v711
        %v1344 = vpop.permute.xlu0 %1343
        %1346 = vset.pattern.permute.xlu0 58
        %1347 = vperm.xlu0 %1346, %v714
        %v1348 = vpop.permute.xlu0 %1347
        %v1350 = vsel %vm1316, %v1344, 0.0
        %v1351 = vsel %vm1317, %v1348, 0.0
        %v1352 = vadd.f32 %v1302, %v1350
        %v1353 = vadd.f32 %v1303, %v1351
        %1354 = vset.pattern.permute.xlu0 83
        %1355 = vperm.xlu0 %1354, %v711
        %v1356 = vpop.permute.xlu0 %1355
        %1358 = vset.pattern.permute.xlu0 83
        %1359 = vperm.xlu0 %1358, %v714
        %v1360 = vpop.permute.xlu0 %1359
        %v1362 = vsel %vm1316, %v1356, 0.0
        %v1363 = vsel %vm1317, %v1360, 0.0
        %v1364 = vadd.f32 %v1314, %v1362
        %v1365 = vadd.f32 %v1315, %v1363
        %vm1366 = vcmp.eq.s32.totalorder %v470, 9
        %vm1367 = vcmp.eq.s32.totalorder %v471, 9
        %1368 = vset.pattern.permute.xlu0 9
        %1369 = vperm.xlu0 %1368, %v711
        %v1370 = vpop.permute.xlu0 %1369
        %1372 = vset.pattern.permute.xlu0 9
        %1373 = vperm.xlu0 %1372, %v714
        %v1374 = vpop.permute.xlu0 %1373
        %v1376 = vsel %vm1366, %v1370, 0.0
        %v1377 = vsel %vm1367, %v1374, 0.0
        %v1378 = vadd.f32 %v1328, %v1376
        %v1379 = vadd.f32 %v1329, %v1377
        %1380 = vset.pattern.permute.xlu0 34
        %1381 = vperm.xlu0 %1380, %v711
        %v1382 = vpop.permute.xlu0 %1381
        %1384 = vset.pattern.permute.xlu0 34
        %1385 = vperm.xlu0 %1384, %v714
        %v1386 = vpop.permute.xlu0 %1385
        %v1388 = vsel %vm1366, %v1382, 0.0
        %v1389 = vsel %vm1367, %v1386, 0.0
        %v1390 = vadd.f32 %v1340, %v1388
        %v1391 = vadd.f32 %v1341, %v1389
        %1392 = vset.pattern.permute.xlu0 59
        %1393 = vperm.xlu0 %1392, %v711
        %v1394 = vpop.permute.xlu0 %1393
        %1396 = vset.pattern.permute.xlu0 59
        %1397 = vperm.xlu0 %1396, %v714
        %v1398 = vpop.permute.xlu0 %1397
        %v1400 = vsel %vm1366, %v1394, 0.0
        %v1401 = vsel %vm1367, %v1398, 0.0
        %v1402 = vadd.f32 %v1352, %v1400
        %v1403 = vadd.f32 %v1353, %v1401
        %1404 = vset.pattern.permute.xlu0 84
        %1405 = vperm.xlu0 %1404, %v711
        %v1406 = vpop.permute.xlu0 %1405
        %1408 = vset.pattern.permute.xlu0 84
        %1409 = vperm.xlu0 %1408, %v714
        %v1410 = vpop.permute.xlu0 %1409
        %v1412 = vsel %vm1366, %v1406, 0.0
        %v1413 = vsel %vm1367, %v1410, 0.0
        %v1414 = vadd.f32 %v1364, %v1412
        %v1415 = vadd.f32 %v1365, %v1413
        %vm1416 = vcmp.eq.s32.totalorder %v470, 10
        %vm1417 = vcmp.eq.s32.totalorder %v471, 10
        %1418 = vset.pattern.permute.xlu0 10
        %1419 = vperm.xlu0 %1418, %v711
        %v1420 = vpop.permute.xlu0 %1419
        %1422 = vset.pattern.permute.xlu0 10
        %1423 = vperm.xlu0 %1422, %v714
        %v1424 = vpop.permute.xlu0 %1423
        %v1426 = vsel %vm1416, %v1420, 0.0
        %v1427 = vsel %vm1417, %v1424, 0.0
        %v1428 = vadd.f32 %v1378, %v1426
        %v1429 = vadd.f32 %v1379, %v1427
        %1430 = vset.pattern.permute.xlu0 35
        %1431 = vperm.xlu0 %1430, %v711
        %v1432 = vpop.permute.xlu0 %1431
        %1434 = vset.pattern.permute.xlu0 35
        %1435 = vperm.xlu0 %1434, %v714
        %v1436 = vpop.permute.xlu0 %1435
        %v1438 = vsel %vm1416, %v1432, 0.0
        %v1439 = vsel %vm1417, %v1436, 0.0
        %v1440 = vadd.f32 %v1390, %v1438
        %v1441 = vadd.f32 %v1391, %v1439
        %1442 = vset.pattern.permute.xlu0 60
        %1443 = vperm.xlu0 %1442, %v711
        %v1444 = vpop.permute.xlu0 %1443
        %1446 = vset.pattern.permute.xlu0 60
        %1447 = vperm.xlu0 %1446, %v714
        %v1448 = vpop.permute.xlu0 %1447
        %v1450 = vsel %vm1416, %v1444, 0.0
        %v1451 = vsel %vm1417, %v1448, 0.0
        %v1452 = vadd.f32 %v1402, %v1450
        %v1453 = vadd.f32 %v1403, %v1451
        %1454 = vset.pattern.permute.xlu0 85
        %1455 = vperm.xlu0 %1454, %v711
        %v1456 = vpop.permute.xlu0 %1455
        %1458 = vset.pattern.permute.xlu0 85
        %1459 = vperm.xlu0 %1458, %v714
        %v1460 = vpop.permute.xlu0 %1459
        %v1462 = vsel %vm1416, %v1456, 0.0
        %v1463 = vsel %vm1417, %v1460, 0.0
        %v1464 = vadd.f32 %v1414, %v1462
        %v1465 = vadd.f32 %v1415, %v1463
        %vm1466 = vcmp.eq.s32.totalorder %v470, 11
        %vm1467 = vcmp.eq.s32.totalorder %v471, 11
        %1468 = vset.pattern.permute.xlu0 11
        %1469 = vperm.xlu0 %1468, %v711
        %v1470 = vpop.permute.xlu0 %1469
        %1472 = vset.pattern.permute.xlu0 11
        %1473 = vperm.xlu0 %1472, %v714
        %v1474 = vpop.permute.xlu0 %1473
        %v1476 = vsel %vm1466, %v1470, 0.0
        %v1477 = vsel %vm1467, %v1474, 0.0
        %v1478 = vadd.f32 %v1428, %v1476
        %v1479 = vadd.f32 %v1429, %v1477
        %1480 = vset.pattern.permute.xlu0 36
        %1481 = vperm.xlu0 %1480, %v711
        %v1482 = vpop.permute.xlu0 %1481
        %1484 = vset.pattern.permute.xlu0 36
        %1485 = vperm.xlu0 %1484, %v714
        %v1486 = vpop.permute.xlu0 %1485
        %v1488 = vsel %vm1466, %v1482, 0.0
        %v1489 = vsel %vm1467, %v1486, 0.0
        %v1490 = vadd.f32 %v1440, %v1488
        %v1491 = vadd.f32 %v1441, %v1489
        %1492 = vset.pattern.permute.xlu0 61
        %1493 = vperm.xlu0 %1492, %v711
        %v1494 = vpop.permute.xlu0 %1493
        %1496 = vset.pattern.permute.xlu0 61
        %1497 = vperm.xlu0 %1496, %v714
        %v1498 = vpop.permute.xlu0 %1497
        %v1500 = vsel %vm1466, %v1494, 0.0
        %v1501 = vsel %vm1467, %v1498, 0.0
        %v1502 = vadd.f32 %v1452, %v1500
        %v1503 = vadd.f32 %v1453, %v1501
        %1504 = vset.pattern.permute.xlu0 86
        %1505 = vperm.xlu0 %1504, %v711
        %v1506 = vpop.permute.xlu0 %1505
        %1508 = vset.pattern.permute.xlu0 86
        %1509 = vperm.xlu0 %1508, %v714
        %v1510 = vpop.permute.xlu0 %1509
        %v1512 = vsel %vm1466, %v1506, 0.0
        %v1513 = vsel %vm1467, %v1510, 0.0
        %v1514 = vadd.f32 %v1464, %v1512
        %v1515 = vadd.f32 %v1465, %v1513
        %vm1516 = vcmp.eq.s32.totalorder %v470, 12
        %vm1517 = vcmp.eq.s32.totalorder %v471, 12
        %1518 = vset.pattern.permute.xlu0 12
        %1519 = vperm.xlu0 %1518, %v711
        %v1520 = vpop.permute.xlu0 %1519
        %1522 = vset.pattern.permute.xlu0 12
        %1523 = vperm.xlu0 %1522, %v714
        %v1524 = vpop.permute.xlu0 %1523
        %v1526 = vsel %vm1516, %v1520, 0.0
        %v1527 = vsel %vm1517, %v1524, 0.0
        %v1528 = vadd.f32 %v1478, %v1526
        %v1529 = vadd.f32 %v1479, %v1527
        %1530 = vset.pattern.permute.xlu0 37
        %1531 = vperm.xlu0 %1530, %v711
        %v1532 = vpop.permute.xlu0 %1531
        %1534 = vset.pattern.permute.xlu0 37
        %1535 = vperm.xlu0 %1534, %v714
        %v1536 = vpop.permute.xlu0 %1535
        %v1538 = vsel %vm1516, %v1532, 0.0
        %v1539 = vsel %vm1517, %v1536, 0.0
        %v1540 = vadd.f32 %v1490, %v1538
        %v1541 = vadd.f32 %v1491, %v1539
        %1542 = vset.pattern.permute.xlu0 62
        %1543 = vperm.xlu0 %1542, %v711
        %v1544 = vpop.permute.xlu0 %1543
        %1546 = vset.pattern.permute.xlu0 62
        %1547 = vperm.xlu0 %1546, %v714
        %v1548 = vpop.permute.xlu0 %1547
        %v1550 = vsel %vm1516, %v1544, 0.0
        %v1551 = vsel %vm1517, %v1548, 0.0
        %v1552 = vadd.f32 %v1502, %v1550
        %v1553 = vadd.f32 %v1503, %v1551
        %1554 = vset.pattern.permute.xlu0 87
        %1555 = vperm.xlu0 %1554, %v711
        %v1556 = vpop.permute.xlu0 %1555
        %1558 = vset.pattern.permute.xlu0 87
        %1559 = vperm.xlu0 %1558, %v714
        %v1560 = vpop.permute.xlu0 %1559
        %v1562 = vsel %vm1516, %v1556, 0.0
        %v1563 = vsel %vm1517, %v1560, 0.0
        %v1564 = vadd.f32 %v1514, %v1562
        %v1565 = vadd.f32 %v1515, %v1563
        %vm1566 = vcmp.eq.s32.totalorder %v470, 13
        %vm1567 = vcmp.eq.s32.totalorder %v471, 13
        %1568 = vset.pattern.permute.xlu0 13
        %1569 = vperm.xlu0 %1568, %v711
        %v1570 = vpop.permute.xlu0 %1569
        %1572 = vset.pattern.permute.xlu0 13
        %1573 = vperm.xlu0 %1572, %v714
        %v1574 = vpop.permute.xlu0 %1573
        %v1576 = vsel %vm1566, %v1570, 0.0
        %v1577 = vsel %vm1567, %v1574, 0.0
        %v1578 = vadd.f32 %v1528, %v1576
        %v1579 = vadd.f32 %v1529, %v1577
        %1580 = vset.pattern.permute.xlu0 38
        %1581 = vperm.xlu0 %1580, %v711
        %v1582 = vpop.permute.xlu0 %1581
        %1584 = vset.pattern.permute.xlu0 38
        %1585 = vperm.xlu0 %1584, %v714
        %v1586 = vpop.permute.xlu0 %1585
        %v1588 = vsel %vm1566, %v1582, 0.0
        %v1589 = vsel %vm1567, %v1586, 0.0
        %v1590 = vadd.f32 %v1540, %v1588
        %v1591 = vadd.f32 %v1541, %v1589
        %1592 = vset.pattern.permute.xlu0 63
        %1593 = vperm.xlu0 %1592, %v711
        %v1594 = vpop.permute.xlu0 %1593
        %1596 = vset.pattern.permute.xlu0 63
        %1597 = vperm.xlu0 %1596, %v714
        %v1598 = vpop.permute.xlu0 %1597
        %v1600 = vsel %vm1566, %v1594, 0.0
        %v1601 = vsel %vm1567, %v1598, 0.0
        %v1602 = vadd.f32 %v1552, %v1600
        %v1603 = vadd.f32 %v1553, %v1601
        %1604 = vset.pattern.permute.xlu0 88
        %1605 = vperm.xlu0 %1604, %v711
        %v1606 = vpop.permute.xlu0 %1605
        %1608 = vset.pattern.permute.xlu0 88
        %1609 = vperm.xlu0 %1608, %v714
        %v1610 = vpop.permute.xlu0 %1609
        %v1612 = vsel %vm1566, %v1606, 0.0
        %v1613 = vsel %vm1567, %v1610, 0.0
        %v1614 = vadd.f32 %v1564, %v1612
        %v1615 = vadd.f32 %v1565, %v1613
        %vm1616 = vcmp.eq.s32.totalorder %v470, 14
        %vm1617 = vcmp.eq.s32.totalorder %v471, 14
        %1618 = vset.pattern.permute.xlu0 14
        %1619 = vperm.xlu0 %1618, %v711
        %v1620 = vpop.permute.xlu0 %1619
        %1622 = vset.pattern.permute.xlu0 14
        %1623 = vperm.xlu0 %1622, %v714
        %v1624 = vpop.permute.xlu0 %1623
        %v1626 = vsel %vm1616, %v1620, 0.0
        %v1627 = vsel %vm1617, %v1624, 0.0
        %v1628 = vadd.f32 %v1578, %v1626
        %v1629 = vadd.f32 %v1579, %v1627
        %1630 = vset.pattern.permute.xlu0 39
        %1631 = vperm.xlu0 %1630, %v711
        %v1632 = vpop.permute.xlu0 %1631
        %1634 = vset.pattern.permute.xlu0 39
        %1635 = vperm.xlu0 %1634, %v714
        %v1636 = vpop.permute.xlu0 %1635
        %v1638 = vsel %vm1616, %v1632, 0.0
        %v1639 = vsel %vm1617, %v1636, 0.0
        %v1640 = vadd.f32 %v1590, %v1638
        %v1641 = vadd.f32 %v1591, %v1639
        %1642 = vset.pattern.permute.xlu0 64
        %1643 = vperm.xlu0 %1642, %v711
        %v1644 = vpop.permute.xlu0 %1643
        %1646 = vset.pattern.permute.xlu0 64
        %1647 = vperm.xlu0 %1646, %v714
        %v1648 = vpop.permute.xlu0 %1647
        %v1650 = vsel %vm1616, %v1644, 0.0
        %v1651 = vsel %vm1617, %v1648, 0.0
        %v1652 = vadd.f32 %v1602, %v1650
        %v1653 = vadd.f32 %v1603, %v1651
        %1654 = vset.pattern.permute.xlu0 89
        %1655 = vperm.xlu0 %1654, %v711
        %v1656 = vpop.permute.xlu0 %1655
        %1658 = vset.pattern.permute.xlu0 89
        %1659 = vperm.xlu0 %1658, %v714
        %v1660 = vpop.permute.xlu0 %1659
        %v1662 = vsel %vm1616, %v1656, 0.0
        %v1663 = vsel %vm1617, %v1660, 0.0
        %v1664 = vadd.f32 %v1614, %v1662
        %v1665 = vadd.f32 %v1615, %v1663
        %vm1666 = vcmp.eq.s32.totalorder %v470, 15
        %vm1667 = vcmp.eq.s32.totalorder %v471, 15
        %1668 = vset.pattern.permute.xlu0 15
        %1669 = vperm.xlu0 %1668, %v711
        %v1670 = vpop.permute.xlu0 %1669
        %1672 = vset.pattern.permute.xlu0 15
        %1673 = vperm.xlu0 %1672, %v714
        %v1674 = vpop.permute.xlu0 %1673
        %v1676 = vsel %vm1666, %v1670, 0.0
        %v1677 = vsel %vm1667, %v1674, 0.0
        %v1678 = vadd.f32 %v1628, %v1676
        %v1679 = vadd.f32 %v1629, %v1677
        %1680 = vset.pattern.permute.xlu0 40
        %1681 = vperm.xlu0 %1680, %v711
        %v1682 = vpop.permute.xlu0 %1681
        %1684 = vset.pattern.permute.xlu0 40
        %1685 = vperm.xlu0 %1684, %v714
        %v1686 = vpop.permute.xlu0 %1685
        %v1688 = vsel %vm1666, %v1682, 0.0
        %v1689 = vsel %vm1667, %v1686, 0.0
        %v1690 = vadd.f32 %v1640, %v1688
        %v1691 = vadd.f32 %v1641, %v1689
        %1692 = vset.pattern.permute.xlu0 65
        %1693 = vperm.xlu0 %1692, %v711
        %v1694 = vpop.permute.xlu0 %1693
        %1696 = vset.pattern.permute.xlu0 65
        %1697 = vperm.xlu0 %1696, %v714
        %v1698 = vpop.permute.xlu0 %1697
        %v1700 = vsel %vm1666, %v1694, 0.0
        %v1701 = vsel %vm1667, %v1698, 0.0
        %v1702 = vadd.f32 %v1652, %v1700
        %v1703 = vadd.f32 %v1653, %v1701
        %1704 = vset.pattern.permute.xlu0 90
        %1705 = vperm.xlu0 %1704, %v711
        %v1706 = vpop.permute.xlu0 %1705
        %1708 = vset.pattern.permute.xlu0 90
        %1709 = vperm.xlu0 %1708, %v714
        %v1710 = vpop.permute.xlu0 %1709
        %v1712 = vsel %vm1666, %v1706, 0.0
        %v1713 = vsel %vm1667, %v1710, 0.0
        %v1714 = vadd.f32 %v1664, %v1712
        %v1715 = vadd.f32 %v1665, %v1713
        %vm1716 = vcmp.eq.s32.totalorder %v470, 16
        %vm1717 = vcmp.eq.s32.totalorder %v471, 16
        %1718 = vset.pattern.permute.xlu0 16
        %1719 = vperm.xlu0 %1718, %v711
        %v1720 = vpop.permute.xlu0 %1719
        %1722 = vset.pattern.permute.xlu0 16
        %1723 = vperm.xlu0 %1722, %v714
        %v1724 = vpop.permute.xlu0 %1723
        %v1726 = vsel %vm1716, %v1720, 0.0
        %v1727 = vsel %vm1717, %v1724, 0.0
        %v1728 = vadd.f32 %v1678, %v1726
        %v1729 = vadd.f32 %v1679, %v1727
        %1730 = vset.pattern.permute.xlu0 41
        %1731 = vperm.xlu0 %1730, %v711
        %v1732 = vpop.permute.xlu0 %1731
        %1734 = vset.pattern.permute.xlu0 41
        %1735 = vperm.xlu0 %1734, %v714
        %v1736 = vpop.permute.xlu0 %1735
        %v1738 = vsel %vm1716, %v1732, 0.0
        %v1739 = vsel %vm1717, %v1736, 0.0
        %v1740 = vadd.f32 %v1690, %v1738
        %v1741 = vadd.f32 %v1691, %v1739
        %1742 = vset.pattern.permute.xlu0 66
        %1743 = vperm.xlu0 %1742, %v711
        %v1744 = vpop.permute.xlu0 %1743
        %1746 = vset.pattern.permute.xlu0 66
        %1747 = vperm.xlu0 %1746, %v714
        %v1748 = vpop.permute.xlu0 %1747
        %v1750 = vsel %vm1716, %v1744, 0.0
        %v1751 = vsel %vm1717, %v1748, 0.0
        %v1752 = vadd.f32 %v1702, %v1750
        %v1753 = vadd.f32 %v1703, %v1751
        %1754 = vset.pattern.permute.xlu0 91
        %1755 = vperm.xlu0 %1754, %v711
        %v1756 = vpop.permute.xlu0 %1755
        %1758 = vset.pattern.permute.xlu0 91
        %1759 = vperm.xlu0 %1758, %v714
        %v1760 = vpop.permute.xlu0 %1759
        %v1762 = vsel %vm1716, %v1756, 0.0
        %v1763 = vsel %vm1717, %v1760, 0.0
        %v1764 = vadd.f32 %v1714, %v1762
        %v1765 = vadd.f32 %v1715, %v1763
        %vm1766 = vcmp.eq.s32.totalorder %v470, 17
        %vm1767 = vcmp.eq.s32.totalorder %v471, 17
        %1768 = vset.pattern.permute.xlu0 17
        %1769 = vperm.xlu0 %1768, %v711
        %v1770 = vpop.permute.xlu0 %1769
        %1772 = vset.pattern.permute.xlu0 17
        %1773 = vperm.xlu0 %1772, %v714
        %v1774 = vpop.permute.xlu0 %1773
        %v1776 = vsel %vm1766, %v1770, 0.0
        %v1777 = vsel %vm1767, %v1774, 0.0
        %v1778 = vadd.f32 %v1728, %v1776
        %v1779 = vadd.f32 %v1729, %v1777
        %1780 = vset.pattern.permute.xlu0 42
        %1781 = vperm.xlu0 %1780, %v711
        %v1782 = vpop.permute.xlu0 %1781
        %1784 = vset.pattern.permute.xlu0 42
        %1785 = vperm.xlu0 %1784, %v714
        %v1786 = vpop.permute.xlu0 %1785
        %v1788 = vsel %vm1766, %v1782, 0.0
        %v1789 = vsel %vm1767, %v1786, 0.0
        %v1790 = vadd.f32 %v1740, %v1788
        %v1791 = vadd.f32 %v1741, %v1789
        %1792 = vset.pattern.permute.xlu0 67
        %1793 = vperm.xlu0 %1792, %v711
        %v1794 = vpop.permute.xlu0 %1793
        %1796 = vset.pattern.permute.xlu0 67
        %1797 = vperm.xlu0 %1796, %v714
        %v1798 = vpop.permute.xlu0 %1797
        %v1800 = vsel %vm1766, %v1794, 0.0
        %v1801 = vsel %vm1767, %v1798, 0.0
        %v1802 = vadd.f32 %v1752, %v1800
        %v1803 = vadd.f32 %v1753, %v1801
        %1804 = vset.pattern.permute.xlu0 92
        %1805 = vperm.xlu0 %1804, %v711
        %v1806 = vpop.permute.xlu0 %1805
        %1808 = vset.pattern.permute.xlu0 92
        %1809 = vperm.xlu0 %1808, %v714
        %v1810 = vpop.permute.xlu0 %1809
        %v1812 = vsel %vm1766, %v1806, 0.0
        %v1813 = vsel %vm1767, %v1810, 0.0
        %v1814 = vadd.f32 %v1764, %v1812
        %v1815 = vadd.f32 %v1765, %v1813
        %vm1816 = vcmp.eq.s32.totalorder %v470, 18
        %vm1817 = vcmp.eq.s32.totalorder %v471, 18
        %1818 = vset.pattern.permute.xlu0 18
        %1819 = vperm.xlu0 %1818, %v711
        %v1820 = vpop.permute.xlu0 %1819
        %1822 = vset.pattern.permute.xlu0 18
        %1823 = vperm.xlu0 %1822, %v714
        %v1824 = vpop.permute.xlu0 %1823
        %v1826 = vsel %vm1816, %v1820, 0.0
        %v1827 = vsel %vm1817, %v1824, 0.0
        %v1828 = vadd.f32 %v1778, %v1826
        %v1829 = vadd.f32 %v1779, %v1827
        %1830 = vset.pattern.permute.xlu0 43
        %1831 = vperm.xlu0 %1830, %v711
        %v1832 = vpop.permute.xlu0 %1831
        %1834 = vset.pattern.permute.xlu0 43
        %1835 = vperm.xlu0 %1834, %v714
        %v1836 = vpop.permute.xlu0 %1835
        %v1838 = vsel %vm1816, %v1832, 0.0
        %v1839 = vsel %vm1817, %v1836, 0.0
        %v1840 = vadd.f32 %v1790, %v1838
        %v1841 = vadd.f32 %v1791, %v1839
        %1842 = vset.pattern.permute.xlu0 68
        %1843 = vperm.xlu0 %1842, %v711
        %v1844 = vpop.permute.xlu0 %1843
        %1846 = vset.pattern.permute.xlu0 68
        %1847 = vperm.xlu0 %1846, %v714
        %v1848 = vpop.permute.xlu0 %1847
        %v1850 = vsel %vm1816, %v1844, 0.0
        %v1851 = vsel %vm1817, %v1848, 0.0
        %v1852 = vadd.f32 %v1802, %v1850
        %v1853 = vadd.f32 %v1803, %v1851
        %1854 = vset.pattern.permute.xlu0 93
        %1855 = vperm.xlu0 %1854, %v711
        %v1856 = vpop.permute.xlu0 %1855
        %1858 = vset.pattern.permute.xlu0 93
        %1859 = vperm.xlu0 %1858, %v714
        %v1860 = vpop.permute.xlu0 %1859
        %v1862 = vsel %vm1816, %v1856, 0.0
        %v1863 = vsel %vm1817, %v1860, 0.0
        %v1864 = vadd.f32 %v1814, %v1862
        %v1865 = vadd.f32 %v1815, %v1863
        %vm1866 = vcmp.eq.s32.totalorder %v470, 19
        %vm1867 = vcmp.eq.s32.totalorder %v471, 19
        %1868 = vset.pattern.permute.xlu0 19
        %1869 = vperm.xlu0 %1868, %v711
        %v1870 = vpop.permute.xlu0 %1869
        %1872 = vset.pattern.permute.xlu0 19
        %1873 = vperm.xlu0 %1872, %v714
        %v1874 = vpop.permute.xlu0 %1873
        %v1876 = vsel %vm1866, %v1870, 0.0
        %v1877 = vsel %vm1867, %v1874, 0.0
        %v1878 = vadd.f32 %v1828, %v1876
        %v1879 = vadd.f32 %v1829, %v1877
        %1880 = vset.pattern.permute.xlu0 44
        %1881 = vperm.xlu0 %1880, %v711
        %v1882 = vpop.permute.xlu0 %1881
        %1884 = vset.pattern.permute.xlu0 44
        %1885 = vperm.xlu0 %1884, %v714
        %v1886 = vpop.permute.xlu0 %1885
        %v1888 = vsel %vm1866, %v1882, 0.0
        %v1889 = vsel %vm1867, %v1886, 0.0
        %v1890 = vadd.f32 %v1840, %v1888
        %v1891 = vadd.f32 %v1841, %v1889
        %1892 = vset.pattern.permute.xlu0 69
        %1893 = vperm.xlu0 %1892, %v711
        %v1894 = vpop.permute.xlu0 %1893
        %1896 = vset.pattern.permute.xlu0 69
        %1897 = vperm.xlu0 %1896, %v714
        %v1898 = vpop.permute.xlu0 %1897
        %v1900 = vsel %vm1866, %v1894, 0.0
        %v1901 = vsel %vm1867, %v1898, 0.0
        %v1902 = vadd.f32 %v1852, %v1900
        %v1903 = vadd.f32 %v1853, %v1901
        %1904 = vset.pattern.permute.xlu0 94
        %1905 = vperm.xlu0 %1904, %v711
        %v1906 = vpop.permute.xlu0 %1905
        %1908 = vset.pattern.permute.xlu0 94
        %1909 = vperm.xlu0 %1908, %v714
        %v1910 = vpop.permute.xlu0 %1909
        %v1912 = vsel %vm1866, %v1906, 0.0
        %v1913 = vsel %vm1867, %v1910, 0.0
        %v1914 = vadd.f32 %v1864, %v1912
        %v1915 = vadd.f32 %v1865, %v1913
        %vm1916 = vcmp.eq.s32.totalorder %v470, 20
        %vm1917 = vcmp.eq.s32.totalorder %v471, 20
        %1918 = vset.pattern.permute.xlu0 20
        %1919 = vperm.xlu0 %1918, %v711
        %v1920 = vpop.permute.xlu0 %1919
        %1922 = vset.pattern.permute.xlu0 20
        %1923 = vperm.xlu0 %1922, %v714
        %v1924 = vpop.permute.xlu0 %1923
        %v1926 = vsel %vm1916, %v1920, 0.0
        %v1927 = vsel %vm1917, %v1924, 0.0
        %v1928 = vadd.f32 %v1878, %v1926
        %v1929 = vadd.f32 %v1879, %v1927
        %1930 = vset.pattern.permute.xlu0 45
        %1931 = vperm.xlu0 %1930, %v711
        %v1932 = vpop.permute.xlu0 %1931
        %1934 = vset.pattern.permute.xlu0 45
        %1935 = vperm.xlu0 %1934, %v714
        %v1936 = vpop.permute.xlu0 %1935
        %v1938 = vsel %vm1916, %v1932, 0.0
        %v1939 = vsel %vm1917, %v1936, 0.0
        %v1940 = vadd.f32 %v1890, %v1938
        %v1941 = vadd.f32 %v1891, %v1939
        %1942 = vset.pattern.permute.xlu0 70
        %1943 = vperm.xlu0 %1942, %v711
        %v1944 = vpop.permute.xlu0 %1943
        %1946 = vset.pattern.permute.xlu0 70
        %1947 = vperm.xlu0 %1946, %v714
        %v1948 = vpop.permute.xlu0 %1947
        %v1950 = vsel %vm1916, %v1944, 0.0
        %v1951 = vsel %vm1917, %v1948, 0.0
        %v1952 = vadd.f32 %v1902, %v1950
        %v1953 = vadd.f32 %v1903, %v1951
        %1954 = vset.pattern.permute.xlu0 95
        %1955 = vperm.xlu0 %1954, %v711
        %v1956 = vpop.permute.xlu0 %1955
        %1958 = vset.pattern.permute.xlu0 95
        %1959 = vperm.xlu0 %1958, %v714
        %v1960 = vpop.permute.xlu0 %1959
        %v1962 = vsel %vm1916, %v1956, 0.0
        %v1963 = vsel %vm1917, %v1960, 0.0
        %v1964 = vadd.f32 %v1914, %v1962
        %v1965 = vadd.f32 %v1915, %v1963
        %vm1966 = vcmp.eq.s32.totalorder %v470, 21
        %vm1967 = vcmp.eq.s32.totalorder %v471, 21
        %1968 = vset.pattern.permute.xlu0 21
        %1969 = vperm.xlu0 %1968, %v711
        %v1970 = vpop.permute.xlu0 %1969
        %1972 = vset.pattern.permute.xlu0 21
        %1973 = vperm.xlu0 %1972, %v714
        %v1974 = vpop.permute.xlu0 %1973
        %v1976 = vsel %vm1966, %v1970, 0.0
        %v1977 = vsel %vm1967, %v1974, 0.0
        %v1978 = vadd.f32 %v1928, %v1976
        %v1979 = vadd.f32 %v1929, %v1977
        %1980 = vset.pattern.permute.xlu0 46
        %1981 = vperm.xlu0 %1980, %v711
        %v1982 = vpop.permute.xlu0 %1981
        %1984 = vset.pattern.permute.xlu0 46
        %1985 = vperm.xlu0 %1984, %v714
        %v1986 = vpop.permute.xlu0 %1985
        %v1988 = vsel %vm1966, %v1982, 0.0
        %v1989 = vsel %vm1967, %v1986, 0.0
        %v1990 = vadd.f32 %v1940, %v1988
        %v1991 = vadd.f32 %v1941, %v1989
        %1992 = vset.pattern.permute.xlu0 71
        %1993 = vperm.xlu0 %1992, %v711
        %v1994 = vpop.permute.xlu0 %1993
        %1996 = vset.pattern.permute.xlu0 71
        %1997 = vperm.xlu0 %1996, %v714
        %v1998 = vpop.permute.xlu0 %1997
        %v2000 = vsel %vm1966, %v1994, 0.0
        %v2001 = vsel %vm1967, %v1998, 0.0
        %v2002 = vadd.f32 %v1952, %v2000
        %v2003 = vadd.f32 %v1953, %v2001
        %2004 = vset.pattern.permute.xlu0 96
        %2005 = vperm.xlu0 %2004, %v711
        %v2006 = vpop.permute.xlu0 %2005
        %2008 = vset.pattern.permute.xlu0 96
        %2009 = vperm.xlu0 %2008, %v714
        %v2010 = vpop.permute.xlu0 %2009
        %v2012 = vsel %vm1966, %v2006, 0.0
        %v2013 = vsel %vm1967, %v2010, 0.0
        %v2014 = vadd.f32 %v1964, %v2012
        %v2015 = vadd.f32 %v1965, %v2013
        %vm2016 = vcmp.eq.s32.totalorder %v470, 22
        %vm2017 = vcmp.eq.s32.totalorder %v471, 22
        %2018 = vset.pattern.permute.xlu0 22
        %2019 = vperm.xlu0 %2018, %v711
        %v2020 = vpop.permute.xlu0 %2019
        %2022 = vset.pattern.permute.xlu0 22
        %2023 = vperm.xlu0 %2022, %v714
        %v2024 = vpop.permute.xlu0 %2023
        %v2026 = vsel %vm2016, %v2020, 0.0
        %v2027 = vsel %vm2017, %v2024, 0.0
        %v2028 = vadd.f32 %v1978, %v2026
        %v2029 = vadd.f32 %v1979, %v2027
        %2030 = vset.pattern.permute.xlu0 47
        %2031 = vperm.xlu0 %2030, %v711
        %v2032 = vpop.permute.xlu0 %2031
        %2034 = vset.pattern.permute.xlu0 47
        %2035 = vperm.xlu0 %2034, %v714
        %v2036 = vpop.permute.xlu0 %2035
        %v2038 = vsel %vm2016, %v2032, 0.0
        %v2039 = vsel %vm2017, %v2036, 0.0
        %v2040 = vadd.f32 %v1990, %v2038
        %v2041 = vadd.f32 %v1991, %v2039
        %2042 = vset.pattern.permute.xlu0 72
        %2043 = vperm.xlu0 %2042, %v711
        %v2044 = vpop.permute.xlu0 %2043
        %2046 = vset.pattern.permute.xlu0 72
        %2047 = vperm.xlu0 %2046, %v714
        %v2048 = vpop.permute.xlu0 %2047
        %v2050 = vsel %vm2016, %v2044, 0.0
        %v2051 = vsel %vm2017, %v2048, 0.0
        %v2052 = vadd.f32 %v2002, %v2050
        %v2053 = vadd.f32 %v2003, %v2051
        %2054 = vset.pattern.permute.xlu0 97
        %2055 = vperm.xlu0 %2054, %v711
        %v2056 = vpop.permute.xlu0 %2055
        %2058 = vset.pattern.permute.xlu0 97
        %2059 = vperm.xlu0 %2058, %v714
        %v2060 = vpop.permute.xlu0 %2059
        %v2062 = vsel %vm2016, %v2056, 0.0
        %v2063 = vsel %vm2017, %v2060, 0.0
        %v2064 = vadd.f32 %v2014, %v2062
        %v2065 = vadd.f32 %v2015, %v2063
        %vm2066 = vcmp.eq.s32.totalorder %v470, 23
        %vm2067 = vcmp.eq.s32.totalorder %v471, 23
        %2068 = vset.pattern.permute.xlu0 23
        %2069 = vperm.xlu0 %2068, %v711
        %v2070 = vpop.permute.xlu0 %2069
        %2072 = vset.pattern.permute.xlu0 23
        %2073 = vperm.xlu0 %2072, %v714
        %v2074 = vpop.permute.xlu0 %2073
        %v2076 = vsel %vm2066, %v2070, 0.0
        %v2077 = vsel %vm2067, %v2074, 0.0
        %v2078 = vadd.f32 %v2028, %v2076
        %v2079 = vadd.f32 %v2029, %v2077
        %2080 = vset.pattern.permute.xlu0 48
        %2081 = vperm.xlu0 %2080, %v711
        %v2082 = vpop.permute.xlu0 %2081
        %2084 = vset.pattern.permute.xlu0 48
        %2085 = vperm.xlu0 %2084, %v714
        %v2086 = vpop.permute.xlu0 %2085
        %v2088 = vsel %vm2066, %v2082, 0.0
        %v2089 = vsel %vm2067, %v2086, 0.0
        %v2090 = vadd.f32 %v2040, %v2088
        %v2091 = vadd.f32 %v2041, %v2089
        %2092 = vset.pattern.permute.xlu0 73
        %2093 = vperm.xlu0 %2092, %v711
        %v2094 = vpop.permute.xlu0 %2093
        %2096 = vset.pattern.permute.xlu0 73
        %2097 = vperm.xlu0 %2096, %v714
        %v2098 = vpop.permute.xlu0 %2097
        %v2100 = vsel %vm2066, %v2094, 0.0
        %v2101 = vsel %vm2067, %v2098, 0.0
        %v2102 = vadd.f32 %v2052, %v2100
        %v2103 = vadd.f32 %v2053, %v2101
        %2104 = vset.pattern.permute.xlu0 98
        %2105 = vperm.xlu0 %2104, %v711
        %v2106 = vpop.permute.xlu0 %2105
        %2108 = vset.pattern.permute.xlu0 98
        %2109 = vperm.xlu0 %2108, %v714
        %v2110 = vpop.permute.xlu0 %2109
        %v2112 = vsel %vm2066, %v2106, 0.0
        %v2113 = vsel %vm2067, %v2110, 0.0
        %v2114 = vadd.f32 %v2064, %v2112
        %v2115 = vadd.f32 %v2065, %v2113
        %vm2116 = vcmp.eq.s32.totalorder %v470, 24
        %vm2117 = vcmp.eq.s32.totalorder %v471, 24
        %2118 = vset.pattern.permute.xlu0 24
        %2119 = vperm.xlu0 %2118, %v711
        %v2120 = vpop.permute.xlu0 %2119
        %2122 = vset.pattern.permute.xlu0 24
        %2123 = vperm.xlu0 %2122, %v714
        %v2124 = vpop.permute.xlu0 %2123
        %v2126 = vsel %vm2116, %v2120, 0.0
        %v2127 = vsel %vm2117, %v2124, 0.0
        %v2128 = vadd.f32 %v2078, %v2126
        %v2129 = vadd.f32 %v2079, %v2127
        %2130 = vset.pattern.permute.xlu0 49
        %2131 = vperm.xlu0 %2130, %v711
        %v2132 = vpop.permute.xlu0 %2131
        %2134 = vset.pattern.permute.xlu0 49
        %2135 = vperm.xlu0 %2134, %v714
        %v2136 = vpop.permute.xlu0 %2135
        %v2138 = vsel %vm2116, %v2132, 0.0
        %v2139 = vsel %vm2117, %v2136, 0.0
        %v2140 = vadd.f32 %v2090, %v2138
        %v2141 = vadd.f32 %v2091, %v2139
        %2142 = vset.pattern.permute.xlu0 74
        %2143 = vperm.xlu0 %2142, %v711
        %v2144 = vpop.permute.xlu0 %2143
        %2146 = vset.pattern.permute.xlu0 74
        %2147 = vperm.xlu0 %2146, %v714
        %v2148 = vpop.permute.xlu0 %2147
        %v2150 = vsel %vm2116, %v2144, 0.0
        %v2151 = vsel %vm2117, %v2148, 0.0
        %v2152 = vadd.f32 %v2102, %v2150
        %v2153 = vadd.f32 %v2103, %v2151
        %2154 = vset.pattern.permute.xlu0 99
        %2155 = vperm.xlu0 %2154, %v711
        %v2156 = vpop.permute.xlu0 %2155
        %2158 = vset.pattern.permute.xlu0 99
        %2159 = vperm.xlu0 %2158, %v714
        %v2160 = vpop.permute.xlu0 %2159
        %v2162 = vsel %vm2116, %v2156, 0.0
        %v2163 = vsel %vm2117, %v2160, 0.0
        %v2164 = vadd.f32 %v2114, %v2162
        %v2165 = vadd.f32 %v2115, %v2163
        %vm2166 = vcmask 130048
        %v2167 = vsel %vm2166, %v2128, -inf
        %2168 = vmax.xlane.f32.xlu0 %v2167
        %v2169 = vpop.xlane.xlu0 %2168
        %v2170 = vsel %vm2166, %v2129, -inf
        %2171 = vmax.xlane.f32.xlu0 %v2170
        %v2172 = vpop.xlane.xlu0 %2171
        %v2173 = vsub.f32 %v2128, %v2169
        %v2174 = vsub.f32 %v2129, %v2172
        %v2175 = vmul.f32 %v2173, 1.442695
        %v2176 = vpow.pop %v2175
        %v2177 = vmul.f32 %v2174, 1.442695
        %v2178 = vpow.pop %v2177
        %v2179 = vsel %vm2166, %v2176, 0.0
        %2180 = vadd.xlane.f32.xlu0 %v2179
        %v2181 = vpop.xlane.xlu0 %2180
        %v2182 = vsel %vm2166, %v2178, 0.0
        %2183 = vadd.xlane.f32.xlu0 %v2182
        %v2184 = vpop.xlane.xlu0 %2183
        %v2185 = vrcp.pop %v2181
        %v2186 = vrcp.pop %v2184
        %v2187 = vmul.f32 %v2176, %v2185
        %v2188 = vmul.f32 %v2178, %v2186
        %v2189 = vpack.c.bf16 %v592, %v589
        %v2190 = vpack.c.bf16 %v2188, %v2187
        %v2192 = vsel %vm2166, %v2190, 0
        %2194 = vmatprep.subr.bf16.mxu0 0
        %2195 = vmatpush1.bf16.msra.mxu0 %v2189
        %2196 = vmatprep.subr.bf16.mxu0 0
        %2197 = vmatpush1.bf16.msra.mxu0 0
        %2198 = vmatprep.subr.bf16.mxu0 0
        %2199 = vmatpush1.bf16.msra.mxu0 0
        %2200 = vmatprep.subr.bf16.mxu0 0
        %2201 = vmatpush1.bf16.msra.mxu0 0
        %2202 = vmatprep.subr.bf16.mxu0 0
        %2203 = vmatpush1.bf16.msra.mxu0 0
        %2204 = vmatprep.subr.bf16.mxu0 0
        %2205 = vmatpush1.bf16.msra.mxu0 0
        %2206 = vmatprep.subr.bf16.mxu0 0
        %2207 = vmatpush1.bf16.msra.mxu0 0
        %2208 = vmatprep.subr.bf16.mxu0 0
        %2209 = vmatpush1.bf16.msra.mxu0 0
        %2210 = vmatprep.subr.bf16.mxu0 0
        %2211 = vmatpush1.bf16.msra.mxu0 0
        %2212 = vmatprep.subr.bf16.mxu0 0
        %2213 = vmatpush1.bf16.msra.mxu0 0
        %2214 = vmatprep.subr.bf16.mxu0 0
        %2215 = vmatpush1.bf16.msra.mxu0 0
        %2216 = vmatprep.subr.bf16.mxu0 0
        %2217 = vmatpush1.bf16.msra.mxu0 0
        %2218 = vmatprep.subr.bf16.mxu0 0
        %2219 = vmatpush1.bf16.msra.mxu0 0
        %2220 = vmatprep.subr.bf16.mxu0 0
        %2221 = vmatpush1.bf16.msra.mxu0 0
        %2222 = vmatprep.subr.bf16.mxu0 0
        %2223 = vmatpush1.bf16.msra.mxu0 0
        %2224 = vmatprep.subr.bf16.mxu0 0
        %2225 = vmatpush1.bf16.msra.mxu0 0
        %2226 = vmatprep.mubr.bf16.mxu0 0
        %2227 = vmatmul.mubr.bf16.gmra.mrb[0].mxu0 %v2192
        %v2228 = vpop.f32.mrb[0].mxu0
        %v2229 = vadd.f32 0.0, %v2228
        %v2230 = vpop.f32.mrb[0].mxu0
        %v2231 = vpop.f32.mrb[0].mxu0
        %v2232 = vadd.f32 0.0, %v2231
        %v2233 = vpop.f32.mrb[0].mxu0
        %2234 = vdwg.mxu0
        %v2235 = vsel %vm2166, %v2140, -inf
        %2236 = vmax.xlane.f32.xlu0 %v2235
        %v2237 = vpop.xlane.xlu0 %2236
        %v2238 = vsel %vm2166, %v2141, -inf
        %2239 = vmax.xlane.f32.xlu0 %v2238
        %v2240 = vpop.xlane.xlu0 %2239
        %v2241 = vsub.f32 %v2140, %v2237
        %v2242 = vsub.f32 %v2141, %v2240
        %v2243 = vmul.f32 %v2241, 1.442695
        %v2244 = vpow.pop %v2243
        %v2245 = vmul.f32 %v2242, 1.442695
        %v2246 = vpow.pop %v2245
        %v2247 = vsel %vm2166, %v2244, 0.0
        %2248 = vadd.xlane.f32.xlu0 %v2247
        %v2249 = vpop.xlane.xlu0 %2248
        %v2250 = vsel %vm2166, %v2246, 0.0
        %2251 = vadd.xlane.f32.xlu0 %v2250
        %v2252 = vpop.xlane.xlu0 %2251
        %v2253 = vrcp.pop %v2249
        %v2254 = vrcp.pop %v2252
        %v2255 = vmul.f32 %v2244, %v2253
        %v2256 = vmul.f32 %v2246, %v2254
        %v2257 = vpack.c.bf16 %v2256, %v2255
        %2259 = vrot.lane.b32.xlu0 %v2189, 120
        %v2260 = vpop.permute.xlu0 %2259
        %v2263 = vsel %vm2166, %v2257, 0
        %2265 = vmatprep.subr.bf16.mxu0 0
        %2266 = vmatpush1.bf16.msra.mxu0 %v2260
        %2267 = vmatprep.subr.bf16.mxu0 0
        %2268 = vmatpush1.bf16.msra.mxu0 0
        %2269 = vmatprep.subr.bf16.mxu0 0
        %2270 = vmatpush1.bf16.msra.mxu0 0
        %2271 = vmatprep.subr.bf16.mxu0 0
        %2272 = vmatpush1.bf16.msra.mxu0 0
        %2273 = vmatprep.subr.bf16.mxu0 0
        %2274 = vmatpush1.bf16.msra.mxu0 0
        %2275 = vmatprep.subr.bf16.mxu0 0
        %2276 = vmatpush1.bf16.msra.mxu0 0
        %2277 = vmatprep.subr.bf16.mxu0 0
        %2278 = vmatpush1.bf16.msra.mxu0 0
        %2279 = vmatprep.subr.bf16.mxu0 0
        %2280 = vmatpush1.bf16.msra.mxu0 0
        %2281 = vmatprep.subr.bf16.mxu0 0
        %2282 = vmatpush1.bf16.msra.mxu0 0
        %2283 = vmatprep.subr.bf16.mxu0 0
        %2284 = vmatpush1.bf16.msra.mxu0 0
        %2285 = vmatprep.subr.bf16.mxu0 0
        %2286 = vmatpush1.bf16.msra.mxu0 0
        %2287 = vmatprep.subr.bf16.mxu0 0
        %2288 = vmatpush1.bf16.msra.mxu0 0
        %2289 = vmatprep.subr.bf16.mxu0 0
        %2290 = vmatpush1.bf16.msra.mxu0 0
        %2291 = vmatprep.subr.bf16.mxu0 0
        %2292 = vmatpush1.bf16.msra.mxu0 0
        %2293 = vmatprep.subr.bf16.mxu0 0
        %2294 = vmatpush1.bf16.msra.mxu0 0
        %2295 = vmatprep.subr.bf16.mxu0 0
        %2296 = vmatpush1.bf16.msra.mxu0 0
        %2297 = vmatprep.mubr.bf16.mxu0 0
        %2298 = vmatmul.mubr.bf16.gmra.mrb[0].mxu0 %v2263
        %v2299 = vpop.f32.mrb[0].mxu0
        %v2300 = vadd.f32 0.0, %v2299
        %v2301 = vpop.f32.mrb[0].mxu0
        %v2302 = vpop.f32.mrb[0].mxu0
        %v2303 = vadd.f32 0.0, %v2302
        %v2304 = vpop.f32.mrb[0].mxu0
        %2305 = vdwg.mxu0
        %v2306 = vsel %vm2166, %v2152, -inf
        %2307 = vmax.xlane.f32.xlu0 %v2306
        %v2308 = vpop.xlane.xlu0 %2307
        %v2309 = vsel %vm2166, %v2153, -inf
        %2310 = vmax.xlane.f32.xlu0 %v2309
        %v2311 = vpop.xlane.xlu0 %2310
        %v2312 = vsub.f32 %v2152, %v2308
        %v2313 = vsub.f32 %v2153, %v2311
        %v2314 = vmul.f32 %v2312, 1.442695
        %v2315 = vpow.pop %v2314
        %v2316 = vmul.f32 %v2313, 1.442695
        %v2317 = vpow.pop %v2316
        %v2318 = vsel %vm2166, %v2315, 0.0
        %2319 = vadd.xlane.f32.xlu0 %v2318
        %v2320 = vpop.xlane.xlu0 %2319
        %v2321 = vsel %vm2166, %v2317, 0.0
        %2322 = vadd.xlane.f32.xlu0 %v2321
        %v2323 = vpop.xlane.xlu0 %2322
        %v2324 = vrcp.pop %v2320
        %v2325 = vrcp.pop %v2323
        %v2326 = vmul.f32 %v2315, %v2324
        %v2327 = vmul.f32 %v2317, %v2325
        %v2328 = vpack.c.bf16 %v2327, %v2326
        %2329 = vrot.lane.b32.xlu0 %v2189, 112
        %v2330 = vpop.permute.xlu0 %2329
        %v2333 = vsel %vm2166, %v2328, 0
        %2335 = vmatprep.subr.bf16.mxu0 0
        %2336 = vmatpush1.bf16.msra.mxu0 %v2330
        %2337 = vmatprep.subr.bf16.mxu0 0
        %2338 = vmatpush1.bf16.msra.mxu0 0
        %2339 = vmatprep.subr.bf16.mxu0 0
        %2340 = vmatpush1.bf16.msra.mxu0 0
        %2341 = vmatprep.subr.bf16.mxu0 0
        %2342 = vmatpush1.bf16.msra.mxu0 0
        %2343 = vmatprep.subr.bf16.mxu0 0
        %2344 = vmatpush1.bf16.msra.mxu0 0
        %2345 = vmatprep.subr.bf16.mxu0 0
        %2346 = vmatpush1.bf16.msra.mxu0 0
        %2347 = vmatprep.subr.bf16.mxu0 0
        %2348 = vmatpush1.bf16.msra.mxu0 0
        %2349 = vmatprep.subr.bf16.mxu0 0
        %2350 = vmatpush1.bf16.msra.mxu0 0
        %2351 = vmatprep.subr.bf16.mxu0 0
        %2352 = vmatpush1.bf16.msra.mxu0 0
        %2353 = vmatprep.subr.bf16.mxu0 0
        %2354 = vmatpush1.bf16.msra.mxu0 0
        %2355 = vmatprep.subr.bf16.mxu0 0
        %2356 = vmatpush1.bf16.msra.mxu0 0
        %2357 = vmatprep.subr.bf16.mxu0 0
        %2358 = vmatpush1.bf16.msra.mxu0 0
        %2359 = vmatprep.subr.bf16.mxu0 0
        %2360 = vmatpush1.bf16.msra.mxu0 0
        %2361 = vmatprep.subr.bf16.mxu0 0
        %2362 = vmatpush1.bf16.msra.mxu0 0
        %2363 = vmatprep.subr.bf16.mxu0 0
        %2364 = vmatpush1.bf16.msra.mxu0 0
        %2365 = vmatprep.subr.bf16.mxu0 0
        %2366 = vmatpush1.bf16.msra.mxu0 0
        %2367 = vmatprep.mubr.bf16.mxu0 0
        %2368 = vmatmul.mubr.bf16.gmra.mrb[0].mxu0 %v2333
        %v2369 = vpop.f32.mrb[0].mxu0
        %v2370 = vadd.f32 0.0, %v2369
        %v2371 = vpop.f32.mrb[0].mxu0
        %v2372 = vpop.f32.mrb[0].mxu0
        %v2373 = vadd.f32 0.0, %v2372
        %v2374 = vpop.f32.mrb[0].mxu0
        %2375 = vdwg.mxu0
        %v2376 = vsel %vm2166, %v2164, -inf
        %2377 = vmax.xlane.f32.xlu0 %v2376
        %v2378 = vpop.xlane.xlu0 %2377
        %v2379 = vsel %vm2166, %v2165, -inf
        %2380 = vmax.xlane.f32.xlu0 %v2379
        %v2381 = vpop.xlane.xlu0 %2380
        %v2382 = vsub.f32 %v2164, %v2378
        %v2383 = vsub.f32 %v2165, %v2381
        %v2384 = vmul.f32 %v2382, 1.442695
        %v2385 = vpow.pop %v2384
        %v2386 = vmul.f32 %v2383, 1.442695
        %v2387 = vpow.pop %v2386
        %v2388 = vsel %vm2166, %v2385, 0.0
        %2389 = vadd.xlane.f32.xlu0 %v2388
        %v2390 = vpop.xlane.xlu0 %2389
        %v2391 = vsel %vm2166, %v2387, 0.0
        %2392 = vadd.xlane.f32.xlu0 %v2391
        %v2393 = vpop.xlane.xlu0 %2392
        %v2394 = vrcp.pop %v2390
        %v2395 = vrcp.pop %v2393
        %v2396 = vmul.f32 %v2385, %v2394
        %v2397 = vmul.f32 %v2387, %v2395
        %v2398 = vpack.c.bf16 %v2397, %v2396
        %2399 = vrot.lane.b32.xlu0 %v2189, 104
        %v2400 = vpop.permute.xlu0 %2399
        %v2403 = vsel %vm2166, %v2398, 0
        %2405 = vmatprep.subr.bf16.mxu0 0
        %2406 = vmatpush1.bf16.msra.mxu0 %v2400
        %2407 = vmatprep.subr.bf16.mxu0 0
        %2408 = vmatpush1.bf16.msra.mxu0 0
        %2409 = vmatprep.subr.bf16.mxu0 0
        %2410 = vmatpush1.bf16.msra.mxu0 0
        %2411 = vmatprep.subr.bf16.mxu0 0
        %2412 = vmatpush1.bf16.msra.mxu0 0
        %2413 = vmatprep.subr.bf16.mxu0 0
        %2414 = vmatpush1.bf16.msra.mxu0 0
        %2415 = vmatprep.subr.bf16.mxu0 0
        %2416 = vmatpush1.bf16.msra.mxu0 0
        %2417 = vmatprep.subr.bf16.mxu0 0
        %2418 = vmatpush1.bf16.msra.mxu0 0
        %2419 = vmatprep.subr.bf16.mxu0 0
        %2420 = vmatpush1.bf16.msra.mxu0 0
        %2421 = vmatprep.subr.bf16.mxu0 0
        %2422 = vmatpush1.bf16.msra.mxu0 0
        %2423 = vmatprep.subr.bf16.mxu0 0
        %2424 = vmatpush1.bf16.msra.mxu0 0
        %2425 = vmatprep.subr.bf16.mxu0 0
        %2426 = vmatpush1.bf16.msra.mxu0 0
        %2427 = vmatprep.subr.bf16.mxu0 0
        %2428 = vmatpush1.bf16.msra.mxu0 0
        %2429 = vmatprep.subr.bf16.mxu0 0
        %2430 = vmatpush1.bf16.msra.mxu0 0
        %2431 = vmatprep.subr.bf16.mxu0 0
        %2432 = vmatpush1.bf16.msra.mxu0 0
        %2433 = vmatprep.subr.bf16.mxu0 0
        %2434 = vmatpush1.bf16.msra.mxu0 0
        %2435 = vmatprep.subr.bf16.mxu0 0
        %2436 = vmatpush1.bf16.msra.mxu0 0
        %2437 = vmatprep.mubr.bf16.mxu0 0
        %2438 = vmatmul.mubr.bf16.gmra.mrb[0].mxu0 %v2403
        %v2439 = vpop.f32.mrb[0].mxu0
        %v2440 = vadd.f32 0.0, %v2439
        %v2441 = vpop.f32.mrb[0].mxu0
        %v2442 = vpop.f32.mrb[0].mxu0
        %v2443 = vadd.f32 0.0, %v2442
        %v2444 = vpop.f32.mrb[0].mxu0
        %2445 = vdwg.mxu0
        %2448 = vrot.lane.b32.xlu0 %v2300, 8
        %v2449 = vpop.permute.xlu0 %2448
        %2450 = vrot.lane.b32.xlu0 %v2303, 8
        %v2451 = vpop.permute.xlu0 %2450
        %2456 = vrot.lane.b32.xlu0 %v2370, 16
        %v2457 = vpop.permute.xlu0 %2456
        %2458 = vrot.lane.b32.xlu0 %v2373, 16
        %v2459 = vpop.permute.xlu0 %2458
        %2464 = vrot.lane.b32.xlu0 %v2440, 24
        %v2465 = vpop.permute.xlu0 %2464
        %2466 = vrot.lane.b32.xlu0 %v2443, 24
        %v2467 = vpop.permute.xlu0 %2466
        %v2470 = vsel %vm733, %v2229, %v2449
        %v2471 = vsel %vm733, %v2232, %v2451
        %v2472 = vsel %vm2166, %v2470, %v2457
        %v2473 = vsel %vm2166, %v2471, %v2459
        %vm2474 = vcmask 195584
        %v2475 = vsel %vm2474, %v2472, %v2465
        %v2476 = vsel %vm2474, %v2473, %v2467
        %v2477 = vpack.c.bf16 %v2476, %v2475
        %v2478 = vld [vmem:[#allocation11] sm:$0xf]
        %v2479 = vld [vmem:[#allocation11 + $0x4] sm:$0xf]
        %v2480 = vld [vmem:[#allocation11 + $0x8] sm:$0xf]
        %v2481 = vld [vmem:[#allocation11 + $0xc] sm:$0xf]
        %v2486 = vunpack.c.l.b16 %v2478
        %v2487 = vunpack.c.l.b16 %v2479
        %v2488 = vunpack.c.l.b16 %v2480
        %v2489 = vunpack.c.l.b16 %v2481
        %v2490 = vpack.c.b16 %v2487, %v2486
        %v2491 = vpack.c.b16 %v2489, %v2488
        %v2495 = vsel %vm493, %v2477, 0
        %2497 = vmatprep.subr.bf16.mxu0 0
        %2498 = vmatpush1.bf16.msra.mxu0 %v2490
        %2499 = vmatprep.subr.bf16.mxu0 0
        %2500 = vmatpush1.bf16.msra.mxu0 %v2491
        %2501 = vmatprep.subr.bf16.mxu0 0
        %2502 = vmatpush1.bf16.msra.mxu0 0
        %2503 = vmatprep.subr.bf16.mxu0 0
        %2504 = vmatpush1.bf16.msra.mxu0 0
        %2505 = vmatprep.subr.bf16.mxu0 0
        %2506 = vmatpush1.bf16.msra.mxu0 0
        %2507 = vmatprep.subr.bf16.mxu0 0
        %2508 = vmatpush1.bf16.msra.mxu0 0
        %2509 = vmatprep.subr.bf16.mxu0 0
        %2510 = vmatpush1.bf16.msra.mxu0 0
        %2511 = vmatprep.subr.bf16.mxu0 0
        %2512 = vmatpush1.bf16.msra.mxu0 0
        %2513 = vmatprep.subr.bf16.mxu0 0
        %2514 = vmatpush1.bf16.msra.mxu0 0
        %2515 = vmatprep.subr.bf16.mxu0 0
        %2516 = vmatpush1.bf16.msra.mxu0 0
        %2517 = vmatprep.subr.bf16.mxu0 0
        %2518 = vmatpush1.bf16.msra.mxu0 0
        %2519 = vmatprep.subr.bf16.mxu0 0
        %2520 = vmatpush1.bf16.msra.mxu0 0
        %2521 = vmatprep.subr.bf16.mxu0 0
        %2522 = vmatpush1.bf16.msra.mxu0 0
        %2523 = vmatprep.subr.bf16.mxu0 0
        %2524 = vmatpush1.bf16.msra.mxu0 0
        %2525 = vmatprep.subr.bf16.mxu0 0
        %2526 = vmatpush1.bf16.msra.mxu0 0
        %2527 = vmatprep.subr.bf16.mxu0 0
        %2528 = vmatpush1.bf16.msra.mxu0 0
        %2529 = vmatprep.mubr.bf16.mxu0 0
        %2530 = vmatmul.mubr.bf16.gmra.mrb[0].mxu0 %v2495
        %v2531 = vpop.f32.mrb[0].mxu0
        %v2532 = vadd.f32 0.0, %v2531
        %v2533 = vpop.f32.mrb[0].mxu0
        %v2534 = vpop.f32.mrb[0].mxu0
        %v2535 = vadd.f32 0.0, %v2534
        %v2536 = vpop.f32.mrb[0].mxu0
        %2537 = vdwg.mxu0
        %v2538 = vpack.c.bf16 %v2535, %v2532
        %v2540 = vunpack.c.l.b16 %v2538
        %v2541 = vunpack.c.h.b16 %v2538
        %v2542 = vpack.c.b16 %v2540, %v2540
        %v2543 = vpack.c.b16 %v2541, %v2541
        %2546 = vst [vmem:[%s461] sm:$0xf] %v2542
        %2547 = vst [vmem:[%s461 + $0x4] sm:$0xf] %v2543
        %s2548 = sand.u32 %s237, 1
        %s2549 = scalar_lea.sflag [#allocation4], %s2548
        %s2550 = sand.u32 %s237, 1
        %s2551 = smul.addr %s2550, 8
        %s2552 = scalar_lea.vmem [#allocation14], %s2551
        // Predicated region
        $region81: #{tpu_custom_call.1} parent=51 // pred_check
          %p2553 = pneg %p247
        $region82: #{tpu_custom_call.1} parent=51 // pred_check_branch
          %2555 = sbr.rel (%p2553) target = $region84
        $region83: #{tpu_custom_call.1} parent=51 // pred_region
          %s2556 = smul.u32 2, %s35
          %s2558 = ssub.s32 128, 128
          %2559 = vsyncadd %s2549, %s2558
          %s2560 = smul.addr %s34, 2
          %s2561 = sadd.s32 %s2556, %s2560
          %s2562 = smul.addr %s2561, 64
          %s2563 = scalar_lea.hbm %s8, %s2562
          %s2564 = sshll.u32 %s2552, 4
          %s2565 = int_to_ptr.vmem [resolvable:$true] %s2564
          %2570 = dma.vmem_to_hbm [thread:$0]  %s2565, 128, %s2563, %s2549, 64, 64, 4
        $region84: #{tpu_custom_call.1} parent=51 // pred_fallthru
          _
      $region52: #{tpu_custom_call.1} parent=5 // pred_fallthru
        _
      %p2571 = scmp.le.s32.totalorder 2, %s25
      // Predicated region
      $region85: #{tpu_custom_call.1} parent=5 // pred_check
        %p2572 = pneg %p2571
      $region86: #{tpu_custom_call.1} parent=5 // pred_check_branch
        %2574 = sbr.rel (%p2572) target = $region88
      $region87: #{tpu_custom_call.1} parent=5 // pred_region
        %s2575 = ssub.s32 %s25, 2
        // Predicated region
        $region89: #{tpu_custom_call.1} parent=87 // pred_check
          %p2576 = pneg %p253
        $region90: #{tpu_custom_call.1} parent=87 // pred_check_branch
          %2578 = sbr.rel (%p2576) target = $region92
        $region91: #{tpu_custom_call.1} parent=87 // pred_region
          %s2579 = sand.u32 %s238, 1
          %s2580 = scalar_lea.sflag [#allocation4], %s2579
          %s2581 = sand.u32 %s238, 1
          %s2582 = smul.addr %s2581, 8
          %s2583 = scalar_lea.vmem [#allocation14], %s2582
          %2584 = dma.done %s2580, 128
        $region92: #{tpu_custom_call.1} parent=87 // pred_fallthru
          _
      $region88: #{tpu_custom_call.1} parent=5 // pred_fallthru
        _
    $region6: #{tpu_custom_call.1} parent=1 // loop_footer
      %s29 = sadd.s32 1, %s25
    $region7: #{tpu_custom_call.1} parent=1 // loop_footer_branch
      %24 = sbr.rel target = $region3
    $region8: #{tpu_custom_call.1} parent=1 // loop_exit
      _
    %2585 = vsyncpa [#allocation3], 1
    %s2586 = scalar_lea.sflag [#allocation3], 1
    %2587 = vsyncpa %s2586, 1
    %2588 = vsyncpa [#allocation6], 1
    %s2589 = scalar_lea.sflag [#allocation6], 1
    %2590 = vsyncpa %s2589, 1
    %2591 = vsyncpa [#allocation9], 1
    %2592 = vsyncpa [#allocation12], 1
    %2593 = vsyncpa [#allocation4], 1
    %s2594 = scalar_lea.sflag [#allocation4], 1
    %2595 = vsyncpa %s2594, 1

</llo_original>
